<compile_context>
chip_gen: v7x
topology: tpu7x:2x2x1
jax: 0.10.0
libtpu: 0.0.40
codegen_flags: <defaults>
</compile_context>

<pallas_src>
import jax
import jax.numpy as jnp
from jax.experimental import pallas as pl
from jax.experimental.pallas import tpu as pltpu

B = 1024        # total batch
TILE_B = 512    # rows per grid step (grid = 2)
D = 256         # feature dim (lane-aligned halves of 128)
H = 128         # coupling-net hidden dim
HALF = D // 2
LD_ROWS = TILE_B // 128   # log-det packed rows per grid step


def nf_forward_kernel(
    x_ref,
    an_scale_ref, an_b_ref, an_logsum_ref,        # ActNorm: exp(log_s) (1,D), b (1,D), sum(log_s) (1,1) SMEM
    w1a_ref, b1a_ref, w2a_ref, b2a_ref,            # coupling A net (weights bf16, biases f32)
    w1b_ref, b1b_ref, w2b_ref, b2b_ref,            # coupling B net (weights bf16, biases f32)
    z1_ref, z2_ref, z3_ref, ld_ref,
):
    x = x_ref[...]                                  # (TILE_B, D) f32

    # --- flow 0: ActNorm (scale and log-det sum precomputed host-side) ------
    z0 = x * an_scale_ref[...] + an_b_ref[...]
    z1_ref[...] = z0

    # --- flow 1: affine coupling, condition on first half -------------------
    x1 = z0[:, :HALF]                               # conditioner (unchanged)
    x2 = z0[:, HALF:]                               # transformed
    h = jnp.maximum(
        jnp.dot(x1.astype(jnp.bfloat16), w1a_ref[...],
                preferred_element_type=jnp.float32) + b1a_ref[...], 0.0)
    st = jnp.dot(h.astype(jnp.bfloat16), w2a_ref[...],
                 preferred_element_type=jnp.float32) + b2a_ref[...]
    s = jnp.tanh(st[:, :HALF])                      # f32 elementwise
    t = st[:, HALF:]
    x2n = x2 * jnp.exp(s) + t
    z2_ref[:, :HALF] = x1                           # lane-aligned 128-wide stores
    z2_ref[:, HALF:] = x2n
    ld = jnp.sum(s, axis=-1, keepdims=True)         # (TILE_B, 1)

    # --- flow 2: affine coupling, condition on second half ------------------
    h = jnp.maximum(
        jnp.dot(x2n.astype(jnp.bfloat16), w1b_ref[...],
                preferred_element_type=jnp.float32) + b1b_ref[...], 0.0)
    st = jnp.dot(h.astype(jnp.bfloat16), w2b_ref[...],
                 preferred_element_type=jnp.float32) + b2b_ref[...]
    s = jnp.tanh(st[:, :HALF])
    t = st[:, HALF:]
    y1n = x1 * jnp.exp(s) + t
    z3_ref[:, :HALF] = y1n
    z3_ref[:, HALF:] = x2n
    ld = ld + jnp.sum(s, axis=-1, keepdims=True)

    # log-det: add ActNorm constant, pack lane-dense (one small XLU relayout)
    ld = ld + an_logsum_ref[0, 0]
    ld_ref[...] = ld.reshape(1, LD_ROWS, 128)


def _dim_semantics():
    # v7x has 2 TensorCores per chip: make the batch axis genuinely core-parallel
    # there; single-TC v5e/v6e keep plain PARALLEL.
    try:
        kind = jax.devices()[0].device_kind.lower()
    except Exception:
        kind = ""
    if "v7" in kind:
        return (pltpu.CORE_PARALLEL,)
    return (pltpu.PARALLEL,)


def normalizing_flow_forward(x, params):
    """Returns (zs_list, log_det) matching NormalizingFlow.forward semantics."""
    an_logs, an_b, w1a, b1a, w2a, b2a, w1b, b1b, w2b, b2b = params

    x_in = x
    b_in = x.shape[0]
    pad = (-b_in) % TILE_B
    if pad:
        x = jnp.pad(x, ((0, pad), (0, 0)))          # guard non-multiple batches
    bp = x.shape[0]
    n_tiles = bp // TILE_B

    # Hoisted ActNorm derived quantities (computed once, not per grid step).
    an_scale = jnp.exp(an_logs)                      # (1, D) f32
    an_logsum = jnp.sum(an_logs).reshape(1, 1)       # (1, 1) f32 -> SMEM scalar

    batch_spec = pl.BlockSpec((TILE_B, D), lambda i: (i, 0))

    def resident_spec(p):                            # full-extent, constant block
        return pl.BlockSpec(p.shape, lambda i: (0, 0))

    in_specs = [
        batch_spec,
        resident_spec(an_scale), resident_spec(an_b),
        pl.BlockSpec(memory_space=pltpu.MemorySpace.SMEM),
        resident_spec(w1a), resident_spec(b1a), resident_spec(w2a), resident_spec(b2a),
        resident_spec(w1b), resident_spec(b1b), resident_spec(w2b), resident_spec(b2b),
    ]
    out_specs = (
        batch_spec, batch_spec, batch_spec,
        pl.BlockSpec((1, LD_ROWS, 128), lambda i: (i, 0, 0)),
    )
    out_shape = (
        jax.ShapeDtypeStruct((bp, D), jnp.float32),
        jax.ShapeDtypeStruct((bp, D), jnp.float32),
        jax.ShapeDtypeStruct((bp, D), jnp.float32),
        jax.ShapeDtypeStruct((n_tiles, LD_ROWS, 128), jnp.float32),
    )

    z1, z2, z3, ld = pl.pallas_call(
        nf_forward_kernel,
        grid=(n_tiles,),
        in_specs=in_specs,
        out_specs=out_specs,
        out_shape=out_shape,
        compiler_params=pltpu.CompilerParams(
            dimension_semantics=_dim_semantics()),
    )(x, an_scale, an_b, an_logsum,
      w1a, b1a, w2a, b2a, w1b, b1b, w2b, b2b)

    log_det = ld.reshape(-1)[:b_in]                  # packed (tile, row, lane) -> (B,)
    if pad:
        z1, z2, z3 = z1[:b_in], z2[:b_in], z3[:b_in]
    zs_list = [x_in, z1, z2, z3]                     # zs[0] is the input itself
    return zs_list, log_det


# ---- pure-JAX reference (mirrors the PyTorch loop, same bf16-MXU convention) --
def ref_forward(x, params):
    (an_logs, an_b, w1a, b1a, w2a, b2a, w1b, b1b, w2b, b2b) = params

    def mm(a, w):
        return jnp.dot(a.astype(jnp.bfloat16), w,
                       preferred_element_type=jnp.float32)

    zs = [x]
    z = x * jnp.exp(an_logs) + an_b
    ld = jnp.sum(an_logs) * jnp.ones((x.shape[0],), jnp.float32)
    zs.append(z)

    x1, x2 = z[:, :HALF], z[:, HALF:]
    st = mm(jnp.maximum(mm(x1, w1a) + b1a, 0.0), w2a) + b2a
    s, t = jnp.tanh(st[:, :HALF]), st[:, HALF:]
    z = jnp.concatenate([x1, x2 * jnp.exp(s) + t], axis=-1)
    ld = ld + jnp.sum(s, axis=-1)
    zs.append(z)

    y1, y2 = z[:, :HALF], z[:, HALF:]
    st = mm(jnp.maximum(mm(y2, w1b) + b1b, 0.0), w2b) + b2b
    s, t = jnp.tanh(st[:, :HALF]), st[:, HALF:]
    z = jnp.concatenate([y1 * jnp.exp(s) + t, y2], axis=-1)
    ld = ld + jnp.sum(s, axis=-1)
    zs.append(z)
    return zs, ld


if __name__ == "__main__":
    key = jax.random.PRNGKey(0)
    ks = jax.random.split(key, 12)

    x = jax.random.normal(ks[0], (B, D), jnp.float32)

    # deterministic, small-scale parameter init (weights stored bf16 for the MXU)
    an_logs = 0.05 * jax.random.normal(ks[1], (1, D), jnp.float32)
    an_b = 0.05 * jax.random.normal(ks[2], (1, D), jnp.float32)
    w1a = (0.05 * jax.random.normal(ks[3], (HALF, H), jnp.float32)).astype(jnp.bfloat16)
    b1a = 0.01 * jax.random.normal(ks[4], (1, H), jnp.float32)
    w2a = (0.05 * jax.random.normal(ks[5], (H, D), jnp.float32)).astype(jnp.bfloat16)
    b2a = 0.01 * jax.random.normal(ks[6], (1, D), jnp.float32)
    w1b = (0.05 * jax.random.normal(ks[7], (HALF, H), jnp.float32)).astype(jnp.bfloat16)
    b1b = 0.01 * jax.random.normal(ks[8], (1, H), jnp.float32)
    w2b = (0.05 * jax.random.normal(ks[9], (H, D), jnp.float32)).astype(jnp.bfloat16)
    b2b = 0.01 * jax.random.normal(ks[10], (1, D), jnp.float32)

    params = (an_logs, an_b, w1a, b1a, w2a, b2a, w1b, b1b, w2b, b2b)

    zs, log_det = normalizing_flow_forward(x, params)
    jax.block_until_ready(log_det)

    # check_is_number equivalent (done host-side; raising inside a kernel has no
    # clean Pallas equivalent)
    for z in zs:
        if not bool(jnp.all(jnp.isfinite(z))):
            raise Exception("Output results is Not a Number")
    if not bool(jnp.all(jnp.isfinite(log_det))):
        raise Exception("Output results is Not a Number")

    # verify against pure-JAX reference (same bf16-to-MXU, f32-accumulate math)
    zs_ref, ld_ref_ = ref_forward(x, params)
    for za, zb in zip(zs, zs_ref):
        assert jnp.allclose(za, zb, atol=5e-3, rtol=5e-3), \
            float(jnp.max(jnp.abs(za - zb)))
    assert jnp.allclose(log_det, ld_ref_, atol=5e-3, rtol=5e-3), \
        float(jnp.max(jnp.abs(log_det - ld_ref_)))

    print("KERNEL_OK")
</pallas_src>

<mosaic_0001>
module attributes {stable_mosaic.version = 11 : i64} {
  func.func @nf_forward_kernel(%arg0: i32, %arg1: memref<512x256xf32, #tpu.memory_space<vmem>>, %arg2: memref<1x256xf32, #tpu.memory_space<vmem>>, %arg3: memref<1x256xf32, #tpu.memory_space<vmem>>, %arg4: memref<1x1xf32, #tpu.memory_space<smem>>, %arg5: memref<128x128xbf16, #tpu.memory_space<vmem>>, %arg6: memref<1x128xf32, #tpu.memory_space<vmem>>, %arg7: memref<128x256xbf16, #tpu.memory_space<vmem>>, %arg8: memref<1x256xf32, #tpu.memory_space<vmem>>, %arg9: memref<128x128xbf16, #tpu.memory_space<vmem>>, %arg10: memref<1x128xf32, #tpu.memory_space<vmem>>, %arg11: memref<128x256xbf16, #tpu.memory_space<vmem>>, %arg12: memref<1x256xf32, #tpu.memory_space<vmem>>, %arg13: memref<512x256xf32, #tpu.memory_space<vmem>>, %arg14: memref<512x256xf32, #tpu.memory_space<vmem>>, %arg15: memref<512x256xf32, #tpu.memory_space<vmem>>, %arg16: memref<1x4x128xf32, #tpu.memory_space<vmem>>) attributes {dimension_semantics = [#tpu.dimension_semantics<parallel>], iteration_bounds = array<i64: 2>, scalar_prefetch = 0 : i64, scratch_operands = 0 : i64, tpu.core_type = #tpu.core_type<tc>, window_params = [{transform_indices = @transform_0, window_bounds = array<i64: 512, 256>}, {pipeline_mode = #tpu.pipeline_mode<synchronous>, transform_indices = @transform_1, window_bounds = array<i64: 1, 256>}, {pipeline_mode = #tpu.pipeline_mode<synchronous>, transform_indices = @transform_2, window_bounds = array<i64: 1, 256>}, {transform_indices = @transform_3, window_bounds = array<i64: 1, 1>}, {pipeline_mode = #tpu.pipeline_mode<synchronous>, transform_indices = @transform_4, window_bounds = array<i64: 128, 128>}, {pipeline_mode = #tpu.pipeline_mode<synchronous>, transform_indices = @transform_5, window_bounds = array<i64: 1, 128>}, {pipeline_mode = #tpu.pipeline_mode<synchronous>, transform_indices = @transform_6, window_bounds = array<i64: 128, 256>}, {pipeline_mode = #tpu.pipeline_mode<synchronous>, transform_indices = @transform_7, window_bounds = array<i64: 1, 256>}, {pipeline_mode = #tpu.pipeline_mode<synchronous>, transform_indices = @transform_8, window_bounds = array<i64: 128, 128>}, {pipeline_mode = #tpu.pipeline_mode<synchronous>, transform_indices = @transform_9, window_bounds = array<i64: 1, 128>}, {pipeline_mode = #tpu.pipeline_mode<synchronous>, transform_indices = @transform_10, window_bounds = array<i64: 128, 256>}, {pipeline_mode = #tpu.pipeline_mode<synchronous>, transform_indices = @transform_11, window_bounds = array<i64: 1, 256>}, {transform_indices = @transform_12, window_bounds = array<i64: 512, 256>}, {transform_indices = @transform_13, window_bounds = array<i64: 512, 256>}, {transform_indices = @transform_14, window_bounds = array<i64: 512, 256>}, {transform_indices = @transform_15, window_bounds = array<i64: 1, 4, 128>}]} {
    %c0 = arith.constant 0 : index
    %c0_0 = arith.constant 0 : index
    %0 = vector.load %arg1[%c0, %c0_0] : memref<512x256xf32, #tpu.memory_space<vmem>>, vector<512x256xf32>
    %c0_1 = arith.constant 0 : index
    %c0_2 = arith.constant 0 : index
    %1 = vector.load %arg2[%c0_1, %c0_2] : memref<1x256xf32, #tpu.memory_space<vmem>>, vector<1x256xf32>
    %2 = vector.broadcast %1 : vector<1x256xf32> to vector<512x256xf32>
    %3 = arith.mulf %0, %2 : vector<512x256xf32>
    %c0_3 = arith.constant 0 : index
    %c0_4 = arith.constant 0 : index
    %4 = vector.load %arg3[%c0_3, %c0_4] : memref<1x256xf32, #tpu.memory_space<vmem>>, vector<1x256xf32>
    %5 = vector.broadcast %4 : vector<1x256xf32> to vector<512x256xf32>
    %6 = arith.addf %3, %5 : vector<512x256xf32>
    %c0_5 = arith.constant 0 : index
    %c0_6 = arith.constant 0 : index
    %7 = vector.load %arg13[%c0_5, %c0_6] : memref<512x256xf32, #tpu.memory_space<vmem>>, vector<512x256xf32>
    tpu.vector_store %arg13[%c0_5, %c0_6], %6 {strides = array<i32>} : memref<512x256xf32, #tpu.memory_space<vmem>>, vector<512x256xf32>,
    %8 = vector.extract_strided_slice %6 {offsets = [0, 0], sizes = [512, 128], strides = [1, 1]} : vector<512x256xf32> to vector<512x128xf32>
    %9 = vector.extract_strided_slice %6 {offsets = [0, 128], sizes = [512, 128], strides = [1, 1]} : vector<512x256xf32> to vector<512x128xf32>
    %10 = arith.truncf %8 : vector<512x128xf32> to vector<512x128xbf16>
    %c0_7 = arith.constant 0 : index
    %c0_8 = arith.constant 0 : index
    %11 = vector.load %arg5[%c0_7, %c0_8] : memref<128x128xbf16, #tpu.memory_space<vmem>>, vector<128x128xbf16>
    %cst = arith.constant dense<0.000000e+00> : vector<512x128xf32>
    %12 = tpu.matmul %10, %11, %cst {dimension_numbers = #tpu.dot_dimension_numbers<[1], [0], [0], [1], [0, 0, 1, 1], [], []>} : vector<512x128xbf16>, vector<128x128xbf16>, vector<512x128xf32> -> vector<512x128xf32>
    %c0_9 = arith.constant 0 : index
    %c0_10 = arith.constant 0 : index
    %13 = vector.load %arg6[%c0_9, %c0_10] : memref<1x128xf32, #tpu.memory_space<vmem>>, vector<1x128xf32>
    %14 = vector.broadcast %13 : vector<1x128xf32> to vector<512x128xf32>
    %15 = arith.addf %12, %14 : vector<512x128xf32>
    %cst_11 = arith.constant 0.000000e+00 : f32
    %16 = vector.broadcast %cst_11 : f32 to vector<512x128xf32>
    %17 = arith.maximumf %15, %16 : vector<512x128xf32>
    %18 = arith.truncf %17 : vector<512x128xf32> to vector<512x128xbf16>
    %c0_12 = arith.constant 0 : index
    %c0_13 = arith.constant 0 : index
    %19 = vector.load %arg7[%c0_12, %c0_13] : memref<128x256xbf16, #tpu.memory_space<vmem>>, vector<128x256xbf16>
    %cst_14 = arith.constant dense<0.000000e+00> : vector<512x256xf32>
    %20 = tpu.matmul %18, %19, %cst_14 {dimension_numbers = #tpu.dot_dimension_numbers<[1], [0], [0], [1], [0, 0, 1, 1], [], []>} : vector<512x128xbf16>, vector<128x256xbf16>, vector<512x256xf32> -> vector<512x256xf32>
    %c0_15 = arith.constant 0 : index
    %c0_16 = arith.constant 0 : index
    %21 = vector.load %arg8[%c0_15, %c0_16] : memref<1x256xf32, #tpu.memory_space<vmem>>, vector<1x256xf32>
    %22 = vector.broadcast %21 : vector<1x256xf32> to vector<512x256xf32>
    %23 = arith.addf %20, %22 : vector<512x256xf32>
    %24 = vector.extract_strided_slice %23 {offsets = [0, 0], sizes = [512, 128], strides = [1, 1]} : vector<512x256xf32> to vector<512x128xf32>
    %25 = math.tanh %24 : vector<512x128xf32>
    %26 = vector.extract_strided_slice %23 {offsets = [0, 128], sizes = [512, 128], strides = [1, 1]} : vector<512x256xf32> to vector<512x128xf32>
    %27 = math.exp %25 : vector<512x128xf32>
    %28 = arith.mulf %9, %27 : vector<512x128xf32>
    %29 = arith.addf %28, %26 : vector<512x128xf32>
    %c0_17 = arith.constant 0 : index
    %c0_18 = arith.constant 0 : index
    %30 = vector.load %arg14[%c0_17, %c0_18] : memref<512x256xf32, #tpu.memory_space<vmem>>, vector<512x128xf32>
    tpu.vector_store %arg14[%c0_17, %c0_18], %8 {strides = array<i32>} : memref<512x256xf32, #tpu.memory_space<vmem>>, vector<512x128xf32>,
    %c0_19 = arith.constant 0 : index
    %c128 = arith.constant 128 : index
    %31 = vector.load %arg14[%c0_19, %c128] : memref<512x256xf32, #tpu.memory_space<vmem>>, vector<512x128xf32>
    tpu.vector_store %arg14[%c0_19, %c128], %29 {strides = array<i32>} : memref<512x256xf32, #tpu.memory_space<vmem>>, vector<512x128xf32>,
    %cst_20 = arith.constant dense<0.000000e+00> : vector<512xf32>
    %32 = vector.multi_reduction <add>, %25, %cst_20 [1] : vector<512x128xf32> to vector<512xf32>
    %33 = vector.shape_cast %32 : vector<512xf32> to vector<512x1xf32>
    %34 = arith.truncf %29 : vector<512x128xf32> to vector<512x128xbf16>
    %c0_21 = arith.constant 0 : index
    %c0_22 = arith.constant 0 : index
    %35 = vector.load %arg9[%c0_21, %c0_22] : memref<128x128xbf16, #tpu.memory_space<vmem>>, vector<128x128xbf16>
    %cst_23 = arith.constant dense<0.000000e+00> : vector<512x128xf32>
    %36 = tpu.matmul %34, %35, %cst_23 {dimension_numbers = #tpu.dot_dimension_numbers<[1], [0], [0], [1], [0, 0, 1, 1], [], []>} : vector<512x128xbf16>, vector<128x128xbf16>, vector<512x128xf32> -> vector<512x128xf32>
    %c0_24 = arith.constant 0 : index
    %c0_25 = arith.constant 0 : index
    %37 = vector.load %arg10[%c0_24, %c0_25] : memref<1x128xf32, #tpu.memory_space<vmem>>, vector<1x128xf32>
    %38 = vector.broadcast %37 : vector<1x128xf32> to vector<512x128xf32>
    %39 = arith.addf %36, %38 : vector<512x128xf32>
    %cst_26 = arith.constant 0.000000e+00 : f32
    %40 = vector.broadcast %cst_26 : f32 to vector<512x128xf32>
    %41 = arith.maximumf %39, %40 : vector<512x128xf32>
    %42 = arith.truncf %41 : vector<512x128xf32> to vector<512x128xbf16>
    %c0_27 = arith.constant 0 : index
    %c0_28 = arith.constant 0 : index
    %43 = vector.load %arg11[%c0_27, %c0_28] : memref<128x256xbf16, #tpu.memory_space<vmem>>, vector<128x256xbf16>
    %cst_29 = arith.constant dense<0.000000e+00> : vector<512x256xf32>
    %44 = tpu.matmul %42, %43, %cst_29 {dimension_numbers = #tpu.dot_dimension_numbers<[1], [0], [0], [1], [0, 0, 1, 1], [], []>} : vector<512x128xbf16>, vector<128x256xbf16>, vector<512x256xf32> -> vector<512x256xf32>
    %c0_30 = arith.constant 0 : index
    %c0_31 = arith.constant 0 : index
    %45 = vector.load %arg12[%c0_30, %c0_31] : memref<1x256xf32, #tpu.memory_space<vmem>>, vector<1x256xf32>
    %46 = vector.broadcast %45 : vector<1x256xf32> to vector<512x256xf32>
    %47 = arith.addf %44, %46 : vector<512x256xf32>
    %48 = vector.extract_strided_slice %47 {offsets = [0, 0], sizes = [512, 128], strides = [1, 1]} : vector<512x256xf32> to vector<512x128xf32>
    %49 = math.tanh %48 : vector<512x128xf32>
    %50 = vector.extract_strided_slice %47 {offsets = [0, 128], sizes = [512, 128], strides = [1, 1]} : vector<512x256xf32> to vector<512x128xf32>
    %51 = math.exp %49 : vector<512x128xf32>
    %52 = arith.mulf %8, %51 : vector<512x128xf32>
    %53 = arith.addf %52, %50 : vector<512x128xf32>
    %c0_32 = arith.constant 0 : index
    %c0_33 = arith.constant 0 : index
    %54 = vector.load %arg15[%c0_32, %c0_33] : memref<512x256xf32, #tpu.memory_space<vmem>>, vector<512x128xf32>
    tpu.vector_store %arg15[%c0_32, %c0_33], %53 {strides = array<i32>} : memref<512x256xf32, #tpu.memory_space<vmem>>, vector<512x128xf32>,
    %c0_34 = arith.constant 0 : index
    %c128_35 = arith.constant 128 : index
    %55 = vector.load %arg15[%c0_34, %c128_35] : memref<512x256xf32, #tpu.memory_space<vmem>>, vector<512x128xf32>
    tpu.vector_store %arg15[%c0_34, %c128_35], %29 {strides = array<i32>} : memref<512x256xf32, #tpu.memory_space<vmem>>, vector<512x128xf32>,
    %cst_36 = arith.constant dense<0.000000e+00> : vector<512xf32>
    %56 = vector.multi_reduction <add>, %49, %cst_36 [1] : vector<512x128xf32> to vector<512xf32>
    %57 = vector.shape_cast %56 : vector<512xf32> to vector<512x1xf32>
    %58 = arith.addf %33, %57 : vector<512x1xf32>
    %c0_37 = arith.constant 0 : index
    %c0_38 = arith.constant 0 : index
    %59 = memref.load %arg4[%c0_37, %c0_38] : memref<1x1xf32, #tpu.memory_space<smem>>
    %60 = vector.broadcast %59 : f32 to vector<512x1xf32>
    %61 = arith.addf %58, %60 : vector<512x1xf32>
    %62 = vector.shape_cast %61 : vector<512x1xf32> to vector<1x4x128xf32>
    %c0_39 = arith.constant 0 : index
    %c0_40 = arith.constant 0 : index
    %c0_41 = arith.constant 0 : index
    %63 = vector.load %arg16[%c0_39, %c0_40, %c0_41] : memref<1x4x128xf32, #tpu.memory_space<vmem>>, vector<1x4x128xf32>
    tpu.vector_store %arg16[%c0_39, %c0_40, %c0_41], %62 {strides = array<i32>} : memref<1x4x128xf32, #tpu.memory_space<vmem>>, vector<1x4x128xf32>,
    return
  }
  func.func @transform_0(%arg0: i32) -> (i32, i32) {
    %c0_i32 = arith.constant 0 : i32
    %c0_i32_0 = arith.constant 0 : i32
    return %arg0, %c0_i32 : i32, i32
  }
  func.func @transform_1(%arg0: i32) -> (i32, i32) {
    %c0_i32 = arith.constant 0 : i32
    %c0_i32_0 = arith.constant 0 : i32
    %c0_i32_1 = arith.constant 0 : i32
    return %c0_i32, %c0_i32_0 : i32, i32
  }
  func.func @transform_2(%arg0: i32) -> (i32, i32) {
    %c0_i32 = arith.constant 0 : i32
    %c0_i32_0 = arith.constant 0 : i32
    %c0_i32_1 = arith.constant 0 : i32
    return %c0_i32, %c0_i32_0 : i32, i32
  }
  func.func @transform_3(%arg0: i32) -> (i32, i32) {
    %c0_i32 = arith.constant 0 : i32
    %c0_i32_0 = arith.constant 0 : i32
    %c0_i32_1 = arith.constant 0 : i32
    return %c0_i32, %c0_i32_0 : i32, i32
  }
  func.func @transform_4(%arg0: i32) -> (i32, i32) {
    %c0_i32 = arith.constant 0 : i32
    %c0_i32_0 = arith.constant 0 : i32
    %c0_i32_1 = arith.constant 0 : i32
    return %c0_i32, %c0_i32_0 : i32, i32
  }
  func.func @transform_5(%arg0: i32) -> (i32, i32) {
    %c0_i32 = arith.constant 0 : i32
    %c0_i32_0 = arith.constant 0 : i32
    %c0_i32_1 = arith.constant 0 : i32
    return %c0_i32, %c0_i32_0 : i32, i32
  }
  func.func @transform_6(%arg0: i32) -> (i32, i32) {
    %c0_i32 = arith.constant 0 : i32
    %c0_i32_0 = arith.constant 0 : i32
    %c0_i32_1 = arith.constant 0 : i32
    return %c0_i32, %c0_i32_0 : i32, i32
  }
  func.func @transform_7(%arg0: i32) -> (i32, i32) {
    %c0_i32 = arith.constant 0 : i32
    %c0_i32_0 = arith.constant 0 : i32
    %c0_i32_1 = arith.constant 0 : i32
    return %c0_i32, %c0_i32_0 : i32, i32
  }
  func.func @transform_8(%arg0: i32) -> (i32, i32) {
    %c0_i32 = arith.constant 0 : i32
    %c0_i32_0 = arith.constant 0 : i32
    %c0_i32_1 = arith.constant 0 : i32
    return %c0_i32, %c0_i32_0 : i32, i32
  }
  func.func @transform_9(%arg0: i32) -> (i32, i32) {
    %c0_i32 = arith.constant 0 : i32
    %c0_i32_0 = arith.constant 0 : i32
    %c0_i32_1 = arith.constant 0 : i32
    return %c0_i32, %c0_i32_0 : i32, i32
  }
  func.func @transform_10(%arg0: i32) -> (i32, i32) {
    %c0_i32 = arith.constant 0 : i32
    %c0_i32_0 = arith.constant 0 : i32
    %c0_i32_1 = arith.constant 0 : i32
    return %c0_i32, %c0_i32_0 : i32, i32
  }
  func.func @transform_11(%arg0: i32) -> (i32, i32) {
    %c0_i32 = arith.constant 0 : i32
    %c0_i32_0 = arith.constant 0 : i32
    %c0_i32_1 = arith.constant 0 : i32
    return %c0_i32, %c0_i32_0 : i32, i32
  }
  func.func @transform_12(%arg0: i32) -> (i32, i32) {
    %c0_i32 = arith.constant 0 : i32
    %c0_i32_0 = arith.constant 0 : i32
    return %arg0, %c0_i32 : i32, i32
  }
  func.func @transform_13(%arg0: i32) -> (i32, i32) {
    %c0_i32 = arith.constant 0 : i32
    %c0_i32_0 = arith.constant 0 : i32
    return %arg0, %c0_i32 : i32, i32
  }
  func.func @transform_14(%arg0: i32) -> (i32, i32) {
    %c0_i32 = arith.constant 0 : i32
    %c0_i32_0 = arith.constant 0 : i32
    return %arg0, %c0_i32 : i32, i32
  }
  func.func @transform_15(%arg0: i32) -> (i32, i32, i32) {
    %c0_i32 = arith.constant 0 : i32
    %c0_i32_0 = arith.constant 0 : i32
    %c0_i32_1 = arith.constant 0 : i32
    return %arg0, %c0_i32, %c0_i32_0 : i32, i32, i32
  }
}

</mosaic_0001>

<llo_original>
// kernel: tpu_custom_call.1
$region0: #{tpu_custom_call.1}
  #allocation0 [shape = 'u32[]', space=smem, size = 0x4, offset = 0x4, fixed_abs, tag = 'smem constant byte address 0x4 - core index']
  #allocation1 [shape = 'u32[144,128]{1,0:T(1,128)}', space=vmem, size = 0x12000, scoped, tag = 'internal scratch']
  #allocation2 [shape = 'f32[1,1]{1,0:T(1,128)S(6)}', space=smem, size = 0x200, scoped, tag = 'scoped memory for tpu_custom_call.1']
  %s0 = inlined_call_operand.hbm [shape: f32[1024,256], index: 0, kind: input, shape index: {}]
  %s1 = inlined_call_operand.vmem [shape: f32[1,256], index: 1, kind: input, shape index: {}]
  %s2 = inlined_call_operand.vmem [shape: f32[1,256], index: 2, kind: input, shape index: {}]
  %s3 = inlined_call_operand.<no memory space> [shape: f32[1,1], index: 3, kind: input, shape index: {}]
  %s4 = inlined_call_operand.hbm [shape: bf16[128,128], index: 4, kind: input, shape index: {}]
  %s5 = inlined_call_operand.vmem [shape: f32[1,128], index: 5, kind: input, shape index: {}]
  %s6 = inlined_call_operand.hbm [shape: bf16[128,256], index: 6, kind: input, shape index: {}]
  %s7 = inlined_call_operand.vmem [shape: f32[1,256], index: 7, kind: input, shape index: {}]
  %s8 = inlined_call_operand.hbm [shape: bf16[128,128], index: 8, kind: input, shape index: {}]
  %s9 = inlined_call_operand.vmem [shape: f32[1,128], index: 9, kind: input, shape index: {}]
  %s10 = inlined_call_operand.hbm [shape: bf16[128,256], index: 10, kind: input, shape index: {}]
  %s11 = inlined_call_operand.vmem [shape: f32[1,256], index: 11, kind: input, shape index: {}]
  %s12 = inlined_call_operand.hbm [shape: f32[1024,256], index: 12, kind: output, shape index: {0}]
  %s13 = inlined_call_operand.hbm [shape: f32[1024,256], index: 13, kind: output, shape index: {1}]
  %s14 = inlined_call_operand.hbm [shape: f32[1024,256], index: 14, kind: output, shape index: {2}]
  %s15 = inlined_call_operand.hbm [shape: f32[2,4,128], index: 15, kind: output, shape index: {3}]
  %16 = xla_tuple %s12, %s13, %s14, %s15
  %s17 = sld [smem:[#allocation0]]
  $region125: #{tpu_custom_call.1} parent=0
    _
  %s19 = ssub.s32 1, %s17
  %s20 = scalar_select 0, %s19, %s17
  %21 = sst [smem:[#allocation2]] %s3
  $region1: #{tpu_custom_call.1} parent=0
    #allocation3 [shape = 'u8[1048576]{0}', space=vmem, size = 0x100000, scoped, tag = 'input window, operand 0']
    #allocation4 [shape = 's32[2]{0}', space=sflag, size = 0x8, scoped, tag = 'scoped memory for tpu_custom_call.1']
    #allocation5 [shape = 's32[2]{0}', space=sflag, size = 0x8, scoped, tag = 'scoped memory for tpu_custom_call.1']
    #allocation6 [shape = 'u8[32768]{0}', space=vmem, size = 0x8000, scoped, tag = 'input window, operand 4, single buffered']
    #allocation7 [shape = 's32[1]{0}', space=sflag, size = 0x4, scoped, tag = 'scoped memory for tpu_custom_call.1']
    #allocation8 [shape = 'u8[65536]{0}', space=vmem, size = 0x10000, scoped, tag = 'input window, operand 6, single buffered']
    #allocation9 [shape = 'u8[32768]{0}', space=vmem, size = 0x8000, scoped, tag = 'input window, operand 8, single buffered']
    #allocation10 [shape = 's32[1]{0}', space=sflag, size = 0x4, scoped, tag = 'scoped memory for tpu_custom_call.1']
    #allocation11 [shape = 'u8[65536]{0}', space=vmem, size = 0x10000, scoped, tag = 'input window, operand 10, single buffered']
    #allocation12 [shape = 'u8[1048576]{0}', space=vmem, size = 0x100000, scoped, tag = 'output window, operand 0']
    #allocation13 [shape = 'u8[1048576]{0}', space=vmem, size = 0x100000, scoped, tag = 'output window, operand 1']
    #allocation14 [shape = 's32[2]{0}', space=sflag, size = 0x8, scoped, tag = 'scoped memory for tpu_custom_call.1']
    #allocation15 [shape = 'u8[1048576]{0}', space=vmem, size = 0x100000, scoped, tag = 'output window, operand 2']
    #allocation16 [shape = 'u8[4096]{0}', space=vmem, size = 0x1000, scoped, tag = 'output window, operand 3']
    #allocation17 [shape = 's32[2]{0}', space=sflag, size = 0x8, scoped, tag = 'scoped memory for tpu_custom_call.1']
    %22 = vsyncpa [#allocation4], 0
    %s23 = scalar_lea.sflag [#allocation4], 1
    %24 = vsyncpa %s23, 0
    %25 = vsyncpa [#allocation7], 0
    %26 = vsyncpa [#allocation10], 0
    %27 = vsyncpa [#allocation5], 0
    %s28 = scalar_lea.sflag [#allocation5], 1
    %29 = vsyncpa %s28, 0
    %30 = vsyncpa [#allocation14], 0
    %s31 = scalar_lea.sflag [#allocation14], 1
    %32 = vsyncpa %s31, 0
    %33 = vsyncpa [#allocation17], 0
    %s34 = scalar_lea.sflag [#allocation17], 1
    %35 = vsyncpa %s34, 0
    loop: start=0, step=1, limit=4
    $region2: #{tpu_custom_call.1} parent=1 // loop_pre_header
      _
    $region3: #{tpu_custom_call.1} parent=1 // loop_header
      %s37 = sphi 0, %s41
      %p38 = scmp.ge.s32.totalorder %s37, 4
      %s47 = sphi 0, %s49
      %s50 = sphi 0, %s47
      %s51 = sphi 0, %s50
      %s67 = sphi 0, %s51
      %s71 = sphi 0, %s71
      %s73 = sphi 0, %s71
      %s74 = sphi 0, %s73
      %s88 = sphi 0, %s74
      %s92 = sphi 0, %s92
      %s94 = sphi 0, %s92
      %s95 = sphi 0, %s94
      %s109 = sphi 0, %s95
      %s113 = sphi 0, %s113
      %s115 = sphi 0, %s113
      %s116 = sphi 0, %s115
      %s130 = sphi 0, %s116
      %s134 = sphi 0, %s134
      %s136 = sphi 0, %s134
      %s137 = sphi 0, %s136
      %s151 = sphi 0, %s137
      %s155 = sphi 0, %s155
      %s157 = sphi 0, %s155
      %s158 = sphi 0, %s157
      %s172 = sphi 0, %s158
      %s176 = sphi 0, %s176
      %s178 = sphi 0, %s176
      %s179 = sphi 0, %s178
      %s193 = sphi 0, %s179
      %s197 = sphi 0, %s197
      %s199 = sphi 0, %s197
      %s200 = sphi 0, %s199
      %s214 = sphi 0, %s200
      %s218 = sphi 0, %s218
      %s220 = sphi 0, %s218
      %s221 = sphi 0, %s220
      %s235 = sphi 0, %s221
      %s239 = sphi 0, %s239
      %s241 = sphi 0, %s239
      %s242 = sphi 0, %s241
      %s256 = sphi 0, %s242
      %s260 = sphi 0, %s260
      %s262 = sphi 0, %s260
      %s263 = sphi 0, %s262
      %s277 = sphi 0, %s263
      %s281 = sphi 0, %s281
      %s283 = sphi 0, %s281
      %s284 = sphi 0, %s283
      %s298 = sphi 0, %s284
      %s304 = sphi 0, %s306
      %s307 = sphi 0, %s304
      %s308 = sphi 0, %s307
      %s324 = sphi 0, %s308
      %s330 = sphi 0, %s332
      %s333 = sphi 0, %s330
      %s334 = sphi 0, %s333
      %s350 = sphi 0, %s334
      %s356 = sphi 0, %s358
      %s359 = sphi 0, %s356
      %s360 = sphi 0, %s359
      %s376 = sphi 0, %s360
      %s382 = sphi 0, %s384
      %s385 = sphi 0, %s382
      %s386 = sphi 0, %s385
      %s402 = sphi 0, %s386
    $region4: #{tpu_custom_call.1} parent=1 // loop_header_branch
      %40 = sbr.rel (%p38) target = $region8
    $region5: #{tpu_custom_call.1} parent=1 // loop_body
      %s42 = ssub.s32 %s37, 1
      %s43 = ssub.s32 %s37, 2
      %s44 = sadd.s32 %s37, 1
      %s45 = ssub.s32 %s37, %s44
      %p46 = scmp.eq.s32.totalorder %s45, 0
      %s48 = sadd.s32 %s47, 1
      %s49 = scalar_select %p46, %s47, %s48
      %p52 = pneg %p46
      %p53 = scmp.eq.s32.totalorder %s37, 1
      %p54 = por %p52, %p53
      %p55 = scmp.ne.s32.totalorder %s47, %s50
      %p56 = scmp.eq.s32.totalorder %s37, 0
      %p57 = por %p55, %p56
      %p58 = scmp.ne.s32.totalorder %s47, %s50
      %p59 = scmp.eq.s32.totalorder %s42, 1
      %p60 = por %p58, %p59
      %p61 = scmp.ne.s32.totalorder %s50, %s51
      %p62 = scmp.eq.s32.totalorder %s42, 0
      %p63 = por %p61, %p62
      %p64 = scmp.ne.s32.totalorder %s50, %s51
      %p65 = scmp.eq.s32.totalorder %s43, 1
      %p66 = por %p64, %p65
      %p68 = scmp.ne.s32.totalorder %s51, %s67
      %p69 = scmp.eq.s32.totalorder %s43, 0
      %p70 = por %p68, %p69
      %s72 = sadd.s32 %s71, 1
      %p75 = scmp.eq.s32.totalorder %s37, 1
      %p76 = scmp.ne.s32.totalorder %s71, %s73
      %p77 = scmp.eq.s32.totalorder %s37, 0
      %p78 = por %p76, %p77
      %p79 = scmp.ne.s32.totalorder %s71, %s73
      %p80 = scmp.eq.s32.totalorder %s42, 1
      %p81 = por %p79, %p80
      %p82 = scmp.ne.s32.totalorder %s73, %s74
      %p83 = scmp.eq.s32.totalorder %s42, 0
      %p84 = por %p82, %p83
      %p85 = scmp.ne.s32.totalorder %s73, %s74
      %p86 = scmp.eq.s32.totalorder %s43, 1
      %p87 = por %p85, %p86
      %p89 = scmp.ne.s32.totalorder %s74, %s88
      %p90 = scmp.eq.s32.totalorder %s43, 0
      %p91 = por %p89, %p90
      %s93 = sadd.s32 %s92, 1
      %p96 = scmp.eq.s32.totalorder %s37, 1
      %p97 = scmp.ne.s32.totalorder %s92, %s94
      %p98 = scmp.eq.s32.totalorder %s37, 0
      %p99 = por %p97, %p98
      %p100 = scmp.ne.s32.totalorder %s92, %s94
      %p101 = scmp.eq.s32.totalorder %s42, 1
      %p102 = por %p100, %p101
      %p103 = scmp.ne.s32.totalorder %s94, %s95
      %p104 = scmp.eq.s32.totalorder %s42, 0
      %p105 = por %p103, %p104
      %p106 = scmp.ne.s32.totalorder %s94, %s95
      %p107 = scmp.eq.s32.totalorder %s43, 1
      %p108 = por %p106, %p107
      %p110 = scmp.ne.s32.totalorder %s95, %s109
      %p111 = scmp.eq.s32.totalorder %s43, 0
      %p112 = por %p110, %p111
      %s114 = sadd.s32 %s113, 1
      %p117 = scmp.eq.s32.totalorder %s37, 1
      %p118 = scmp.ne.s32.totalorder %s113, %s115
      %p119 = scmp.eq.s32.totalorder %s37, 0
      %p120 = por %p118, %p119
      %p121 = scmp.ne.s32.totalorder %s113, %s115
      %p122 = scmp.eq.s32.totalorder %s42, 1
      %p123 = por %p121, %p122
      %p124 = scmp.ne.s32.totalorder %s115, %s116
      %p125 = scmp.eq.s32.totalorder %s42, 0
      %p126 = por %p124, %p125
      %p127 = scmp.ne.s32.totalorder %s115, %s116
      %p128 = scmp.eq.s32.totalorder %s43, 1
      %p129 = por %p127, %p128
      %p131 = scmp.ne.s32.totalorder %s116, %s130
      %p132 = scmp.eq.s32.totalorder %s43, 0
      %p133 = por %p131, %p132
      %s135 = sadd.s32 %s134, 1
      %p138 = scmp.eq.s32.totalorder %s37, 1
      %p139 = scmp.ne.s32.totalorder %s134, %s136
      %p140 = scmp.eq.s32.totalorder %s37, 0
      %p141 = por %p139, %p140
      %p142 = scmp.ne.s32.totalorder %s134, %s136
      %p143 = scmp.eq.s32.totalorder %s42, 1
      %p144 = por %p142, %p143
      %p145 = scmp.ne.s32.totalorder %s136, %s137
      %p146 = scmp.eq.s32.totalorder %s42, 0
      %p147 = por %p145, %p146
      %p148 = scmp.ne.s32.totalorder %s136, %s137
      %p149 = scmp.eq.s32.totalorder %s43, 1
      %p150 = por %p148, %p149
      %p152 = scmp.ne.s32.totalorder %s137, %s151
      %p153 = scmp.eq.s32.totalorder %s43, 0
      %p154 = por %p152, %p153
      %s156 = sadd.s32 %s155, 1
      %p159 = scmp.eq.s32.totalorder %s37, 1
      %p160 = scmp.ne.s32.totalorder %s155, %s157
      %p161 = scmp.eq.s32.totalorder %s37, 0
      %p162 = por %p160, %p161
      %p163 = scmp.ne.s32.totalorder %s155, %s157
      %p164 = scmp.eq.s32.totalorder %s42, 1
      %p165 = por %p163, %p164
      %p166 = scmp.ne.s32.totalorder %s157, %s158
      %p167 = scmp.eq.s32.totalorder %s42, 0
      %p168 = por %p166, %p167
      %p169 = scmp.ne.s32.totalorder %s157, %s158
      %p170 = scmp.eq.s32.totalorder %s43, 1
      %p171 = por %p169, %p170
      %p173 = scmp.ne.s32.totalorder %s158, %s172
      %p174 = scmp.eq.s32.totalorder %s43, 0
      %p175 = por %p173, %p174
      %s177 = sadd.s32 %s176, 1
      %p180 = scmp.eq.s32.totalorder %s37, 1
      %p181 = scmp.ne.s32.totalorder %s176, %s178
      %p182 = scmp.eq.s32.totalorder %s37, 0
      %p183 = por %p181, %p182
      %p184 = scmp.ne.s32.totalorder %s176, %s178
      %p185 = scmp.eq.s32.totalorder %s42, 1
      %p186 = por %p184, %p185
      %p187 = scmp.ne.s32.totalorder %s178, %s179
      %p188 = scmp.eq.s32.totalorder %s42, 0
      %p189 = por %p187, %p188
      %p190 = scmp.ne.s32.totalorder %s178, %s179
      %p191 = scmp.eq.s32.totalorder %s43, 1
      %p192 = por %p190, %p191
      %p194 = scmp.ne.s32.totalorder %s179, %s193
      %p195 = scmp.eq.s32.totalorder %s43, 0
      %p196 = por %p194, %p195
      %s198 = sadd.s32 %s197, 1
      %p201 = scmp.eq.s32.totalorder %s37, 1
      %p202 = scmp.ne.s32.totalorder %s197, %s199
      %p203 = scmp.eq.s32.totalorder %s37, 0
      %p204 = por %p202, %p203
      %p205 = scmp.ne.s32.totalorder %s197, %s199
      %p206 = scmp.eq.s32.totalorder %s42, 1
      %p207 = por %p205, %p206
      %p208 = scmp.ne.s32.totalorder %s199, %s200
      %p209 = scmp.eq.s32.totalorder %s42, 0
      %p210 = por %p208, %p209
      %p211 = scmp.ne.s32.totalorder %s199, %s200
      %p212 = scmp.eq.s32.totalorder %s43, 1
      %p213 = por %p211, %p212
      %p215 = scmp.ne.s32.totalorder %s200, %s214
      %p216 = scmp.eq.s32.totalorder %s43, 0
      %p217 = por %p215, %p216
      %s219 = sadd.s32 %s218, 1
      %p222 = scmp.eq.s32.totalorder %s37, 1
      %p223 = scmp.ne.s32.totalorder %s218, %s220
      %p224 = scmp.eq.s32.totalorder %s37, 0
      %p225 = por %p223, %p224
      %p226 = scmp.ne.s32.totalorder %s218, %s220
      %p227 = scmp.eq.s32.totalorder %s42, 1
      %p228 = por %p226, %p227
      %p229 = scmp.ne.s32.totalorder %s220, %s221
      %p230 = scmp.eq.s32.totalorder %s42, 0
      %p231 = por %p229, %p230
      %p232 = scmp.ne.s32.totalorder %s220, %s221
      %p233 = scmp.eq.s32.totalorder %s43, 1
      %p234 = por %p232, %p233
      %p236 = scmp.ne.s32.totalorder %s221, %s235
      %p237 = scmp.eq.s32.totalorder %s43, 0
      %p238 = por %p236, %p237
      %s240 = sadd.s32 %s239, 1
      %p243 = scmp.eq.s32.totalorder %s37, 1
      %p244 = scmp.ne.s32.totalorder %s239, %s241
      %p245 = scmp.eq.s32.totalorder %s37, 0
      %p246 = por %p244, %p245
      %p247 = scmp.ne.s32.totalorder %s239, %s241
      %p248 = scmp.eq.s32.totalorder %s42, 1
      %p249 = por %p247, %p248
      %p250 = scmp.ne.s32.totalorder %s241, %s242
      %p251 = scmp.eq.s32.totalorder %s42, 0
      %p252 = por %p250, %p251
      %p253 = scmp.ne.s32.totalorder %s241, %s242
      %p254 = scmp.eq.s32.totalorder %s43, 1
      %p255 = por %p253, %p254
      %p257 = scmp.ne.s32.totalorder %s242, %s256
      %p258 = scmp.eq.s32.totalorder %s43, 0
      %p259 = por %p257, %p258
      %s261 = sadd.s32 %s260, 1
      %p264 = scmp.eq.s32.totalorder %s37, 1
      %p265 = scmp.ne.s32.totalorder %s260, %s262
      %p266 = scmp.eq.s32.totalorder %s37, 0
      %p267 = por %p265, %p266
      %p268 = scmp.ne.s32.totalorder %s260, %s262
      %p269 = scmp.eq.s32.totalorder %s42, 1
      %p270 = por %p268, %p269
      %p271 = scmp.ne.s32.totalorder %s262, %s263
      %p272 = scmp.eq.s32.totalorder %s42, 0
      %p273 = por %p271, %p272
      %p274 = scmp.ne.s32.totalorder %s262, %s263
      %p275 = scmp.eq.s32.totalorder %s43, 1
      %p276 = por %p274, %p275
      %p278 = scmp.ne.s32.totalorder %s263, %s277
      %p279 = scmp.eq.s32.totalorder %s43, 0
      %p280 = por %p278, %p279
      %s282 = sadd.s32 %s281, 1
      %p285 = scmp.eq.s32.totalorder %s37, 1
      %p286 = scmp.ne.s32.totalorder %s281, %s283
      %p287 = scmp.eq.s32.totalorder %s37, 0
      %p288 = por %p286, %p287
      %p289 = scmp.ne.s32.totalorder %s281, %s283
      %p290 = scmp.eq.s32.totalorder %s42, 1
      %p291 = por %p289, %p290
      %p292 = scmp.ne.s32.totalorder %s283, %s284
      %p293 = scmp.eq.s32.totalorder %s42, 0
      %p294 = por %p292, %p293
      %p295 = scmp.ne.s32.totalorder %s283, %s284
      %p296 = scmp.eq.s32.totalorder %s43, 1
      %p297 = por %p295, %p296
      %p299 = scmp.ne.s32.totalorder %s284, %s298
      %p300 = scmp.eq.s32.totalorder %s43, 0
      %p301 = por %p299, %p300
      %s302 = ssub.s32 %s37, %s44
      %p303 = scmp.eq.s32.totalorder %s302, 0
      %s305 = sadd.s32 %s304, 1
      %s306 = scalar_select %p303, %s304, %s305
      %p309 = pneg %p303
      %p310 = scmp.eq.s32.totalorder %s37, 1
      %p311 = por %p309, %p310
      %p312 = scmp.ne.s32.totalorder %s304, %s307
      %p313 = scmp.eq.s32.totalorder %s37, 0
      %p314 = por %p312, %p313
      %p315 = scmp.ne.s32.totalorder %s304, %s307
      %p316 = scmp.eq.s32.totalorder %s42, 1
      %p317 = por %p315, %p316
      %p318 = scmp.ne.s32.totalorder %s307, %s308
      %p319 = scmp.eq.s32.totalorder %s42, 0
      %p320 = por %p318, %p319
      %p321 = scmp.ne.s32.totalorder %s307, %s308
      %p322 = scmp.eq.s32.totalorder %s43, 1
      %p323 = por %p321, %p322
      %p325 = scmp.ne.s32.totalorder %s308, %s324
      %p326 = scmp.eq.s32.totalorder %s43, 0
      %p327 = por %p325, %p326
      %s328 = ssub.s32 %s37, %s44
      %p329 = scmp.eq.s32.totalorder %s328, 0
      %s331 = sadd.s32 %s330, 1
      %s332 = scalar_select %p329, %s330, %s331
      %p335 = pneg %p329
      %p336 = scmp.eq.s32.totalorder %s37, 1
      %p337 = por %p335, %p336
      %p338 = scmp.ne.s32.totalorder %s330, %s333
      %p339 = scmp.eq.s32.totalorder %s37, 0
      %p340 = por %p338, %p339
      %p341 = scmp.ne.s32.totalorder %s330, %s333
      %p342 = scmp.eq.s32.totalorder %s42, 1
      %p343 = por %p341, %p342
      %p344 = scmp.ne.s32.totalorder %s333, %s334
      %p345 = scmp.eq.s32.totalorder %s42, 0
      %p346 = por %p344, %p345
      %p347 = scmp.ne.s32.totalorder %s333, %s334
      %p348 = scmp.eq.s32.totalorder %s43, 1
      %p349 = por %p347, %p348
      %p351 = scmp.ne.s32.totalorder %s334, %s350
      %p352 = scmp.eq.s32.totalorder %s43, 0
      %p353 = por %p351, %p352
      %s354 = ssub.s32 %s37, %s44
      %p355 = scmp.eq.s32.totalorder %s354, 0
      %s357 = sadd.s32 %s356, 1
      %s358 = scalar_select %p355, %s356, %s357
      %p361 = pneg %p355
      %p362 = scmp.eq.s32.totalorder %s37, 1
      %p363 = por %p361, %p362
      %p364 = scmp.ne.s32.totalorder %s356, %s359
      %p365 = scmp.eq.s32.totalorder %s37, 0
      %p366 = por %p364, %p365
      %p367 = scmp.ne.s32.totalorder %s356, %s359
      %p368 = scmp.eq.s32.totalorder %s42, 1
      %p369 = por %p367, %p368
      %p370 = scmp.ne.s32.totalorder %s359, %s360
      %p371 = scmp.eq.s32.totalorder %s42, 0
      %p372 = por %p370, %p371
      %p373 = scmp.ne.s32.totalorder %s359, %s360
      %p374 = scmp.eq.s32.totalorder %s43, 1
      %p375 = por %p373, %p374
      %p377 = scmp.ne.s32.totalorder %s360, %s376
      %p378 = scmp.eq.s32.totalorder %s43, 0
      %p379 = por %p377, %p378
      %s380 = ssub.s32 %s37, %s44
      %p381 = scmp.eq.s32.totalorder %s380, 0
      %s383 = sadd.s32 %s382, 1
      %s384 = scalar_select %p381, %s382, %s383
      %p387 = pneg %p381
      %p388 = scmp.eq.s32.totalorder %s37, 1
      %p389 = por %p387, %p388
      %p390 = scmp.ne.s32.totalorder %s382, %s385
      %p391 = scmp.eq.s32.totalorder %s37, 0
      %p392 = por %p390, %p391
      %p393 = scmp.ne.s32.totalorder %s382, %s385
      %p394 = scmp.eq.s32.totalorder %s42, 1
      %p395 = por %p393, %p394
      %p396 = scmp.ne.s32.totalorder %s385, %s386
      %p397 = scmp.eq.s32.totalorder %s42, 0
      %p398 = por %p396, %p397
      %p399 = scmp.ne.s32.totalorder %s385, %s386
      %p400 = scmp.eq.s32.totalorder %s43, 1
      %p401 = por %p399, %p400
      %p403 = scmp.ne.s32.totalorder %s386, %s402
      %p404 = scmp.eq.s32.totalorder %s43, 0
      %p405 = por %p403, %p404
      %p406 = scmp.le.s32.totalorder 1, %s37
      %p407 = scmp.lt.s32.totalorder %s37, 3
      %p408 = pnand %p406, %p407
      %p409 = pneg %p408
      // Predicated region
      $region9: #{tpu_custom_call.1} parent=5 // pred_check
        _
      $region10: #{tpu_custom_call.1} parent=5 // pred_check_branch
        %411 = sbr.rel (%p408) target = $region12
      $region11: #{tpu_custom_call.1} parent=5 // pred_region
        %s412 = ssub.s32 %s37, 1
        // Predicated region
        $region13: #{tpu_custom_call.1} parent=11 // pred_check
          %p413 = pneg %p84
        $region14: #{tpu_custom_call.1} parent=11 // pred_check_branch
          %415 = sbr.rel (%p413) target = $region16
        $region15: #{tpu_custom_call.1} parent=11 // pred_region
          _
        $region16: #{tpu_custom_call.1} parent=11 // pred_fallthru
          _
        // Predicated region
        $region17: #{tpu_custom_call.1} parent=11 // pred_check
          %p416 = pneg %p105
        $region18: #{tpu_custom_call.1} parent=11 // pred_check_branch
          %418 = sbr.rel (%p416) target = $region20
        $region19: #{tpu_custom_call.1} parent=11 // pred_region
          _
        $region20: #{tpu_custom_call.1} parent=11 // pred_fallthru
          _
        // Predicated region
        $region21: #{tpu_custom_call.1} parent=11 // pred_check
          %p419 = pneg %p126
        $region22: #{tpu_custom_call.1} parent=11 // pred_check_branch
          %421 = sbr.rel (%p419) target = $region24
        $region23: #{tpu_custom_call.1} parent=11 // pred_region
          _
        $region24: #{tpu_custom_call.1} parent=11 // pred_fallthru
          _
        // Predicated region
        $region25: #{tpu_custom_call.1} parent=11 // pred_check
          %p422 = pneg %p147
        $region26: #{tpu_custom_call.1} parent=11 // pred_check_branch
          %424 = sbr.rel (%p422) target = $region28
        $region27: #{tpu_custom_call.1} parent=11 // pred_region
          %s426 = ssub.s32 1024, 1024
          %427 = vsyncadd [#allocation7], %s426
          %s428 = sshll.u32 [#allocation6], 4
          %s429 = int_to_ptr.vmem [resolvable:$true] %s428
          %434 = dma.hbm_to_vmem [thread:$0]  %s4, 1024, %s429, [#allocation7], 64, 64, 4
        $region28: #{tpu_custom_call.1} parent=11 // pred_fallthru
          _
        // Predicated region
        $region29: #{tpu_custom_call.1} parent=11 // pred_check
          %p435 = pneg %p168
        $region30: #{tpu_custom_call.1} parent=11 // pred_check_branch
          %437 = sbr.rel (%p435) target = $region32
        $region31: #{tpu_custom_call.1} parent=11 // pred_region
          _
        $region32: #{tpu_custom_call.1} parent=11 // pred_fallthru
          _
        // Predicated region
        $region33: #{tpu_custom_call.1} parent=11 // pred_check
          %p438 = pneg %p189
        $region34: #{tpu_custom_call.1} parent=11 // pred_check_branch
          %440 = sbr.rel (%p438) target = $region36
        $region35: #{tpu_custom_call.1} parent=11 // pred_region
          %s442 = ssub.s32 2048, 2048
          %443 = vsyncadd [#allocation7], %s442
          %s444 = sshll.u32 [#allocation8], 4
          %s445 = int_to_ptr.vmem [resolvable:$true] %s444
          %450 = dma.hbm_to_vmem [thread:$0]  %s6, 2048, %s445, [#allocation7], 128, 128, 8
        $region36: #{tpu_custom_call.1} parent=11 // pred_fallthru
          _
        // Predicated region
        $region37: #{tpu_custom_call.1} parent=11 // pred_check
          %p451 = pneg %p210
        $region38: #{tpu_custom_call.1} parent=11 // pred_check_branch
          %453 = sbr.rel (%p451) target = $region40
        $region39: #{tpu_custom_call.1} parent=11 // pred_region
          _
        $region40: #{tpu_custom_call.1} parent=11 // pred_fallthru
          _
        // Predicated region
        $region41: #{tpu_custom_call.1} parent=11 // pred_check
          %p454 = pneg %p231
        $region42: #{tpu_custom_call.1} parent=11 // pred_check_branch
          %456 = sbr.rel (%p454) target = $region44
        $region43: #{tpu_custom_call.1} parent=11 // pred_region
          %s458 = ssub.s32 1024, 1024
          %459 = vsyncadd [#allocation10], %s458
          %s460 = sshll.u32 [#allocation9], 4
          %s461 = int_to_ptr.vmem [resolvable:$true] %s460
          %466 = dma.hbm_to_vmem [thread:$0]  %s8, 1024, %s461, [#allocation10], 64, 64, 4
        $region44: #{tpu_custom_call.1} parent=11 // pred_fallthru
          _
        // Predicated region
        $region45: #{tpu_custom_call.1} parent=11 // pred_check
          %p467 = pneg %p252
        $region46: #{tpu_custom_call.1} parent=11 // pred_check_branch
          %469 = sbr.rel (%p467) target = $region48
        $region47: #{tpu_custom_call.1} parent=11 // pred_region
          _
        $region48: #{tpu_custom_call.1} parent=11 // pred_fallthru
          _
        // Predicated region
        $region49: #{tpu_custom_call.1} parent=11 // pred_check
          %p470 = pneg %p273
        $region50: #{tpu_custom_call.1} parent=11 // pred_check_branch
          %472 = sbr.rel (%p470) target = $region52
        $region51: #{tpu_custom_call.1} parent=11 // pred_region
          %s474 = ssub.s32 2048, 2048
          %475 = vsyncadd [#allocation10], %s474
          %s476 = sshll.u32 [#allocation11], 4
          %s477 = int_to_ptr.vmem [resolvable:$true] %s476
          %482 = dma.hbm_to_vmem [thread:$0]  %s10, 2048, %s477, [#allocation10], 128, 128, 8
        $region52: #{tpu_custom_call.1} parent=11 // pred_fallthru
          _
        // Predicated region
        $region53: #{tpu_custom_call.1} parent=11 // pred_check
          %p483 = pneg %p294
        $region54: #{tpu_custom_call.1} parent=11 // pred_check_branch
          %485 = sbr.rel (%p483) target = $region56
        $region55: #{tpu_custom_call.1} parent=11 // pred_region
          _
        $region56: #{tpu_custom_call.1} parent=11 // pred_fallthru
          _
      $region12: #{tpu_custom_call.1} parent=5 // pred_fallthru
        _
      %p486 = scmp.lt.s32.totalorder %s37, 2
      // Predicated region
      $region57: #{tpu_custom_call.1} parent=5 // pred_check
        %p487 = pneg %p486
      $region58: #{tpu_custom_call.1} parent=5 // pred_check_branch
        %489 = sbr.rel (%p487) target = $region60
      $region59: #{tpu_custom_call.1} parent=5 // pred_region
        // Predicated region
        $region61: #{tpu_custom_call.1} parent=59 // pred_check
          %p490 = pneg %p57
        $region62: #{tpu_custom_call.1} parent=59 // pred_check_branch
          %492 = sbr.rel (%p490) target = $region64
        $region63: #{tpu_custom_call.1} parent=59 // pred_region
          %s493 = sand.u32 %s47, 1
          %s494 = scalar_lea.sflag [#allocation4], %s493
          %s495 = sand.u32 %s47, 1
          %s496 = smul.addr %s495, 1024
          %s497 = scalar_lea.vmem [#allocation3], %s496
          %s498 = smul.u32 64, %s37
          %s500 = ssub.s32 16384, 16384
          %501 = vsyncadd %s494, %s500
          %s502 = smul.addr %s498, 2
          %s503 = smul.addr %s502, 128
          %s504 = scalar_lea.hbm %s0, %s503
          %s505 = sshll.u32 %s497, 4
          %s506 = int_to_ptr.vmem [resolvable:$true] %s505
          %511 = dma.hbm_to_vmem [thread:$0]  %s504, 16384, %s506, %s494, 256, 256, 16
        $region64: #{tpu_custom_call.1} parent=59 // pred_fallthru
          _
      $region60: #{tpu_custom_call.1} parent=5 // pred_fallthru
        _
      %p512 = scmp.le.s32.totalorder 1, %s37
      %p513 = scmp.lt.s32.totalorder %s37, 3
      %p514 = pnand %p512, %p513
      %p515 = pneg %p514
      // Predicated region
      $region65: #{tpu_custom_call.1} parent=5 // pred_check
        _
      $region66: #{tpu_custom_call.1} parent=5 // pred_check_branch
        %517 = sbr.rel (%p514) target = $region68
      $region67: #{tpu_custom_call.1} parent=5 // pred_region
        %s518 = ssub.s32 %s37, 1
        %s519 = sand.u32 %s50, 1
        %s520 = scalar_lea.sflag [#allocation4], %s519
        %s521 = sand.u32 %s50, 1
        %s522 = smul.addr %s521, 1024
        %s523 = scalar_lea.vmem [#allocation3], %s522
        // Predicated region
        $region69: #{tpu_custom_call.1} parent=67 // pred_check
          %p524 = pneg %p63
        $region70: #{tpu_custom_call.1} parent=67 // pred_check_branch
          %526 = sbr.rel (%p524) target = $region72
        $region71: #{tpu_custom_call.1} parent=67 // pred_region
          %527 = dma.done %s520, 16384
        $region72: #{tpu_custom_call.1} parent=67 // pred_fallthru
          _
        // Predicated region
        $region73: #{tpu_custom_call.1} parent=67 // pred_check
          %p528 = pneg %p147
        $region74: #{tpu_custom_call.1} parent=67 // pred_check_branch
          %530 = sbr.rel (%p528) target = $region76
        $region75: #{tpu_custom_call.1} parent=67 // pred_region
          %531 = dma.done [#allocation7], 1024
        $region76: #{tpu_custom_call.1} parent=67 // pred_fallthru
          _
        // Predicated region
        $region77: #{tpu_custom_call.1} parent=67 // pred_check
          %p532 = pneg %p189
        $region78: #{tpu_custom_call.1} parent=67 // pred_check_branch
          %534 = sbr.rel (%p532) target = $region80
        $region79: #{tpu_custom_call.1} parent=67 // pred_region
          %535 = dma.done [#allocation7], 2048
        $region80: #{tpu_custom_call.1} parent=67 // pred_fallthru
          _
        // Predicated region
        $region81: #{tpu_custom_call.1} parent=67 // pred_check
          %p536 = pneg %p231
        $region82: #{tpu_custom_call.1} parent=67 // pred_check_branch
          %538 = sbr.rel (%p536) target = $region84
        $region83: #{tpu_custom_call.1} parent=67 // pred_region
          %539 = dma.done [#allocation10], 1024
        $region84: #{tpu_custom_call.1} parent=67 // pred_fallthru
          _
        // Predicated region
        $region85: #{tpu_custom_call.1} parent=67 // pred_check
          %p540 = pneg %p273
        $region86: #{tpu_custom_call.1} parent=67 // pred_check_branch
          %542 = sbr.rel (%p540) target = $region88
        $region87: #{tpu_custom_call.1} parent=67 // pred_region
          %543 = dma.done [#allocation10], 2048
        $region88: #{tpu_custom_call.1} parent=67 // pred_fallthru
          _
        %s544 = sand.u32 %s50, 1
        %s545 = scalar_lea.sflag [#allocation4], %s544
        %s546 = sand.u32 %s50, 1
        %s547 = smul.addr %s546, 1024
        %s548 = scalar_lea.vmem [#allocation3], %s547
        %p549 = pneg %p63
        %p550 = pneg %p60
        %p551 = pneg %p84
        %p552 = pneg %p81
        %p553 = pneg %p105
        %p554 = pneg %p102
        %p555 = pneg %p126
        %p556 = pneg %p123
        %p557 = pneg %p147
        %p558 = pneg %p144
        %p559 = pneg %p168
        %p560 = pneg %p165
        %p561 = pneg %p189
        %p562 = pneg %p186
        %p563 = pneg %p210
        %p564 = pneg %p207
        %p565 = pneg %p231
        %p566 = pneg %p228
        %p567 = pneg %p252
        %p568 = pneg %p249
        %p569 = pneg %p273
        %p570 = pneg %p270
        %p571 = pneg %p294
        %p572 = pneg %p291
        %p573 = pneg %p320
        %p574 = pneg %p317
        %s575 = sand.u32 %s307, 1
        %s576 = scalar_lea.sflag [#allocation5], %s575
        %s577 = sand.u32 %s307, 1
        %s578 = smul.addr %s577, 1024
        %s579 = scalar_lea.vmem [#allocation12], %s578
        %p580 = pneg %p346
        %p581 = pneg %p343
        %s582 = sand.u32 %s42, 1
        %s583 = scalar_lea.sflag [#allocation14], %s582
        %s584 = sand.u32 %s333, 1
        %s585 = smul.addr %s584, 1024
        %s586 = scalar_lea.vmem [#allocation13], %s585
        %p587 = pneg %p372
        %p588 = pneg %p369
        %s589 = sand.u32 %s42, 1
        %s590 = scalar_lea.sflag [#allocation14], %s589
        %s591 = sand.u32 %s359, 1
        %s592 = smul.addr %s591, 1024
        %s593 = scalar_lea.vmem [#allocation15], %s592
        %p594 = pneg %p398
        %p595 = pneg %p395
        %s596 = sand.u32 %s385, 1
        %s597 = scalar_lea.sflag [#allocation17], %s596
        %s598 = sand.u32 %s385, 1
        %s599 = smul.addr %s598, 4
        %s600 = scalar_lea.vmem [#allocation16], %s599
        %s601 = smul.u32 64, %s42
        %s602 = smul.u32 64, %s42
        %s603 = smul.u32 64, %s42
        %s604 = smul.u32 64, %s42
        %v606 = vld [vmem:[%s523] sm:$0xff]
        %v607 = vld [vmem:[%s523 + $0x8] sm:$0xff]
        %v608 = vld [vmem:[%s523 + $0x10] sm:$0xff]
        %v609 = vld [vmem:[%s523 + $0x18] sm:$0xff]
        %v610 = vld [vmem:[%s523 + $0x20] sm:$0xff]
        %v611 = vld [vmem:[%s523 + $0x28] sm:$0xff]
        %v612 = vld [vmem:[%s523 + $0x30] sm:$0xff]
        %v613 = vld [vmem:[%s523 + $0x38] sm:$0xff]
        %v614 = vld [vmem:[%s523 + $0x40] sm:$0xff]
        %v615 = vld [vmem:[%s523 + $0x48] sm:$0xff]
        %v616 = vld [vmem:[%s523 + $0x50] sm:$0xff]
        %v617 = vld [vmem:[%s523 + $0x58] sm:$0xff]
        %v618 = vld [vmem:[%s523 + $0x60] sm:$0xff]
        %v619 = vld [vmem:[%s523 + $0x68] sm:$0xff]
        %v620 = vld [vmem:[%s523 + $0x70] sm:$0xff]
        %v621 = vld [vmem:[%s523 + $0x78] sm:$0xff]
        %v622 = vld [vmem:[%s523 + $0x80] sm:$0xff]
        %v623 = vld [vmem:[%s523 + $0x88] sm:$0xff]
        %v624 = vld [vmem:[%s523 + $0x90] sm:$0xff]
        %v625 = vld [vmem:[%s523 + $0x98] sm:$0xff]
        %v626 = vld [vmem:[%s523 + $0xa0] sm:$0xff]
        %v627 = vld [vmem:[%s523 + $0xa8] sm:$0xff]
        %v628 = vld [vmem:[%s523 + $0xb0] sm:$0xff]
        %v629 = vld [vmem:[%s523 + $0xb8] sm:$0xff]
        %v630 = vld [vmem:[%s523 + $0xc0] sm:$0xff]
        %v631 = vld [vmem:[%s523 + $0xc8] sm:$0xff]
        %v632 = vld [vmem:[%s523 + $0xd0] sm:$0xff]
        %v633 = vld [vmem:[%s523 + $0xd8] sm:$0xff]
        %v634 = vld [vmem:[%s523 + $0xe0] sm:$0xff]
        %v635 = vld [vmem:[%s523 + $0xe8] sm:$0xff]
        %v636 = vld [vmem:[%s523 + $0xf0] sm:$0xff]
        %v637 = vld [vmem:[%s523 + $0xf8] sm:$0xff]
        %v638 = vld [vmem:[%s523 + $0x100] sm:$0xff]
        %v639 = vld [vmem:[%s523 + $0x108] sm:$0xff]
        %v640 = vld [vmem:[%s523 + $0x110] sm:$0xff]
        %v641 = vld [vmem:[%s523 + $0x118] sm:$0xff]
        %v642 = vld [vmem:[%s523 + $0x120] sm:$0xff]
        %v643 = vld [vmem:[%s523 + $0x128] sm:$0xff]
        %v644 = vld [vmem:[%s523 + $0x130] sm:$0xff]
        %v645 = vld [vmem:[%s523 + $0x138] sm:$0xff]
        %v646 = vld [vmem:[%s523 + $0x140] sm:$0xff]
        %v647 = vld [vmem:[%s523 + $0x148] sm:$0xff]
        %v648 = vld [vmem:[%s523 + $0x150] sm:$0xff]
        %v649 = vld [vmem:[%s523 + $0x158] sm:$0xff]
        %v650 = vld [vmem:[%s523 + $0x160] sm:$0xff]
        %v651 = vld [vmem:[%s523 + $0x168] sm:$0xff]
        %v652 = vld [vmem:[%s523 + $0x170] sm:$0xff]
        %v653 = vld [vmem:[%s523 + $0x178] sm:$0xff]
        %v654 = vld [vmem:[%s523 + $0x180] sm:$0xff]
        %v655 = vld [vmem:[%s523 + $0x188] sm:$0xff]
        %v656 = vld [vmem:[%s523 + $0x190] sm:$0xff]
        %v657 = vld [vmem:[%s523 + $0x198] sm:$0xff]
        %v658 = vld [vmem:[%s523 + $0x1a0] sm:$0xff]
        %v659 = vld [vmem:[%s523 + $0x1a8] sm:$0xff]
        %v660 = vld [vmem:[%s523 + $0x1b0] sm:$0xff]
        %v661 = vld [vmem:[%s523 + $0x1b8] sm:$0xff]
        %v662 = vld [vmem:[%s523 + $0x1c0] sm:$0xff]
        %v663 = vld [vmem:[%s523 + $0x1c8] sm:$0xff]
        %v664 = vld [vmem:[%s523 + $0x1d0] sm:$0xff]
        %v665 = vld [vmem:[%s523 + $0x1d8] sm:$0xff]
        %v666 = vld [vmem:[%s523 + $0x1e0] sm:$0xff]
        %v667 = vld [vmem:[%s523 + $0x1e8] sm:$0xff]
        %v668 = vld [vmem:[%s523 + $0x1f0] sm:$0xff]
        %v669 = vld [vmem:[%s523 + $0x1f8] sm:$0xff]
        %v670 = vld [vmem:[%s523 + $0x200] sm:$0xff]
        %v671 = vld [vmem:[%s523 + $0x208] sm:$0xff]
        %v672 = vld [vmem:[%s523 + $0x210] sm:$0xff]
        %v673 = vld [vmem:[%s523 + $0x218] sm:$0xff]
        %v674 = vld [vmem:[%s523 + $0x220] sm:$0xff]
        %v675 = vld [vmem:[%s523 + $0x228] sm:$0xff]
        %v676 = vld [vmem:[%s523 + $0x230] sm:$0xff]
        %v677 = vld [vmem:[%s523 + $0x238] sm:$0xff]
        %v678 = vld [vmem:[%s523 + $0x240] sm:$0xff]
        %v679 = vld [vmem:[%s523 + $0x248] sm:$0xff]
        %v680 = vld [vmem:[%s523 + $0x250] sm:$0xff]
        %v681 = vld [vmem:[%s523 + $0x258] sm:$0xff]
        %v682 = vld [vmem:[%s523 + $0x260] sm:$0xff]
        %v683 = vld [vmem:[%s523 + $0x268] sm:$0xff]
        %v684 = vld [vmem:[%s523 + $0x270] sm:$0xff]
        %v685 = vld [vmem:[%s523 + $0x278] sm:$0xff]
        %v686 = vld [vmem:[%s523 + $0x280] sm:$0xff]
        %v687 = vld [vmem:[%s523 + $0x288] sm:$0xff]
        %v688 = vld [vmem:[%s523 + $0x290] sm:$0xff]
        %v689 = vld [vmem:[%s523 + $0x298] sm:$0xff]
        %v690 = vld [vmem:[%s523 + $0x2a0] sm:$0xff]
        %v691 = vld [vmem:[%s523 + $0x2a8] sm:$0xff]
        %v692 = vld [vmem:[%s523 + $0x2b0] sm:$0xff]
        %v693 = vld [vmem:[%s523 + $0x2b8] sm:$0xff]
        %v694 = vld [vmem:[%s523 + $0x2c0] sm:$0xff]
        %v695 = vld [vmem:[%s523 + $0x2c8] sm:$0xff]
        %v696 = vld [vmem:[%s523 + $0x2d0] sm:$0xff]
        %v697 = vld [vmem:[%s523 + $0x2d8] sm:$0xff]
        %v698 = vld [vmem:[%s523 + $0x2e0] sm:$0xff]
        %v699 = vld [vmem:[%s523 + $0x2e8] sm:$0xff]
        %v700 = vld [vmem:[%s523 + $0x2f0] sm:$0xff]
        %v701 = vld [vmem:[%s523 + $0x2f8] sm:$0xff]
        %v702 = vld [vmem:[%s523 + $0x300] sm:$0xff]
        %v703 = vld [vmem:[%s523 + $0x308] sm:$0xff]
        %v704 = vld [vmem:[%s523 + $0x310] sm:$0xff]
        %v705 = vld [vmem:[%s523 + $0x318] sm:$0xff]
        %v706 = vld [vmem:[%s523 + $0x320] sm:$0xff]
        %v707 = vld [vmem:[%s523 + $0x328] sm:$0xff]
        %v708 = vld [vmem:[%s523 + $0x330] sm:$0xff]
        %v709 = vld [vmem:[%s523 + $0x338] sm:$0xff]
        %v710 = vld [vmem:[%s523 + $0x340] sm:$0xff]
        %v711 = vld [vmem:[%s523 + $0x348] sm:$0xff]
        %v712 = vld [vmem:[%s523 + $0x350] sm:$0xff]
        %v713 = vld [vmem:[%s523 + $0x358] sm:$0xff]
        %v714 = vld [vmem:[%s523 + $0x360] sm:$0xff]
        %v715 = vld [vmem:[%s523 + $0x368] sm:$0xff]
        %v716 = vld [vmem:[%s523 + $0x370] sm:$0xff]
        %v717 = vld [vmem:[%s523 + $0x378] sm:$0xff]
        %v718 = vld [vmem:[%s523 + $0x380] sm:$0xff]
        %v719 = vld [vmem:[%s523 + $0x388] sm:$0xff]
        %v720 = vld [vmem:[%s523 + $0x390] sm:$0xff]
        %v721 = vld [vmem:[%s523 + $0x398] sm:$0xff]
        %v722 = vld [vmem:[%s523 + $0x3a0] sm:$0xff]
        %v723 = vld [vmem:[%s523 + $0x3a8] sm:$0xff]
        %v724 = vld [vmem:[%s523 + $0x3b0] sm:$0xff]
        %v725 = vld [vmem:[%s523 + $0x3b8] sm:$0xff]
        %v726 = vld [vmem:[%s523 + $0x3c0] sm:$0xff]
        %v727 = vld [vmem:[%s523 + $0x3c8] sm:$0xff]
        %v728 = vld [vmem:[%s523 + $0x3d0] sm:$0xff]
        %v729 = vld [vmem:[%s523 + $0x3d8] sm:$0xff]
        %v730 = vld [vmem:[%s523 + $0x3e0] sm:$0xff]
        %v731 = vld [vmem:[%s523 + $0x3e8] sm:$0xff]
        %v732 = vld [vmem:[%s523 + $0x3f0] sm:$0xff]
        %v733 = vld [vmem:[%s523 + $0x3f8] sm:$0xff]
        %v734 = vld [vmem:[%s1] sm:$0x3]
        %v736 = vlaneseq
        %v737 = vshrl.u32 %v736, 7
        %v738 = vsub.s32 0, %v737
        %v739 = vrot.slane %v734, %v738
        %v740 = vlaneseq
        %v741 = vshrl.u32 %v740, 7
        %v742 = vsub.s32 1, %v741
        %v743 = vrot.slane %v734, %v742
        %v746 = vmul.f32 %v606, %v739
        %v747 = vmul.f32 %v607, %v743
        %v748 = vmul.f32 %v608, %v739
        %v749 = vmul.f32 %v609, %v743
        %v750 = vmul.f32 %v610, %v739
        %v751 = vmul.f32 %v611, %v743
        %v752 = vmul.f32 %v612, %v739
        %v753 = vmul.f32 %v613, %v743
        %v754 = vmul.f32 %v614, %v739
        %v755 = vmul.f32 %v615, %v743
        %v756 = vmul.f32 %v616, %v739
        %v757 = vmul.f32 %v617, %v743
        %v758 = vmul.f32 %v618, %v739
        %v759 = vmul.f32 %v619, %v743
        %v760 = vmul.f32 %v620, %v739
        %v761 = vmul.f32 %v621, %v743
        %v762 = vmul.f32 %v622, %v739
        %v763 = vmul.f32 %v623, %v743
        %v764 = vmul.f32 %v624, %v739
        %v765 = vmul.f32 %v625, %v743
        %v766 = vmul.f32 %v626, %v739
        %v767 = vmul.f32 %v627, %v743
        %v768 = vmul.f32 %v628, %v739
        %v769 = vmul.f32 %v629, %v743
        %v770 = vmul.f32 %v630, %v739
        %v771 = vmul.f32 %v631, %v743
        %v772 = vmul.f32 %v632, %v739
        %v773 = vmul.f32 %v633, %v743
        %v774 = vmul.f32 %v634, %v739
        %v775 = vmul.f32 %v635, %v743
        %v776 = vmul.f32 %v636, %v739
        %v777 = vmul.f32 %v637, %v743
        %v778 = vmul.f32 %v638, %v739
        %v779 = vmul.f32 %v639, %v743
        %v780 = vmul.f32 %v640, %v739
        %v781 = vmul.f32 %v641, %v743
        %v782 = vmul.f32 %v642, %v739
        %v783 = vmul.f32 %v643, %v743
        %v784 = vmul.f32 %v644, %v739
        %v785 = vmul.f32 %v645, %v743
        %v786 = vmul.f32 %v646, %v739
        %v787 = vmul.f32 %v647, %v743
        %v788 = vmul.f32 %v648, %v739
        %v789 = vmul.f32 %v649, %v743
        %v790 = vmul.f32 %v650, %v739
        %v791 = vmul.f32 %v651, %v743
        %v792 = vmul.f32 %v652, %v739
        %v793 = vmul.f32 %v653, %v743
        %v794 = vmul.f32 %v654, %v739
        %v795 = vmul.f32 %v655, %v743
        %v796 = vmul.f32 %v656, %v739
        %v797 = vmul.f32 %v657, %v743
        %v798 = vmul.f32 %v658, %v739
        %v799 = vmul.f32 %v659, %v743
        %v800 = vmul.f32 %v660, %v739
        %v801 = vmul.f32 %v661, %v743
        %v802 = vmul.f32 %v662, %v739
        %v803 = vmul.f32 %v663, %v743
        %v804 = vmul.f32 %v664, %v739
        %v805 = vmul.f32 %v665, %v743
        %v806 = vmul.f32 %v666, %v739
        %v807 = vmul.f32 %v667, %v743
        %v808 = vmul.f32 %v668, %v739
        %v809 = vmul.f32 %v669, %v743
        %v810 = vmul.f32 %v670, %v739
        %v811 = vmul.f32 %v671, %v743
        %v812 = vmul.f32 %v672, %v739
        %v813 = vmul.f32 %v673, %v743
        %v814 = vmul.f32 %v674, %v739
        %v815 = vmul.f32 %v675, %v743
        %v816 = vmul.f32 %v676, %v739
        %v817 = vmul.f32 %v677, %v743
        %v818 = vmul.f32 %v678, %v739
        %v819 = vmul.f32 %v679, %v743
        %v820 = vmul.f32 %v680, %v739
        %v821 = vmul.f32 %v681, %v743
        %v822 = vmul.f32 %v682, %v739
        %v823 = vmul.f32 %v683, %v743
        %v824 = vmul.f32 %v684, %v739
        %v825 = vmul.f32 %v685, %v743
        %v826 = vmul.f32 %v686, %v739
        %v827 = vmul.f32 %v687, %v743
        %v828 = vmul.f32 %v688, %v739
        %v829 = vmul.f32 %v689, %v743
        %v830 = vmul.f32 %v690, %v739
        %v831 = vmul.f32 %v691, %v743
        %v832 = vmul.f32 %v692, %v739
        %v833 = vmul.f32 %v693, %v743
        %v834 = vmul.f32 %v694, %v739
        %v835 = vmul.f32 %v695, %v743
        %v836 = vmul.f32 %v696, %v739
        %v837 = vmul.f32 %v697, %v743
        %v838 = vmul.f32 %v698, %v739
        %v839 = vmul.f32 %v699, %v743
        %v840 = vmul.f32 %v700, %v739
        %v841 = vmul.f32 %v701, %v743
        %v842 = vmul.f32 %v702, %v739
        %v843 = vmul.f32 %v703, %v743
        %v844 = vmul.f32 %v704, %v739
        %v845 = vmul.f32 %v705, %v743
        %v846 = vmul.f32 %v706, %v739
        %v847 = vmul.f32 %v707, %v743
        %v848 = vmul.f32 %v708, %v739
        %v849 = vmul.f32 %v709, %v743
        %v850 = vmul.f32 %v710, %v739
        %v851 = vmul.f32 %v711, %v743
        %v852 = vmul.f32 %v712, %v739
        %v853 = vmul.f32 %v713, %v743
        %v854 = vmul.f32 %v714, %v739
        %v855 = vmul.f32 %v715, %v743
        %v856 = vmul.f32 %v716, %v739
        %v857 = vmul.f32 %v717, %v743
        %v858 = vmul.f32 %v718, %v739
        %v859 = vmul.f32 %v719, %v743
        %v860 = vmul.f32 %v720, %v739
        %v861 = vmul.f32 %v721, %v743
        %v862 = vmul.f32 %v722, %v739
        %v863 = vmul.f32 %v723, %v743
        %v864 = vmul.f32 %v724, %v739
        %v865 = vmul.f32 %v725, %v743
        %v866 = vmul.f32 %v726, %v739
        %v867 = vmul.f32 %v727, %v743
        %v868 = vmul.f32 %v728, %v739
        %v869 = vmul.f32 %v729, %v743
        %v870 = vmul.f32 %v730, %v739
        %v871 = vmul.f32 %v731, %v743
        %v872 = vmul.f32 %v732, %v739
        %v873 = vmul.f32 %v733, %v743
        %v874 = vld [vmem:[%s2] sm:$0x3]
        %v876 = vlaneseq
        %v877 = vshrl.u32 %v876, 7
        %v878 = vsub.s32 0, %v877
        %v879 = vrot.slane %v874, %v878
        %v880 = vlaneseq
        %v881 = vshrl.u32 %v880, 7
        %v882 = vsub.s32 1, %v881
        %v883 = vrot.slane %v874, %v882
        %v886 = vadd.f32 %v746, %v879
        %v887 = vadd.f32 %v747, %v883
        %v888 = vadd.f32 %v748, %v879
        %v889 = vadd.f32 %v749, %v883
        %v890 = vadd.f32 %v750, %v879
        %v891 = vadd.f32 %v751, %v883
        %v892 = vadd.f32 %v752, %v879
        %v893 = vadd.f32 %v753, %v883
        %v894 = vadd.f32 %v754, %v879
        %v895 = vadd.f32 %v755, %v883
        %v896 = vadd.f32 %v756, %v879
        %v897 = vadd.f32 %v757, %v883
        %v898 = vadd.f32 %v758, %v879
        %v899 = vadd.f32 %v759, %v883
        %v900 = vadd.f32 %v760, %v879
        %v901 = vadd.f32 %v761, %v883
        %v902 = vadd.f32 %v762, %v879
        %v903 = vadd.f32 %v763, %v883
        %v904 = vadd.f32 %v764, %v879
        %v905 = vadd.f32 %v765, %v883
        %v906 = vadd.f32 %v766, %v879
        %v907 = vadd.f32 %v767, %v883
        %v908 = vadd.f32 %v768, %v879
        %v909 = vadd.f32 %v769, %v883
        %v910 = vadd.f32 %v770, %v879
        %v911 = vadd.f32 %v771, %v883
        %v912 = vadd.f32 %v772, %v879
        %v913 = vadd.f32 %v773, %v883
        %v914 = vadd.f32 %v774, %v879
        %v915 = vadd.f32 %v775, %v883
        %v916 = vadd.f32 %v776, %v879
        %v917 = vadd.f32 %v777, %v883
        %v918 = vadd.f32 %v778, %v879
        %v919 = vadd.f32 %v779, %v883
        %v920 = vadd.f32 %v780, %v879
        %v921 = vadd.f32 %v781, %v883
        %v922 = vadd.f32 %v782, %v879
        %v923 = vadd.f32 %v783, %v883
        %v924 = vadd.f32 %v784, %v879
        %v925 = vadd.f32 %v785, %v883
        %v926 = vadd.f32 %v786, %v879
        %v927 = vadd.f32 %v787, %v883
        %v928 = vadd.f32 %v788, %v879
        %v929 = vadd.f32 %v789, %v883
        %v930 = vadd.f32 %v790, %v879
        %v931 = vadd.f32 %v791, %v883
        %v932 = vadd.f32 %v792, %v879
        %v933 = vadd.f32 %v793, %v883
        %v934 = vadd.f32 %v794, %v879
        %v935 = vadd.f32 %v795, %v883
        %v936 = vadd.f32 %v796, %v879
        %v937 = vadd.f32 %v797, %v883
        %v938 = vadd.f32 %v798, %v879
        %v939 = vadd.f32 %v799, %v883
        %v940 = vadd.f32 %v800, %v879
        %v941 = vadd.f32 %v801, %v883
        %v942 = vadd.f32 %v802, %v879
        %v943 = vadd.f32 %v803, %v883
        %v944 = vadd.f32 %v804, %v879
        %v945 = vadd.f32 %v805, %v883
        %v946 = vadd.f32 %v806, %v879
        %v947 = vadd.f32 %v807, %v883
        %v948 = vadd.f32 %v808, %v879
        %v949 = vadd.f32 %v809, %v883
        %v950 = vadd.f32 %v810, %v879
        %v951 = vadd.f32 %v811, %v883
        %v952 = vadd.f32 %v812, %v879
        %v953 = vadd.f32 %v813, %v883
        %v954 = vadd.f32 %v814, %v879
        %v955 = vadd.f32 %v815, %v883
        %v956 = vadd.f32 %v816, %v879
        %v957 = vadd.f32 %v817, %v883
        %v958 = vadd.f32 %v818, %v879
        %v959 = vadd.f32 %v819, %v883
        %v960 = vadd.f32 %v820, %v879
        %v961 = vadd.f32 %v821, %v883
        %v962 = vadd.f32 %v822, %v879
        %v963 = vadd.f32 %v823, %v883
        %v964 = vadd.f32 %v824, %v879
        %v965 = vadd.f32 %v825, %v883
        %v966 = vadd.f32 %v826, %v879
        %v967 = vadd.f32 %v827, %v883
        %v968 = vadd.f32 %v828, %v879
        %v969 = vadd.f32 %v829, %v883
        %v970 = vadd.f32 %v830, %v879
        %v971 = vadd.f32 %v831, %v883
        %v972 = vadd.f32 %v832, %v879
        %v973 = vadd.f32 %v833, %v883
        %v974 = vadd.f32 %v834, %v879
        %v975 = vadd.f32 %v835, %v883
        %v976 = vadd.f32 %v836, %v879
        %v977 = vadd.f32 %v837, %v883
        %v978 = vadd.f32 %v838, %v879
        %v979 = vadd.f32 %v839, %v883
        %v980 = vadd.f32 %v840, %v879
        %v981 = vadd.f32 %v841, %v883
        %v982 = vadd.f32 %v842, %v879
        %v983 = vadd.f32 %v843, %v883
        %v984 = vadd.f32 %v844, %v879
        %v985 = vadd.f32 %v845, %v883
        %v986 = vadd.f32 %v846, %v879
        %v987 = vadd.f32 %v847, %v883
        %v988 = vadd.f32 %v848, %v879
        %v989 = vadd.f32 %v849, %v883
        %v990 = vadd.f32 %v850, %v879
        %v991 = vadd.f32 %v851, %v883
        %v992 = vadd.f32 %v852, %v879
        %v993 = vadd.f32 %v853, %v883
        %v994 = vadd.f32 %v854, %v879
        %v995 = vadd.f32 %v855, %v883
        %v996 = vadd.f32 %v856, %v879
        %v997 = vadd.f32 %v857, %v883
        %v998 = vadd.f32 %v858, %v879
        %v999 = vadd.f32 %v859, %v883
        %v1000 = vadd.f32 %v860, %v879
        %v1001 = vadd.f32 %v861, %v883
        %v1002 = vadd.f32 %v862, %v879
        %v1003 = vadd.f32 %v863, %v883
        %v1004 = vadd.f32 %v864, %v879
        %v1005 = vadd.f32 %v865, %v883
        %v1006 = vadd.f32 %v866, %v879
        %v1007 = vadd.f32 %v867, %v883
        %v1008 = vadd.f32 %v868, %v879
        %v1009 = vadd.f32 %v869, %v883
        %v1010 = vadd.f32 %v870, %v879
        %v1011 = vadd.f32 %v871, %v883
        %v1012 = vadd.f32 %v872, %v879
        %v1013 = vadd.f32 %v873, %v883
        %1014 = vst [vmem:[%s579] sm:$0xff] %v886
        %1015 = vst [vmem:[%s579 + $0x8] sm:$0xff] %v887
        %1016 = vst [vmem:[%s579 + $0x10] sm:$0xff] %v888
        %1017 = vst [vmem:[%s579 + $0x18] sm:$0xff] %v889
        %1018 = vst [vmem:[%s579 + $0x20] sm:$0xff] %v890
        %1019 = vst [vmem:[%s579 + $0x28] sm:$0xff] %v891
        %1020 = vst [vmem:[%s579 + $0x30] sm:$0xff] %v892
        %1021 = vst [vmem:[%s579 + $0x38] sm:$0xff] %v893
        %1022 = vst [vmem:[%s579 + $0x40] sm:$0xff] %v894
        %1023 = vst [vmem:[%s579 + $0x48] sm:$0xff] %v895
        %1024 = vst [vmem:[%s579 + $0x50] sm:$0xff] %v896
        %1025 = vst [vmem:[%s579 + $0x58] sm:$0xff] %v897
        %1026 = vst [vmem:[%s579 + $0x60] sm:$0xff] %v898
        %1027 = vst [vmem:[%s579 + $0x68] sm:$0xff] %v899
        %1028 = vst [vmem:[%s579 + $0x70] sm:$0xff] %v900
        %1029 = vst [vmem:[%s579 + $0x78] sm:$0xff] %v901
        %1030 = vst [vmem:[%s579 + $0x80] sm:$0xff] %v902
        %1031 = vst [vmem:[%s579 + $0x88] sm:$0xff] %v903
        %1032 = vst [vmem:[%s579 + $0x90] sm:$0xff] %v904
        %1033 = vst [vmem:[%s579 + $0x98] sm:$0xff] %v905
        %1034 = vst [vmem:[%s579 + $0xa0] sm:$0xff] %v906
        %1035 = vst [vmem:[%s579 + $0xa8] sm:$0xff] %v907
        %1036 = vst [vmem:[%s579 + $0xb0] sm:$0xff] %v908
        %1037 = vst [vmem:[%s579 + $0xb8] sm:$0xff] %v909
        %1038 = vst [vmem:[%s579 + $0xc0] sm:$0xff] %v910
        %1039 = vst [vmem:[%s579 + $0xc8] sm:$0xff] %v911
        %1040 = vst [vmem:[%s579 + $0xd0] sm:$0xff] %v912
        %1041 = vst [vmem:[%s579 + $0xd8] sm:$0xff] %v913
        %1042 = vst [vmem:[%s579 + $0xe0] sm:$0xff] %v914
        %1043 = vst [vmem:[%s579 + $0xe8] sm:$0xff] %v915
        %1044 = vst [vmem:[%s579 + $0xf0] sm:$0xff] %v916
        %1045 = vst [vmem:[%s579 + $0xf8] sm:$0xff] %v917
        %1046 = vst [vmem:[%s579 + $0x100] sm:$0xff] %v918
        %1047 = vst [vmem:[%s579 + $0x108] sm:$0xff] %v919
        %1048 = vst [vmem:[%s579 + $0x110] sm:$0xff] %v920
        %1049 = vst [vmem:[%s579 + $0x118] sm:$0xff] %v921
        %1050 = vst [vmem:[%s579 + $0x120] sm:$0xff] %v922
        %1051 = vst [vmem:[%s579 + $0x128] sm:$0xff] %v923
        %1052 = vst [vmem:[%s579 + $0x130] sm:$0xff] %v924
        %1053 = vst [vmem:[%s579 + $0x138] sm:$0xff] %v925
        %1054 = vst [vmem:[%s579 + $0x140] sm:$0xff] %v926
        %1055 = vst [vmem:[%s579 + $0x148] sm:$0xff] %v927
        %1056 = vst [vmem:[%s579 + $0x150] sm:$0xff] %v928
        %1057 = vst [vmem:[%s579 + $0x158] sm:$0xff] %v929
        %1058 = vst [vmem:[%s579 + $0x160] sm:$0xff] %v930
        %1059 = vst [vmem:[%s579 + $0x168] sm:$0xff] %v931
        %1060 = vst [vmem:[%s579 + $0x170] sm:$0xff] %v932
        %1061 = vst [vmem:[%s579 + $0x178] sm:$0xff] %v933
        %1062 = vst [vmem:[%s579 + $0x180] sm:$0xff] %v934
        %1063 = vst [vmem:[%s579 + $0x188] sm:$0xff] %v935
        %1064 = vst [vmem:[%s579 + $0x190] sm:$0xff] %v936
        %1065 = vst [vmem:[%s579 + $0x198] sm:$0xff] %v937
        %1066 = vst [vmem:[%s579 + $0x1a0] sm:$0xff] %v938
        %1067 = vst [vmem:[%s579 + $0x1a8] sm:$0xff] %v939
        %1068 = vst [vmem:[%s579 + $0x1b0] sm:$0xff] %v940
        %1069 = vst [vmem:[%s579 + $0x1b8] sm:$0xff] %v941
        %1070 = vst [vmem:[%s579 + $0x1c0] sm:$0xff] %v942
        %1071 = vst [vmem:[%s579 + $0x1c8] sm:$0xff] %v943
        %1072 = vst [vmem:[%s579 + $0x1d0] sm:$0xff] %v944
        %1073 = vst [vmem:[%s579 + $0x1d8] sm:$0xff] %v945
        %1074 = vst [vmem:[%s579 + $0x1e0] sm:$0xff] %v946
        %1075 = vst [vmem:[%s579 + $0x1e8] sm:$0xff] %v947
        %1076 = vst [vmem:[%s579 + $0x1f0] sm:$0xff] %v948
        %1077 = vst [vmem:[%s579 + $0x1f8] sm:$0xff] %v949
        %1078 = vst [vmem:[%s579 + $0x200] sm:$0xff] %v950
        %1079 = vst [vmem:[%s579 + $0x208] sm:$0xff] %v951
        %1080 = vst [vmem:[%s579 + $0x210] sm:$0xff] %v952
        %1081 = vst [vmem:[%s579 + $0x218] sm:$0xff] %v953
        %1082 = vst [vmem:[%s579 + $0x220] sm:$0xff] %v954
        %1083 = vst [vmem:[%s579 + $0x228] sm:$0xff] %v955
        %1084 = vst [vmem:[%s579 + $0x230] sm:$0xff] %v956
        %1085 = vst [vmem:[%s579 + $0x238] sm:$0xff] %v957
        %1086 = vst [vmem:[%s579 + $0x240] sm:$0xff] %v958
        %1087 = vst [vmem:[%s579 + $0x248] sm:$0xff] %v959
        %1088 = vst [vmem:[%s579 + $0x250] sm:$0xff] %v960
        %1089 = vst [vmem:[%s579 + $0x258] sm:$0xff] %v961
        %1090 = vst [vmem:[%s579 + $0x260] sm:$0xff] %v962
        %1091 = vst [vmem:[%s579 + $0x268] sm:$0xff] %v963
        %1092 = vst [vmem:[%s579 + $0x270] sm:$0xff] %v964
        %1093 = vst [vmem:[%s579 + $0x278] sm:$0xff] %v965
        %1094 = vst [vmem:[%s579 + $0x280] sm:$0xff] %v966
        %1095 = vst [vmem:[%s579 + $0x288] sm:$0xff] %v967
        %1096 = vst [vmem:[%s579 + $0x290] sm:$0xff] %v968
        %1097 = vst [vmem:[%s579 + $0x298] sm:$0xff] %v969
        %1098 = vst [vmem:[%s579 + $0x2a0] sm:$0xff] %v970
        %1099 = vst [vmem:[%s579 + $0x2a8] sm:$0xff] %v971
        %1100 = vst [vmem:[%s579 + $0x2b0] sm:$0xff] %v972
        %1101 = vst [vmem:[%s579 + $0x2b8] sm:$0xff] %v973
        %1102 = vst [vmem:[%s579 + $0x2c0] sm:$0xff] %v974
        %1103 = vst [vmem:[%s579 + $0x2c8] sm:$0xff] %v975
        %1104 = vst [vmem:[%s579 + $0x2d0] sm:$0xff] %v976
        %1105 = vst [vmem:[%s579 + $0x2d8] sm:$0xff] %v977
        %1106 = vst [vmem:[%s579 + $0x2e0] sm:$0xff] %v978
        %1107 = vst [vmem:[%s579 + $0x2e8] sm:$0xff] %v979
        %1108 = vst [vmem:[%s579 + $0x2f0] sm:$0xff] %v980
        %1109 = vst [vmem:[%s579 + $0x2f8] sm:$0xff] %v981
        %1110 = vst [vmem:[%s579 + $0x300] sm:$0xff] %v982
        %1111 = vst [vmem:[%s579 + $0x308] sm:$0xff] %v983
        %1112 = vst [vmem:[%s579 + $0x310] sm:$0xff] %v984
        %1113 = vst [vmem:[%s579 + $0x318] sm:$0xff] %v985
        %1114 = vst [vmem:[%s579 + $0x320] sm:$0xff] %v986
        %1115 = vst [vmem:[%s579 + $0x328] sm:$0xff] %v987
        %1116 = vst [vmem:[%s579 + $0x330] sm:$0xff] %v988
        %1117 = vst [vmem:[%s579 + $0x338] sm:$0xff] %v989
        %1118 = vst [vmem:[%s579 + $0x340] sm:$0xff] %v990
        %1119 = vst [vmem:[%s579 + $0x348] sm:$0xff] %v991
        %1120 = vst [vmem:[%s579 + $0x350] sm:$0xff] %v992
        %1121 = vst [vmem:[%s579 + $0x358] sm:$0xff] %v993
        %1122 = vst [vmem:[%s579 + $0x360] sm:$0xff] %v994
        %1123 = vst [vmem:[%s579 + $0x368] sm:$0xff] %v995
        %1124 = vst [vmem:[%s579 + $0x370] sm:$0xff] %v996
        %1125 = vst [vmem:[%s579 + $0x378] sm:$0xff] %v997
        %1126 = vst [vmem:[%s579 + $0x380] sm:$0xff] %v998
        %1127 = vst [vmem:[%s579 + $0x388] sm:$0xff] %v999
        %1128 = vst [vmem:[%s579 + $0x390] sm:$0xff] %v1000
        %1129 = vst [vmem:[%s579 + $0x398] sm:$0xff] %v1001
        %1130 = vst [vmem:[%s579 + $0x3a0] sm:$0xff] %v1002
        %1131 = vst [vmem:[%s579 + $0x3a8] sm:$0xff] %v1003
        %1132 = vst [vmem:[%s579 + $0x3b0] sm:$0xff] %v1004
        %1133 = vst [vmem:[%s579 + $0x3b8] sm:$0xff] %v1005
        %1134 = vst [vmem:[%s579 + $0x3c0] sm:$0xff] %v1006
        %1135 = vst [vmem:[%s579 + $0x3c8] sm:$0xff] %v1007
        %1136 = vst [vmem:[%s579 + $0x3d0] sm:$0xff] %v1008
        %1137 = vst [vmem:[%s579 + $0x3d8] sm:$0xff] %v1009
        %1138 = vst [vmem:[%s579 + $0x3e0] sm:$0xff] %v1010
        %1139 = vst [vmem:[%s579 + $0x3e8] sm:$0xff] %v1011
        %1140 = vst [vmem:[%s579 + $0x3f0] sm:$0xff] %v1012
        %1141 = vst [vmem:[%s579 + $0x3f8] sm:$0xff] %v1013
        %v1142 = vpack.c.bf16 %v888, %v886
        %v1143 = vpack.c.bf16 %v892, %v890
        %v1144 = vpack.c.bf16 %v896, %v894
        %v1145 = vpack.c.bf16 %v900, %v898
        %v1146 = vpack.c.bf16 %v904, %v902
        %v1147 = vpack.c.bf16 %v908, %v906
        %v1148 = vpack.c.bf16 %v912, %v910
        %v1149 = vpack.c.bf16 %v916, %v914
        %v1150 = vpack.c.bf16 %v920, %v918
        %v1151 = vpack.c.bf16 %v924, %v922
        %v1152 = vpack.c.bf16 %v928, %v926
        %v1153 = vpack.c.bf16 %v932, %v930
        %v1154 = vpack.c.bf16 %v936, %v934
        %v1155 = vpack.c.bf16 %v940, %v938
        %v1156 = vpack.c.bf16 %v944, %v942
        %v1157 = vpack.c.bf16 %v948, %v946
        %v1158 = vpack.c.bf16 %v952, %v950
        %v1159 = vpack.c.bf16 %v956, %v954
        %v1160 = vpack.c.bf16 %v960, %v958
        %v1161 = vpack.c.bf16 %v964, %v962
        %v1162 = vpack.c.bf16 %v968, %v966
        %v1163 = vpack.c.bf16 %v972, %v970
        %v1164 = vpack.c.bf16 %v976, %v974
        %v1165 = vpack.c.bf16 %v980, %v978
        %v1166 = vpack.c.bf16 %v984, %v982
        %v1167 = vpack.c.bf16 %v988, %v986
        %v1168 = vpack.c.bf16 %v992, %v990
        %v1169 = vpack.c.bf16 %v996, %v994
        %v1170 = vpack.c.bf16 %v1000, %v998
        %v1171 = vpack.c.bf16 %v1004, %v1002
        %v1172 = vpack.c.bf16 %v1008, %v1006
        %v1173 = vpack.c.bf16 %v1012, %v1010
        %v1174 = vld [vmem:[#allocation6] sm:$0xf]
        %v1175 = vld [vmem:[#allocation6 + $0x4] sm:$0xf]
        %v1176 = vld [vmem:[#allocation6 + $0x8] sm:$0xf]
        %v1177 = vld [vmem:[#allocation6 + $0xc] sm:$0xf]
        %v1178 = vld [vmem:[#allocation6 + $0x10] sm:$0xf]
        %v1179 = vld [vmem:[#allocation6 + $0x14] sm:$0xf]
        %v1180 = vld [vmem:[#allocation6 + $0x18] sm:$0xf]
        %v1181 = vld [vmem:[#allocation6 + $0x1c] sm:$0xf]
        %v1182 = vld [vmem:[#allocation6 + $0x20] sm:$0xf]
        %v1183 = vld [vmem:[#allocation6 + $0x24] sm:$0xf]
        %v1184 = vld [vmem:[#allocation6 + $0x28] sm:$0xf]
        %v1185 = vld [vmem:[#allocation6 + $0x2c] sm:$0xf]
        %v1186 = vld [vmem:[#allocation6 + $0x30] sm:$0xf]
        %v1187 = vld [vmem:[#allocation6 + $0x34] sm:$0xf]
        %v1188 = vld [vmem:[#allocation6 + $0x38] sm:$0xf]
        %v1189 = vld [vmem:[#allocation6 + $0x3c] sm:$0xf]
        %v1190 = vld [vmem:[%s5] sm:$0x1]
        %v1192 = vlaneseq
        %v1193 = vshrl.u32 %v1192, 7
        %v1194 = vsub.s32 0, %v1193
        %v1195 = vrot.slane %v1190, %v1194
        %v1213 = vunpack.c.l.b16 %v1174
        %v1214 = vunpack.c.l.b16 %v1175
        %v1215 = vunpack.c.l.b16 %v1176
        %v1216 = vunpack.c.l.b16 %v1177
        %v1217 = vunpack.c.l.b16 %v1178
        %v1218 = vunpack.c.l.b16 %v1179
        %v1219 = vunpack.c.l.b16 %v1180
        %v1220 = vunpack.c.l.b16 %v1181
        %v1221 = vunpack.c.l.b16 %v1182
        %v1222 = vunpack.c.l.b16 %v1183
        %v1223 = vunpack.c.l.b16 %v1184
        %v1224 = vunpack.c.l.b16 %v1185
        %v1225 = vunpack.c.l.b16 %v1186
        %v1226 = vunpack.c.l.b16 %v1187
        %v1227 = vunpack.c.l.b16 %v1188
        %v1228 = vunpack.c.l.b16 %v1189
        %v1229 = vpack.c.b16 %v1214, %v1213
        %v1230 = vpack.c.b16 %v1216, %v1215
        %v1231 = vpack.c.b16 %v1218, %v1217
        %v1232 = vpack.c.b16 %v1220, %v1219
        %v1233 = vpack.c.b16 %v1222, %v1221
        %v1234 = vpack.c.b16 %v1224, %v1223
        %v1235 = vpack.c.b16 %v1226, %v1225
        %v1236 = vpack.c.b16 %v1228, %v1227
        %1245 = vmatprep.subr.bf16.mxu0 0
        %1246 = vmatpush1.bf16.msra.mxu0 %v1229
        %1247 = vmatprep.subr.bf16.mxu0 0
        %1248 = vmatpush1.bf16.msra.mxu0 %v1230
        %1249 = vmatprep.subr.bf16.mxu0 0
        %1250 = vmatpush1.bf16.msra.mxu0 %v1231
        %1251 = vmatprep.subr.bf16.mxu0 0
        %1252 = vmatpush1.bf16.msra.mxu0 %v1232
        %1253 = vmatprep.subr.bf16.mxu0 0
        %1254 = vmatpush1.bf16.msra.mxu0 %v1233
        %1255 = vmatprep.subr.bf16.mxu0 0
        %1256 = vmatpush1.bf16.msra.mxu0 %v1234
        %1257 = vmatprep.subr.bf16.mxu0 0
        %1258 = vmatpush1.bf16.msra.mxu0 %v1235
        %1259 = vmatprep.subr.bf16.mxu0 0
        %1260 = vmatpush1.bf16.msra.mxu0 %v1236
        %1261 = vmatprep.subr.bf16.mxu0 0
        %1262 = vmatpush1.bf16.msra.mxu0 0
        %1263 = vmatprep.subr.bf16.mxu0 0
        %1264 = vmatpush1.bf16.msra.mxu0 0
        %1265 = vmatprep.subr.bf16.mxu0 0
        %1266 = vmatpush1.bf16.msra.mxu0 0
        %1267 = vmatprep.subr.bf16.mxu0 0
        %1268 = vmatpush1.bf16.msra.mxu0 0
        %1269 = vmatprep.subr.bf16.mxu0 0
        %1270 = vmatpush1.bf16.msra.mxu0 0
        %1271 = vmatprep.subr.bf16.mxu0 0
        %1272 = vmatpush1.bf16.msra.mxu0 0
        %1273 = vmatprep.subr.bf16.mxu0 0
        %1274 = vmatpush1.bf16.msra.mxu0 0
        %1275 = vmatprep.subr.bf16.mxu0 0
        %1276 = vmatpush1.bf16.msra.mxu0 0
        %1277 = vmatprep.mubr.bf16.mxu0 0
        %1278 = vmatmul.mubr.bf16.gmra.mrb[0].mxu0 %v1142
        %v1279 = vpop.f32.mrb[0].mxu0
        %v1280 = vadd.f32 %v1195, %v1279
        %v1281 = vpop.f32.mrb[0].mxu0
        %v1282 = vpop.f32.mrb[0].mxu0
        %v1283 = vadd.f32 %v1195, %v1282
        %v1284 = vpop.f32.mrb[0].mxu0
        %1285 = vmatprep.mubr.bf16.mxu0 0
        %1286 = vmatmul.mubr.bf16.gmra.mrb[0].mxu0 %v1143
        %v1287 = vpop.f32.mrb[0].mxu0
        %v1288 = vadd.f32 %v1195, %v1287
        %v1289 = vpop.f32.mrb[0].mxu0
        %v1290 = vpop.f32.mrb[0].mxu0
        %v1291 = vadd.f32 %v1195, %v1290
        %v1292 = vpop.f32.mrb[0].mxu0
        %1293 = vmatprep.mubr.bf16.mxu0 0
        %1294 = vmatmul.mubr.bf16.gmra.mrb[0].mxu0 %v1144
        %v1295 = vpop.f32.mrb[0].mxu0
        %v1296 = vadd.f32 %v1195, %v1295
        %v1297 = vpop.f32.mrb[0].mxu0
        %v1298 = vpop.f32.mrb[0].mxu0
        %v1299 = vadd.f32 %v1195, %v1298
        %v1300 = vpop.f32.mrb[0].mxu0
        %1301 = vmatprep.mubr.bf16.mxu0 0
        %1302 = vmatmul.mubr.bf16.gmra.mrb[0].mxu0 %v1145
        %v1303 = vpop.f32.mrb[0].mxu0
        %v1304 = vadd.f32 %v1195, %v1303
        %v1305 = vpop.f32.mrb[0].mxu0
        %v1306 = vpop.f32.mrb[0].mxu0
        %v1307 = vadd.f32 %v1195, %v1306
        %v1308 = vpop.f32.mrb[0].mxu0
        %1309 = vmatprep.mubr.bf16.mxu0 0
        %1310 = vmatmul.mubr.bf16.gmra.mrb[0].mxu0 %v1146
        %v1311 = vpop.f32.mrb[0].mxu0
        %v1312 = vadd.f32 %v1195, %v1311
        %v1313 = vpop.f32.mrb[0].mxu0
        %v1314 = vpop.f32.mrb[0].mxu0
        %v1315 = vadd.f32 %v1195, %v1314
        %v1316 = vpop.f32.mrb[0].mxu0
        %1317 = vmatprep.mubr.bf16.mxu0 0
        %1318 = vmatmul.mubr.bf16.gmra.mrb[0].mxu0 %v1147
        %v1319 = vpop.f32.mrb[0].mxu0
        %v1320 = vadd.f32 %v1195, %v1319
        %v1321 = vpop.f32.mrb[0].mxu0
        %v1322 = vpop.f32.mrb[0].mxu0
        %v1323 = vadd.f32 %v1195, %v1322
        %v1324 = vpop.f32.mrb[0].mxu0
        %1325 = vmatprep.mubr.bf16.mxu0 0
        %1326 = vmatmul.mubr.bf16.gmra.mrb[0].mxu0 %v1148
        %v1327 = vpop.f32.mrb[0].mxu0
        %v1328 = vadd.f32 %v1195, %v1327
        %v1329 = vpop.f32.mrb[0].mxu0
        %v1330 = vpop.f32.mrb[0].mxu0
        %v1331 = vadd.f32 %v1195, %v1330
        %v1332 = vpop.f32.mrb[0].mxu0
        %1333 = vmatprep.mubr.bf16.mxu0 0
        %1334 = vmatmul.mubr.bf16.gmra.mrb[0].mxu0 %v1149
        %v1335 = vpop.f32.mrb[0].mxu0
        %v1336 = vadd.f32 %v1195, %v1335
        %v1337 = vpop.f32.mrb[0].mxu0
        %v1338 = vpop.f32.mrb[0].mxu0
        %v1339 = vadd.f32 %v1195, %v1338
        %v1340 = vpop.f32.mrb[0].mxu0
        %1341 = vmatprep.mubr.bf16.mxu0 0
        %1342 = vmatmul.mubr.bf16.gmra.mrb[0].mxu0 %v1150
        %v1343 = vpop.f32.mrb[0].mxu0
        %v1344 = vadd.f32 %v1195, %v1343
        %v1345 = vpop.f32.mrb[0].mxu0
        %v1346 = vpop.f32.mrb[0].mxu0
        %v1347 = vadd.f32 %v1195, %v1346
        %v1348 = vpop.f32.mrb[0].mxu0
        %1349 = vmatprep.mubr.bf16.mxu0 0
        %1350 = vmatmul.mubr.bf16.gmra.mrb[0].mxu0 %v1151
        %v1351 = vpop.f32.mrb[0].mxu0
        %v1352 = vadd.f32 %v1195, %v1351
        %v1353 = vpop.f32.mrb[0].mxu0
        %v1354 = vpop.f32.mrb[0].mxu0
        %v1355 = vadd.f32 %v1195, %v1354
        %v1356 = vpop.f32.mrb[0].mxu0
        %1357 = vmatprep.mubr.bf16.mxu0 0
        %1358 = vmatmul.mubr.bf16.gmra.mrb[0].mxu0 %v1152
        %v1359 = vpop.f32.mrb[0].mxu0
        %v1360 = vadd.f32 %v1195, %v1359
        %v1361 = vpop.f32.mrb[0].mxu0
        %v1362 = vpop.f32.mrb[0].mxu0
        %v1363 = vadd.f32 %v1195, %v1362
        %v1364 = vpop.f32.mrb[0].mxu0
        %1365 = vmatprep.mubr.bf16.mxu0 0
        %1366 = vmatmul.mubr.bf16.gmra.mrb[0].mxu0 %v1153
        %v1367 = vpop.f32.mrb[0].mxu0
        %v1368 = vadd.f32 %v1195, %v1367
        %v1369 = vpop.f32.mrb[0].mxu0
        %v1370 = vpop.f32.mrb[0].mxu0
        %v1371 = vadd.f32 %v1195, %v1370
        %v1372 = vpop.f32.mrb[0].mxu0
        %1373 = vmatprep.mubr.bf16.mxu0 0
        %1374 = vmatmul.mubr.bf16.gmra.mrb[0].mxu0 %v1154
        %v1375 = vpop.f32.mrb[0].mxu0
        %v1376 = vadd.f32 %v1195, %v1375
        %v1377 = vpop.f32.mrb[0].mxu0
        %v1378 = vpop.f32.mrb[0].mxu0
        %v1379 = vadd.f32 %v1195, %v1378
        %v1380 = vpop.f32.mrb[0].mxu0
        %1381 = vmatprep.mubr.bf16.mxu0 0
        %1382 = vmatmul.mubr.bf16.gmra.mrb[0].mxu0 %v1155
        %v1383 = vpop.f32.mrb[0].mxu0
        %v1384 = vadd.f32 %v1195, %v1383
        %v1385 = vpop.f32.mrb[0].mxu0
        %v1386 = vpop.f32.mrb[0].mxu0
        %v1387 = vadd.f32 %v1195, %v1386
        %v1388 = vpop.f32.mrb[0].mxu0
        %1389 = vmatprep.mubr.bf16.mxu0 0
        %1390 = vmatmul.mubr.bf16.gmra.mrb[0].mxu0 %v1156
        %v1391 = vpop.f32.mrb[0].mxu0
        %v1392 = vadd.f32 %v1195, %v1391
        %v1393 = vpop.f32.mrb[0].mxu0
        %v1394 = vpop.f32.mrb[0].mxu0
        %v1395 = vadd.f32 %v1195, %v1394
        %v1396 = vpop.f32.mrb[0].mxu0
        %1397 = vmatprep.mubr.bf16.mxu0 0
        %1398 = vmatmul.mubr.bf16.gmra.mrb[0].mxu0 %v1157
        %v1399 = vpop.f32.mrb[0].mxu0
        %v1400 = vadd.f32 %v1195, %v1399
        %v1401 = vpop.f32.mrb[0].mxu0
        %v1402 = vpop.f32.mrb[0].mxu0
        %v1403 = vadd.f32 %v1195, %v1402
        %v1404 = vpop.f32.mrb[0].mxu0
        %1405 = vmatprep.mubr.bf16.mxu0 0
        %1406 = vmatmul.mubr.bf16.gmra.mrb[0].mxu0 %v1158
        %v1407 = vpop.f32.mrb[0].mxu0
        %v1408 = vadd.f32 %v1195, %v1407
        %v1409 = vpop.f32.mrb[0].mxu0
        %v1410 = vpop.f32.mrb[0].mxu0
        %v1411 = vadd.f32 %v1195, %v1410
        %v1412 = vpop.f32.mrb[0].mxu0
        %1413 = vmatprep.mubr.bf16.mxu0 0
        %1414 = vmatmul.mubr.bf16.gmra.mrb[0].mxu0 %v1159
        %v1415 = vpop.f32.mrb[0].mxu0
        %v1416 = vadd.f32 %v1195, %v1415
        %v1417 = vpop.f32.mrb[0].mxu0
        %v1418 = vpop.f32.mrb[0].mxu0
        %v1419 = vadd.f32 %v1195, %v1418
        %v1420 = vpop.f32.mrb[0].mxu0
        %1421 = vmatprep.mubr.bf16.mxu0 0
        %1422 = vmatmul.mubr.bf16.gmra.mrb[0].mxu0 %v1160
        %v1423 = vpop.f32.mrb[0].mxu0
        %v1424 = vadd.f32 %v1195, %v1423
        %v1425 = vpop.f32.mrb[0].mxu0
        %v1426 = vpop.f32.mrb[0].mxu0
        %v1427 = vadd.f32 %v1195, %v1426
        %v1428 = vpop.f32.mrb[0].mxu0
        %1429 = vmatprep.mubr.bf16.mxu0 0
        %1430 = vmatmul.mubr.bf16.gmra.mrb[0].mxu0 %v1161
        %v1431 = vpop.f32.mrb[0].mxu0
        %v1432 = vadd.f32 %v1195, %v1431
        %v1433 = vpop.f32.mrb[0].mxu0
        %v1434 = vpop.f32.mrb[0].mxu0
        %v1435 = vadd.f32 %v1195, %v1434
        %v1436 = vpop.f32.mrb[0].mxu0
        %1437 = vmatprep.mubr.bf16.mxu0 0
        %1438 = vmatmul.mubr.bf16.gmra.mrb[0].mxu0 %v1162
        %v1439 = vpop.f32.mrb[0].mxu0
        %v1440 = vadd.f32 %v1195, %v1439
        %v1441 = vpop.f32.mrb[0].mxu0
        %v1442 = vpop.f32.mrb[0].mxu0
        %v1443 = vadd.f32 %v1195, %v1442
        %v1444 = vpop.f32.mrb[0].mxu0
        %1445 = vmatprep.mubr.bf16.mxu0 0
        %1446 = vmatmul.mubr.bf16.gmra.mrb[0].mxu0 %v1163
        %v1447 = vpop.f32.mrb[0].mxu0
        %v1448 = vadd.f32 %v1195, %v1447
        %v1449 = vpop.f32.mrb[0].mxu0
        %v1450 = vpop.f32.mrb[0].mxu0
        %v1451 = vadd.f32 %v1195, %v1450
        %v1452 = vpop.f32.mrb[0].mxu0
        %1453 = vmatprep.mubr.bf16.mxu0 0
        %1454 = vmatmul.mubr.bf16.gmra.mrb[0].mxu0 %v1164
        %v1455 = vpop.f32.mrb[0].mxu0
        %v1456 = vadd.f32 %v1195, %v1455
        %v1457 = vpop.f32.mrb[0].mxu0
        %v1458 = vpop.f32.mrb[0].mxu0
        %v1459 = vadd.f32 %v1195, %v1458
        %v1460 = vpop.f32.mrb[0].mxu0
        %1461 = vmatprep.mubr.bf16.mxu0 0
        %1462 = vmatmul.mubr.bf16.gmra.mrb[0].mxu0 %v1165
        %v1463 = vpop.f32.mrb[0].mxu0
        %v1464 = vadd.f32 %v1195, %v1463
        %v1465 = vpop.f32.mrb[0].mxu0
        %v1466 = vpop.f32.mrb[0].mxu0
        %v1467 = vadd.f32 %v1195, %v1466
        %v1468 = vpop.f32.mrb[0].mxu0
        %1469 = vmatprep.mubr.bf16.mxu0 0
        %1470 = vmatmul.mubr.bf16.gmra.mrb[0].mxu0 %v1166
        %v1471 = vpop.f32.mrb[0].mxu0
        %v1472 = vadd.f32 %v1195, %v1471
        %v1473 = vpop.f32.mrb[0].mxu0
        %v1474 = vpop.f32.mrb[0].mxu0
        %v1475 = vadd.f32 %v1195, %v1474
        %v1476 = vpop.f32.mrb[0].mxu0
        %1477 = vmatprep.mubr.bf16.mxu0 0
        %1478 = vmatmul.mubr.bf16.gmra.mrb[0].mxu0 %v1167
        %v1479 = vpop.f32.mrb[0].mxu0
        %v1480 = vadd.f32 %v1195, %v1479
        %v1481 = vpop.f32.mrb[0].mxu0
        %v1482 = vpop.f32.mrb[0].mxu0
        %v1483 = vadd.f32 %v1195, %v1482
        %v1484 = vpop.f32.mrb[0].mxu0
        %1485 = vmatprep.mubr.bf16.mxu0 0
        %1486 = vmatmul.mubr.bf16.gmra.mrb[0].mxu0 %v1168
        %v1487 = vpop.f32.mrb[0].mxu0
        %v1488 = vadd.f32 %v1195, %v1487
        %v1489 = vpop.f32.mrb[0].mxu0
        %v1490 = vpop.f32.mrb[0].mxu0
        %v1491 = vadd.f32 %v1195, %v1490
        %v1492 = vpop.f32.mrb[0].mxu0
        %1493 = vmatprep.mubr.bf16.mxu0 0
        %1494 = vmatmul.mubr.bf16.gmra.mrb[0].mxu0 %v1169
        %v1495 = vpop.f32.mrb[0].mxu0
        %v1496 = vadd.f32 %v1195, %v1495
        %v1497 = vpop.f32.mrb[0].mxu0
        %v1498 = vpop.f32.mrb[0].mxu0
        %v1499 = vadd.f32 %v1195, %v1498
        %v1500 = vpop.f32.mrb[0].mxu0
        %1501 = vmatprep.mubr.bf16.mxu0 0
        %1502 = vmatmul.mubr.bf16.gmra.mrb[0].mxu0 %v1170
        %v1503 = vpop.f32.mrb[0].mxu0
        %v1504 = vadd.f32 %v1195, %v1503
        %v1505 = vpop.f32.mrb[0].mxu0
        %v1506 = vpop.f32.mrb[0].mxu0
        %v1507 = vadd.f32 %v1195, %v1506
        %v1508 = vpop.f32.mrb[0].mxu0
        %1509 = vmatprep.mubr.bf16.mxu0 0
        %1510 = vmatmul.mubr.bf16.gmra.mrb[0].mxu0 %v1171
        %v1511 = vpop.f32.mrb[0].mxu0
        %v1512 = vadd.f32 %v1195, %v1511
        %v1513 = vpop.f32.mrb[0].mxu0
        %v1514 = vpop.f32.mrb[0].mxu0
        %v1515 = vadd.f32 %v1195, %v1514
        %v1516 = vpop.f32.mrb[0].mxu0
        %1517 = vmatprep.mubr.bf16.mxu0 0
        %1518 = vmatmul.mubr.bf16.gmra.mrb[0].mxu0 %v1172
        %v1519 = vpop.f32.mrb[0].mxu0
        %v1520 = vadd.f32 %v1195, %v1519
        %v1521 = vpop.f32.mrb[0].mxu0
        %v1522 = vpop.f32.mrb[0].mxu0
        %v1523 = vadd.f32 %v1195, %v1522
        %v1524 = vpop.f32.mrb[0].mxu0
        %1525 = vmatprep.mubr.bf16.mxu0 0
        %1526 = vmatmul.mubr.bf16.gmra.mrb[0].mxu0 %v1173
        %v1527 = vpop.f32.mrb[0].mxu0
        %v1528 = vadd.f32 %v1195, %v1527
        %v1529 = vpop.f32.mrb[0].mxu0
        %v1530 = vpop.f32.mrb[0].mxu0
        %v1531 = vadd.f32 %v1195, %v1530
        %v1532 = vpop.f32.mrb[0].mxu0
        %1533 = vdwg.mxu0
        %v1534 = vmax.f32 %v1280, 0.0
        %v1535 = vmax.f32 %v1283, 0.0
        %v1536 = vmax.f32 %v1288, 0.0
        %v1537 = vmax.f32 %v1291, 0.0
        %v1538 = vmax.f32 %v1296, 0.0
        %v1539 = vmax.f32 %v1299, 0.0
        %v1540 = vmax.f32 %v1304, 0.0
        %v1541 = vmax.f32 %v1307, 0.0
        %v1542 = vmax.f32 %v1312, 0.0
        %v1543 = vmax.f32 %v1315, 0.0
        %v1544 = vmax.f32 %v1320, 0.0
        %v1545 = vmax.f32 %v1323, 0.0
        %v1546 = vmax.f32 %v1328, 0.0
        %v1547 = vmax.f32 %v1331, 0.0
        %v1548 = vmax.f32 %v1336, 0.0
        %v1549 = vmax.f32 %v1339, 0.0
        %v1550 = vmax.f32 %v1344, 0.0
        %v1551 = vmax.f32 %v1347, 0.0
        %v1552 = vmax.f32 %v1352, 0.0
        %v1553 = vmax.f32 %v1355, 0.0
        %v1554 = vmax.f32 %v1360, 0.0
        %v1555 = vmax.f32 %v1363, 0.0
        %v1556 = vmax.f32 %v1368, 0.0
        %v1557 = vmax.f32 %v1371, 0.0
        %v1558 = vmax.f32 %v1376, 0.0
        %v1559 = vmax.f32 %v1379, 0.0
        %v1560 = vmax.f32 %v1384, 0.0
        %v1561 = vmax.f32 %v1387, 0.0
        %v1562 = vmax.f32 %v1392, 0.0
        %v1563 = vmax.f32 %v1395, 0.0
        %v1564 = vmax.f32 %v1400, 0.0
        %v1565 = vmax.f32 %v1403, 0.0
        %v1566 = vmax.f32 %v1408, 0.0
        %v1567 = vmax.f32 %v1411, 0.0
        %v1568 = vmax.f32 %v1416, 0.0
        %v1569 = vmax.f32 %v1419, 0.0
        %v1570 = vmax.f32 %v1424, 0.0
        %v1571 = vmax.f32 %v1427, 0.0
        %v1572 = vmax.f32 %v1432, 0.0
        %v1573 = vmax.f32 %v1435, 0.0
        %v1574 = vmax.f32 %v1440, 0.0
        %v1575 = vmax.f32 %v1443, 0.0
        %v1576 = vmax.f32 %v1448, 0.0
        %v1577 = vmax.f32 %v1451, 0.0
        %v1578 = vmax.f32 %v1456, 0.0
        %v1579 = vmax.f32 %v1459, 0.0
        %v1580 = vmax.f32 %v1464, 0.0
        %v1581 = vmax.f32 %v1467, 0.0
        %v1582 = vmax.f32 %v1472, 0.0
        %v1583 = vmax.f32 %v1475, 0.0
        %v1584 = vmax.f32 %v1480, 0.0
        %v1585 = vmax.f32 %v1483, 0.0
        %v1586 = vmax.f32 %v1488, 0.0
        %v1587 = vmax.f32 %v1491, 0.0
        %v1588 = vmax.f32 %v1496, 0.0
        %v1589 = vmax.f32 %v1499, 0.0
        %v1590 = vmax.f32 %v1504, 0.0
        %v1591 = vmax.f32 %v1507, 0.0
        %v1592 = vmax.f32 %v1512, 0.0
        %v1593 = vmax.f32 %v1515, 0.0
        %v1594 = vmax.f32 %v1520, 0.0
        %v1595 = vmax.f32 %v1523, 0.0
        %v1596 = vmax.f32 %v1528, 0.0
        %v1597 = vmax.f32 %v1531, 0.0
        %v1598 = vpack.c.bf16 %v1535, %v1534
        %v1599 = vpack.c.bf16 %v1537, %v1536
        %v1600 = vpack.c.bf16 %v1539, %v1538
        %v1601 = vpack.c.bf16 %v1541, %v1540
        %v1602 = vpack.c.bf16 %v1543, %v1542
        %v1603 = vpack.c.bf16 %v1545, %v1544
        %v1604 = vpack.c.bf16 %v1547, %v1546
        %v1605 = vpack.c.bf16 %v1549, %v1548
        %v1606 = vpack.c.bf16 %v1551, %v1550
        %v1607 = vpack.c.bf16 %v1553, %v1552
        %v1608 = vpack.c.bf16 %v1555, %v1554
        %v1609 = vpack.c.bf16 %v1557, %v1556
        %v1610 = vpack.c.bf16 %v1559, %v1558
        %v1611 = vpack.c.bf16 %v1561, %v1560
        %v1612 = vpack.c.bf16 %v1563, %v1562
        %v1613 = vpack.c.bf16 %v1565, %v1564
        %v1614 = vpack.c.bf16 %v1567, %v1566
        %v1615 = vpack.c.bf16 %v1569, %v1568
        %v1616 = vpack.c.bf16 %v1571, %v1570
        %v1617 = vpack.c.bf16 %v1573, %v1572
        %v1618 = vpack.c.bf16 %v1575, %v1574
        %v1619 = vpack.c.bf16 %v1577, %v1576
        %v1620 = vpack.c.bf16 %v1579, %v1578
        %v1621 = vpack.c.bf16 %v1581, %v1580
        %v1622 = vpack.c.bf16 %v1583, %v1582
        %v1623 = vpack.c.bf16 %v1585, %v1584
        %v1624 = vpack.c.bf16 %v1587, %v1586
        %v1625 = vpack.c.bf16 %v1589, %v1588
        %v1626 = vpack.c.bf16 %v1591, %v1590
        %v1627 = vpack.c.bf16 %v1593, %v1592
        %v1628 = vpack.c.bf16 %v1595, %v1594
        %v1629 = vpack.c.bf16 %v1597, %v1596
        %v1630 = vld [vmem:[#allocation8] sm:$0xff]
        %v1631 = vld [vmem:[#allocation8 + $0x8] sm:$0xff]
        %v1632 = vld [vmem:[#allocation8 + $0x10] sm:$0xff]
        %v1633 = vld [vmem:[#allocation8 + $0x18] sm:$0xff]
        %v1634 = vld [vmem:[#allocation8 + $0x20] sm:$0xff]
        %v1635 = vld [vmem:[#allocation8 + $0x28] sm:$0xff]
        %v1636 = vld [vmem:[#allocation8 + $0x30] sm:$0xff]
        %v1637 = vld [vmem:[#allocation8 + $0x38] sm:$0xff]
        %v1638 = vld [vmem:[#allocation8 + $0x40] sm:$0xff]
        %v1639 = vld [vmem:[#allocation8 + $0x48] sm:$0xff]
        %v1640 = vld [vmem:[#allocation8 + $0x50] sm:$0xff]
        %v1641 = vld [vmem:[#allocation8 + $0x58] sm:$0xff]
        %v1642 = vld [vmem:[#allocation8 + $0x60] sm:$0xff]
        %v1643 = vld [vmem:[#allocation8 + $0x68] sm:$0xff]
        %v1644 = vld [vmem:[#allocation8 + $0x70] sm:$0xff]
        %v1645 = vld [vmem:[#allocation8 + $0x78] sm:$0xff]
        %v1646 = vld [vmem:[%s7] sm:$0x3]
        %v1648 = vlaneseq
        %v1649 = vshrl.u32 %v1648, 7
        %v1650 = vsub.s32 0, %v1649
        %v1651 = vrot.slane %v1646, %v1650
        %v1652 = vlaneseq
        %v1653 = vshrl.u32 %v1652, 7
        %v1654 = vsub.s32 1, %v1653
        %v1655 = vrot.slane %v1646, %v1654
        %v1674 = vunpack.c.l.b16 %v1630
        %v1675 = vunpack.c.h.b16 %v1630
        %v1676 = vunpack.c.l.b16 %v1631
        %v1677 = vunpack.c.h.b16 %v1631
        %v1678 = vunpack.c.l.b16 %v1632
        %v1679 = vunpack.c.h.b16 %v1632
        %v1680 = vunpack.c.l.b16 %v1633
        %v1681 = vunpack.c.h.b16 %v1633
        %v1682 = vunpack.c.l.b16 %v1634
        %v1683 = vunpack.c.h.b16 %v1634
        %v1684 = vunpack.c.l.b16 %v1635
        %v1685 = vunpack.c.h.b16 %v1635
        %v1686 = vunpack.c.l.b16 %v1636
        %v1687 = vunpack.c.h.b16 %v1636
        %v1688 = vunpack.c.l.b16 %v1637
        %v1689 = vunpack.c.h.b16 %v1637
        %v1690 = vunpack.c.l.b16 %v1638
        %v1691 = vunpack.c.h.b16 %v1638
        %v1692 = vunpack.c.l.b16 %v1639
        %v1693 = vunpack.c.h.b16 %v1639
        %v1694 = vunpack.c.l.b16 %v1640
        %v1695 = vunpack.c.h.b16 %v1640
        %v1696 = vunpack.c.l.b16 %v1641
        %v1697 = vunpack.c.h.b16 %v1641
        %v1698 = vunpack.c.l.b16 %v1642
        %v1699 = vunpack.c.h.b16 %v1642
        %v1700 = vunpack.c.l.b16 %v1643
        %v1701 = vunpack.c.h.b16 %v1643
        %v1702 = vunpack.c.l.b16 %v1644
        %v1703 = vunpack.c.h.b16 %v1644
        %v1704 = vunpack.c.l.b16 %v1645
        %v1705 = vunpack.c.h.b16 %v1645
        %v1706 = vpack.c.b16 %v1676, %v1674
        %v1707 = vpack.c.b16 %v1677, %v1675
        %v1708 = vpack.c.b16 %v1680, %v1678
        %v1709 = vpack.c.b16 %v1681, %v1679
        %v1710 = vpack.c.b16 %v1684, %v1682
        %v1711 = vpack.c.b16 %v1685, %v1683
        %v1712 = vpack.c.b16 %v1688, %v1686
        %v1713 = vpack.c.b16 %v1689, %v1687
        %v1714 = vpack.c.b16 %v1692, %v1690
        %v1715 = vpack.c.b16 %v1693, %v1691
        %v1716 = vpack.c.b16 %v1696, %v1694
        %v1717 = vpack.c.b16 %v1697, %v1695
        %v1718 = vpack.c.b16 %v1700, %v1698
        %v1719 = vpack.c.b16 %v1701, %v1699
        %v1720 = vpack.c.b16 %v1704, %v1702
        %v1721 = vpack.c.b16 %v1705, %v1703
        %1738 = vmatprep.subr.bf16.mxu0 %v1707
        %1739 = vmatpush1.bf16.msra.mxu0 %v1706
        %1740 = vmatprep.subr.bf16.mxu0 %v1709
        %1741 = vmatpush1.bf16.msra.mxu0 %v1708
        %1742 = vmatprep.subr.bf16.mxu0 %v1711
        %1743 = vmatpush1.bf16.msra.mxu0 %v1710
        %1744 = vmatprep.subr.bf16.mxu0 %v1713
        %1745 = vmatpush1.bf16.msra.mxu0 %v1712
        %1746 = vmatprep.subr.bf16.mxu0 %v1715
        %1747 = vmatpush1.bf16.msra.mxu0 %v1714
        %1748 = vmatprep.subr.bf16.mxu0 %v1717
        %1749 = vmatpush1.bf16.msra.mxu0 %v1716
        %1750 = vmatprep.subr.bf16.mxu0 %v1719
        %1751 = vmatpush1.bf16.msra.mxu0 %v1718
        %1752 = vmatprep.subr.bf16.mxu0 %v1721
        %1753 = vmatpush1.bf16.msra.mxu0 %v1720
        %1754 = vmatprep.subr.bf16.mxu0 0
        %1755 = vmatpush1.bf16.msra.mxu0 0
        %1756 = vmatprep.subr.bf16.mxu0 0
        %1757 = vmatpush1.bf16.msra.mxu0 0
        %1758 = vmatprep.subr.bf16.mxu0 0
        %1759 = vmatpush1.bf16.msra.mxu0 0
        %1760 = vmatprep.subr.bf16.mxu0 0
        %1761 = vmatpush1.bf16.msra.mxu0 0
        %1762 = vmatprep.subr.bf16.mxu0 0
        %1763 = vmatpush1.bf16.msra.mxu0 0
        %1764 = vmatprep.subr.bf16.mxu0 0
        %1765 = vmatpush1.bf16.msra.mxu0 0
        %1766 = vmatprep.subr.bf16.mxu0 0
        %1767 = vmatpush1.bf16.msra.mxu0 0
        %1768 = vmatprep.subr.bf16.mxu0 0
        %1769 = vmatpush1.bf16.msra.mxu0 0
        %1770 = vmatprep.mubr.bf16.mxu0 0
        %1771 = vmatmul.mubr.bf16.gmra.mrb[0].mxu0 %v1598
        %v1772 = vpop.f32.mrb[0].mxu0
        %v1773 = vadd.f32 %v1651, %v1772
        %v1774 = vpop.f32.mrb[0].mxu0
        %v1775 = vadd.f32 %v1655, %v1774
        %v1776 = vpop.f32.mrb[0].mxu0
        %v1777 = vadd.f32 %v1651, %v1776
        %v1778 = vpop.f32.mrb[0].mxu0
        %v1779 = vadd.f32 %v1655, %v1778
        %1780 = vmatprep.mubr.bf16.mxu0 0
        %1781 = vmatmul.mubr.bf16.gmra.mrb[0].mxu0 %v1599
        %v1782 = vpop.f32.mrb[0].mxu0
        %v1783 = vadd.f32 %v1651, %v1782
        %v1784 = vpop.f32.mrb[0].mxu0
        %v1785 = vadd.f32 %v1655, %v1784
        %v1786 = vpop.f32.mrb[0].mxu0
        %v1787 = vadd.f32 %v1651, %v1786
        %v1788 = vpop.f32.mrb[0].mxu0
        %v1789 = vadd.f32 %v1655, %v1788
        %1790 = vmatprep.mubr.bf16.mxu0 0
        %1791 = vmatmul.mubr.bf16.gmra.mrb[0].mxu0 %v1600
        %v1792 = vpop.f32.mrb[0].mxu0
        %v1793 = vadd.f32 %v1651, %v1792
        %v1794 = vpop.f32.mrb[0].mxu0
        %v1795 = vadd.f32 %v1655, %v1794
        %v1796 = vpop.f32.mrb[0].mxu0
        %v1797 = vadd.f32 %v1651, %v1796
        %v1798 = vpop.f32.mrb[0].mxu0
        %v1799 = vadd.f32 %v1655, %v1798
        %1800 = vmatprep.mubr.bf16.mxu0 0
        %1801 = vmatmul.mubr.bf16.gmra.mrb[0].mxu0 %v1601
        %v1802 = vpop.f32.mrb[0].mxu0
        %v1803 = vadd.f32 %v1651, %v1802
        %v1804 = vpop.f32.mrb[0].mxu0
        %v1805 = vadd.f32 %v1655, %v1804
        %v1806 = vpop.f32.mrb[0].mxu0
        %v1807 = vadd.f32 %v1651, %v1806
        %v1808 = vpop.f32.mrb[0].mxu0
        %v1809 = vadd.f32 %v1655, %v1808
        %1810 = vmatprep.mubr.bf16.mxu0 0
        %1811 = vmatmul.mubr.bf16.gmra.mrb[0].mxu0 %v1602
        %v1812 = vpop.f32.mrb[0].mxu0
        %v1813 = vadd.f32 %v1651, %v1812
        %v1814 = vpop.f32.mrb[0].mxu0
        %v1815 = vadd.f32 %v1655, %v1814
        %v1816 = vpop.f32.mrb[0].mxu0
        %v1817 = vadd.f32 %v1651, %v1816
        %v1818 = vpop.f32.mrb[0].mxu0
        %v1819 = vadd.f32 %v1655, %v1818
        %1820 = vmatprep.mubr.bf16.mxu0 0
        %1821 = vmatmul.mubr.bf16.gmra.mrb[0].mxu0 %v1603
        %v1822 = vpop.f32.mrb[0].mxu0
        %v1823 = vadd.f32 %v1651, %v1822
        %v1824 = vpop.f32.mrb[0].mxu0
        %v1825 = vadd.f32 %v1655, %v1824
        %v1826 = vpop.f32.mrb[0].mxu0
        %v1827 = vadd.f32 %v1651, %v1826
        %v1828 = vpop.f32.mrb[0].mxu0
        %v1829 = vadd.f32 %v1655, %v1828
        %1830 = vmatprep.mubr.bf16.mxu0 0
        %1831 = vmatmul.mubr.bf16.gmra.mrb[0].mxu0 %v1604
        %v1832 = vpop.f32.mrb[0].mxu0
        %v1833 = vadd.f32 %v1651, %v1832
        %v1834 = vpop.f32.mrb[0].mxu0
        %v1835 = vadd.f32 %v1655, %v1834
        %v1836 = vpop.f32.mrb[0].mxu0
        %v1837 = vadd.f32 %v1651, %v1836
        %v1838 = vpop.f32.mrb[0].mxu0
        %v1839 = vadd.f32 %v1655, %v1838
        %1840 = vmatprep.mubr.bf16.mxu0 0
        %1841 = vmatmul.mubr.bf16.gmra.mrb[0].mxu0 %v1605
        %v1842 = vpop.f32.mrb[0].mxu0
        %v1843 = vadd.f32 %v1651, %v1842
        %v1844 = vpop.f32.mrb[0].mxu0
        %v1845 = vadd.f32 %v1655, %v1844
        %v1846 = vpop.f32.mrb[0].mxu0
        %v1847 = vadd.f32 %v1651, %v1846
        %v1848 = vpop.f32.mrb[0].mxu0
        %v1849 = vadd.f32 %v1655, %v1848
        %1850 = vmatprep.mubr.bf16.mxu0 0
        %1851 = vmatmul.mubr.bf16.gmra.mrb[0].mxu0 %v1606
        %v1852 = vpop.f32.mrb[0].mxu0
        %v1853 = vadd.f32 %v1651, %v1852
        %v1854 = vpop.f32.mrb[0].mxu0
        %v1855 = vadd.f32 %v1655, %v1854
        %v1856 = vpop.f32.mrb[0].mxu0
        %v1857 = vadd.f32 %v1651, %v1856
        %v1858 = vpop.f32.mrb[0].mxu0
        %v1859 = vadd.f32 %v1655, %v1858
        %1860 = vmatprep.mubr.bf16.mxu0 0
        %1861 = vmatmul.mubr.bf16.gmra.mrb[0].mxu0 %v1607
        %v1862 = vpop.f32.mrb[0].mxu0
        %v1863 = vadd.f32 %v1651, %v1862
        %v1864 = vpop.f32.mrb[0].mxu0
        %v1865 = vadd.f32 %v1655, %v1864
        %v1866 = vpop.f32.mrb[0].mxu0
        %v1867 = vadd.f32 %v1651, %v1866
        %v1868 = vpop.f32.mrb[0].mxu0
        %v1869 = vadd.f32 %v1655, %v1868
        %1870 = vmatprep.mubr.bf16.mxu0 0
        %1871 = vmatmul.mubr.bf16.gmra.mrb[0].mxu0 %v1608
        %v1872 = vpop.f32.mrb[0].mxu0
        %v1873 = vadd.f32 %v1651, %v1872
        %v1874 = vpop.f32.mrb[0].mxu0
        %v1875 = vadd.f32 %v1655, %v1874
        %v1876 = vpop.f32.mrb[0].mxu0
        %v1877 = vadd.f32 %v1651, %v1876
        %v1878 = vpop.f32.mrb[0].mxu0
        %v1879 = vadd.f32 %v1655, %v1878
        %1880 = vmatprep.mubr.bf16.mxu0 0
        %1881 = vmatmul.mubr.bf16.gmra.mrb[0].mxu0 %v1609
        %v1882 = vpop.f32.mrb[0].mxu0
        %v1883 = vadd.f32 %v1651, %v1882
        %v1884 = vpop.f32.mrb[0].mxu0
        %v1885 = vadd.f32 %v1655, %v1884
        %v1886 = vpop.f32.mrb[0].mxu0
        %v1887 = vadd.f32 %v1651, %v1886
        %v1888 = vpop.f32.mrb[0].mxu0
        %v1889 = vadd.f32 %v1655, %v1888
        %1890 = vmatprep.mubr.bf16.mxu0 0
        %1891 = vmatmul.mubr.bf16.gmra.mrb[0].mxu0 %v1610
        %v1892 = vpop.f32.mrb[0].mxu0
        %v1893 = vadd.f32 %v1651, %v1892
        %v1894 = vpop.f32.mrb[0].mxu0
        %v1895 = vadd.f32 %v1655, %v1894
        %v1896 = vpop.f32.mrb[0].mxu0
        %v1897 = vadd.f32 %v1651, %v1896
        %v1898 = vpop.f32.mrb[0].mxu0
        %v1899 = vadd.f32 %v1655, %v1898
        %1900 = vmatprep.mubr.bf16.mxu0 0
        %1901 = vmatmul.mubr.bf16.gmra.mrb[0].mxu0 %v1611
        %v1902 = vpop.f32.mrb[0].mxu0
        %v1903 = vadd.f32 %v1651, %v1902
        %v1904 = vpop.f32.mrb[0].mxu0
        %v1905 = vadd.f32 %v1655, %v1904
        %v1906 = vpop.f32.mrb[0].mxu0
        %v1907 = vadd.f32 %v1651, %v1906
        %v1908 = vpop.f32.mrb[0].mxu0
        %v1909 = vadd.f32 %v1655, %v1908
        %1910 = vmatprep.mubr.bf16.mxu0 0
        %1911 = vmatmul.mubr.bf16.gmra.mrb[0].mxu0 %v1612
        %v1912 = vpop.f32.mrb[0].mxu0
        %v1913 = vadd.f32 %v1651, %v1912
        %v1914 = vpop.f32.mrb[0].mxu0
        %v1915 = vadd.f32 %v1655, %v1914
        %v1916 = vpop.f32.mrb[0].mxu0
        %v1917 = vadd.f32 %v1651, %v1916
        %v1918 = vpop.f32.mrb[0].mxu0
        %v1919 = vadd.f32 %v1655, %v1918
        %1920 = vmatprep.mubr.bf16.mxu0 0
        %1921 = vmatmul.mubr.bf16.gmra.mrb[0].mxu0 %v1613
        %v1922 = vpop.f32.mrb[0].mxu0
        %v1923 = vadd.f32 %v1651, %v1922
        %v1924 = vpop.f32.mrb[0].mxu0
        %v1925 = vadd.f32 %v1655, %v1924
        %v1926 = vpop.f32.mrb[0].mxu0
        %v1927 = vadd.f32 %v1651, %v1926
        %v1928 = vpop.f32.mrb[0].mxu0
        %v1929 = vadd.f32 %v1655, %v1928
        %1930 = vmatprep.mubr.bf16.mxu0 0
        %1931 = vmatmul.mubr.bf16.gmra.mrb[0].mxu0 %v1614
        %v1932 = vpop.f32.mrb[0].mxu0
        %v1933 = vadd.f32 %v1651, %v1932
        %v1934 = vpop.f32.mrb[0].mxu0
        %v1935 = vadd.f32 %v1655, %v1934
        %v1936 = vpop.f32.mrb[0].mxu0
        %v1937 = vadd.f32 %v1651, %v1936
        %v1938 = vpop.f32.mrb[0].mxu0
        %v1939 = vadd.f32 %v1655, %v1938
        %1940 = vmatprep.mubr.bf16.mxu0 0
        %1941 = vmatmul.mubr.bf16.gmra.mrb[0].mxu0 %v1615
        %v1942 = vpop.f32.mrb[0].mxu0
        %v1943 = vadd.f32 %v1651, %v1942
        %v1944 = vpop.f32.mrb[0].mxu0
        %v1945 = vadd.f32 %v1655, %v1944
        %v1946 = vpop.f32.mrb[0].mxu0
        %v1947 = vadd.f32 %v1651, %v1946
        %v1948 = vpop.f32.mrb[0].mxu0
        %v1949 = vadd.f32 %v1655, %v1948
        %1950 = vmatprep.mubr.bf16.mxu0 0
        %1951 = vmatmul.mubr.bf16.gmra.mrb[0].mxu0 %v1616
        %v1952 = vpop.f32.mrb[0].mxu0
        %v1953 = vadd.f32 %v1651, %v1952
        %v1954 = vpop.f32.mrb[0].mxu0
        %v1955 = vadd.f32 %v1655, %v1954
        %v1956 = vpop.f32.mrb[0].mxu0
        %v1957 = vadd.f32 %v1651, %v1956
        %v1958 = vpop.f32.mrb[0].mxu0
        %v1959 = vadd.f32 %v1655, %v1958
        %1960 = vmatprep.mubr.bf16.mxu0 0
        %1961 = vmatmul.mubr.bf16.gmra.mrb[0].mxu0 %v1617
        %v1962 = vpop.f32.mrb[0].mxu0
        %v1963 = vadd.f32 %v1651, %v1962
        %v1964 = vpop.f32.mrb[0].mxu0
        %v1965 = vadd.f32 %v1655, %v1964
        %v1966 = vpop.f32.mrb[0].mxu0
        %v1967 = vadd.f32 %v1651, %v1966
        %v1968 = vpop.f32.mrb[0].mxu0
        %v1969 = vadd.f32 %v1655, %v1968
        %1970 = vmatprep.mubr.bf16.mxu0 0
        %1971 = vmatmul.mubr.bf16.gmra.mrb[0].mxu0 %v1618
        %v1972 = vpop.f32.mrb[0].mxu0
        %v1973 = vadd.f32 %v1651, %v1972
        %v1974 = vpop.f32.mrb[0].mxu0
        %v1975 = vadd.f32 %v1655, %v1974
        %v1976 = vpop.f32.mrb[0].mxu0
        %v1977 = vadd.f32 %v1651, %v1976
        %v1978 = vpop.f32.mrb[0].mxu0
        %v1979 = vadd.f32 %v1655, %v1978
        %1980 = vmatprep.mubr.bf16.mxu0 0
        %1981 = vmatmul.mubr.bf16.gmra.mrb[0].mxu0 %v1619
        %v1982 = vpop.f32.mrb[0].mxu0
        %v1983 = vadd.f32 %v1651, %v1982
        %v1984 = vpop.f32.mrb[0].mxu0
        %v1985 = vadd.f32 %v1655, %v1984
        %v1986 = vpop.f32.mrb[0].mxu0
        %v1987 = vadd.f32 %v1651, %v1986
        %v1988 = vpop.f32.mrb[0].mxu0
        %v1989 = vadd.f32 %v1655, %v1988
        %1990 = vmatprep.mubr.bf16.mxu0 0
        %1991 = vmatmul.mubr.bf16.gmra.mrb[0].mxu0 %v1620
        %v1992 = vpop.f32.mrb[0].mxu0
        %v1993 = vadd.f32 %v1651, %v1992
        %v1994 = vpop.f32.mrb[0].mxu0
        %v1995 = vadd.f32 %v1655, %v1994
        %v1996 = vpop.f32.mrb[0].mxu0
        %v1997 = vadd.f32 %v1651, %v1996
        %v1998 = vpop.f32.mrb[0].mxu0
        %v1999 = vadd.f32 %v1655, %v1998
        %2000 = vmatprep.mubr.bf16.mxu0 0
        %2001 = vmatmul.mubr.bf16.gmra.mrb[0].mxu0 %v1621
        %v2002 = vpop.f32.mrb[0].mxu0
        %v2003 = vadd.f32 %v1651, %v2002
        %v2004 = vpop.f32.mrb[0].mxu0
        %v2005 = vadd.f32 %v1655, %v2004
        %v2006 = vpop.f32.mrb[0].mxu0
        %v2007 = vadd.f32 %v1651, %v2006
        %v2008 = vpop.f32.mrb[0].mxu0
        %v2009 = vadd.f32 %v1655, %v2008
        %2010 = vmatprep.mubr.bf16.mxu0 0
        %2011 = vmatmul.mubr.bf16.gmra.mrb[0].mxu0 %v1622
        %v2012 = vpop.f32.mrb[0].mxu0
        %v2013 = vadd.f32 %v1651, %v2012
        %v2014 = vpop.f32.mrb[0].mxu0
        %v2015 = vadd.f32 %v1655, %v2014
        %v2016 = vpop.f32.mrb[0].mxu0
        %v2017 = vadd.f32 %v1651, %v2016
        %v2018 = vpop.f32.mrb[0].mxu0
        %v2019 = vadd.f32 %v1655, %v2018
        %2020 = vmatprep.mubr.bf16.mxu0 0
        %2021 = vmatmul.mubr.bf16.gmra.mrb[0].mxu0 %v1623
        %v2022 = vpop.f32.mrb[0].mxu0
        %v2023 = vadd.f32 %v1651, %v2022
        %v2024 = vpop.f32.mrb[0].mxu0
        %v2025 = vadd.f32 %v1655, %v2024
        %v2026 = vpop.f32.mrb[0].mxu0
        %v2027 = vadd.f32 %v1651, %v2026
        %v2028 = vpop.f32.mrb[0].mxu0
        %v2029 = vadd.f32 %v1655, %v2028
        %2030 = vmatprep.mubr.bf16.mxu0 0
        %2031 = vmatmul.mubr.bf16.gmra.mrb[0].mxu0 %v1624
        %v2032 = vpop.f32.mrb[0].mxu0
        %v2033 = vadd.f32 %v1651, %v2032
        %v2034 = vpop.f32.mrb[0].mxu0
        %v2035 = vadd.f32 %v1655, %v2034
        %v2036 = vpop.f32.mrb[0].mxu0
        %v2037 = vadd.f32 %v1651, %v2036
        %v2038 = vpop.f32.mrb[0].mxu0
        %v2039 = vadd.f32 %v1655, %v2038
        %2040 = vmatprep.mubr.bf16.mxu0 0
        %2041 = vmatmul.mubr.bf16.gmra.mrb[0].mxu0 %v1625
        %v2042 = vpop.f32.mrb[0].mxu0
        %v2043 = vadd.f32 %v1651, %v2042
        %v2044 = vpop.f32.mrb[0].mxu0
        %v2045 = vadd.f32 %v1655, %v2044
        %v2046 = vpop.f32.mrb[0].mxu0
        %v2047 = vadd.f32 %v1651, %v2046
        %v2048 = vpop.f32.mrb[0].mxu0
        %v2049 = vadd.f32 %v1655, %v2048
        %2050 = vmatprep.mubr.bf16.mxu0 0
        %2051 = vmatmul.mubr.bf16.gmra.mrb[0].mxu0 %v1626
        %v2052 = vpop.f32.mrb[0].mxu0
        %v2053 = vadd.f32 %v1651, %v2052
        %v2054 = vpop.f32.mrb[0].mxu0
        %v2055 = vadd.f32 %v1655, %v2054
        %v2056 = vpop.f32.mrb[0].mxu0
        %v2057 = vadd.f32 %v1651, %v2056
        %v2058 = vpop.f32.mrb[0].mxu0
        %v2059 = vadd.f32 %v1655, %v2058
        %2060 = vmatprep.mubr.bf16.mxu0 0
        %2061 = vmatmul.mubr.bf16.gmra.mrb[0].mxu0 %v1627
        %v2062 = vpop.f32.mrb[0].mxu0
        %v2063 = vadd.f32 %v1651, %v2062
        %v2064 = vpop.f32.mrb[0].mxu0
        %v2065 = vadd.f32 %v1655, %v2064
        %v2066 = vpop.f32.mrb[0].mxu0
        %v2067 = vadd.f32 %v1651, %v2066
        %v2068 = vpop.f32.mrb[0].mxu0
        %v2069 = vadd.f32 %v1655, %v2068
        %2070 = vmatprep.mubr.bf16.mxu0 0
        %2071 = vmatmul.mubr.bf16.gmra.mrb[0].mxu0 %v1628
        %v2072 = vpop.f32.mrb[0].mxu0
        %v2073 = vadd.f32 %v1651, %v2072
        %v2074 = vpop.f32.mrb[0].mxu0
        %v2075 = vadd.f32 %v1655, %v2074
        %v2076 = vpop.f32.mrb[0].mxu0
        %v2077 = vadd.f32 %v1651, %v2076
        %v2078 = vpop.f32.mrb[0].mxu0
        %v2079 = vadd.f32 %v1655, %v2078
        %2080 = vmatprep.mubr.bf16.mxu0 0
        %2081 = vmatmul.mubr.bf16.gmra.mrb[0].mxu0 %v1629
        %v2082 = vpop.f32.mrb[0].mxu0
        %v2083 = vadd.f32 %v1651, %v2082
        %v2084 = vpop.f32.mrb[0].mxu0
        %v2085 = vadd.f32 %v1655, %v2084
        %v2086 = vpop.f32.mrb[0].mxu0
        %v2087 = vadd.f32 %v1651, %v2086
        %v2088 = vpop.f32.mrb[0].mxu0
        %v2089 = vadd.f32 %v1655, %v2088
        %2090 = vdwg.mxu0
        %v2091 = vtanh.pop %v1773
        %v2092 = vtanh.pop %v1777
        %v2093 = vtanh.pop %v1783
        %v2094 = vtanh.pop %v1787
        %v2095 = vtanh.pop %v1793
        %v2096 = vtanh.pop %v1797
        %v2097 = vtanh.pop %v1803
        %v2098 = vtanh.pop %v1807
        %v2099 = vtanh.pop %v1813
        %v2100 = vtanh.pop %v1817
        %v2101 = vtanh.pop %v1823
        %v2102 = vtanh.pop %v1827
        %v2103 = vtanh.pop %v1833
        %v2104 = vtanh.pop %v1837
        %v2105 = vtanh.pop %v1843
        %v2106 = vtanh.pop %v1847
        %v2107 = vtanh.pop %v1853
        %v2108 = vtanh.pop %v1857
        %v2109 = vtanh.pop %v1863
        %v2110 = vtanh.pop %v1867
        %v2111 = vtanh.pop %v1873
        %v2112 = vtanh.pop %v1877
        %v2113 = vtanh.pop %v1883
        %v2114 = vtanh.pop %v1887
        %v2115 = vtanh.pop %v1893
        %v2116 = vtanh.pop %v1897
        %v2117 = vtanh.pop %v1903
        %v2118 = vtanh.pop %v1907
        %v2119 = vtanh.pop %v1913
        %v2120 = vtanh.pop %v1917
        %v2121 = vtanh.pop %v1923
        %v2122 = vtanh.pop %v1927
        %v2123 = vtanh.pop %v1933
        %v2124 = vtanh.pop %v1937
        %v2125 = vtanh.pop %v1943
        %v2126 = vtanh.pop %v1947
        %v2127 = vtanh.pop %v1953
        %v2128 = vtanh.pop %v1957
        %v2129 = vtanh.pop %v1963
        %v2130 = vtanh.pop %v1967
        %v2131 = vtanh.pop %v1973
        %v2132 = vtanh.pop %v1977
        %v2133 = vtanh.pop %v1983
        %v2134 = vtanh.pop %v1987
        %v2135 = vtanh.pop %v1993
        %v2136 = vtanh.pop %v1997
        %v2137 = vtanh.pop %v2003
        %v2138 = vtanh.pop %v2007
        %v2139 = vtanh.pop %v2013
        %v2140 = vtanh.pop %v2017
        %v2141 = vtanh.pop %v2023
        %v2142 = vtanh.pop %v2027
        %v2143 = vtanh.pop %v2033
        %v2144 = vtanh.pop %v2037
        %v2145 = vtanh.pop %v2043
        %v2146 = vtanh.pop %v2047
        %v2147 = vtanh.pop %v2053
        %v2148 = vtanh.pop %v2057
        %v2149 = vtanh.pop %v2063
        %v2150 = vtanh.pop %v2067
        %v2151 = vtanh.pop %v2073
        %v2152 = vtanh.pop %v2077
        %v2153 = vtanh.pop %v2083
        %v2154 = vtanh.pop %v2087
        %v2155 = vmul.f32 %v2091, 1.442695
        %v2156 = vpow.pop %v2155
        %v2157 = vmul.f32 %v2092, 1.442695
        %v2158 = vpow.pop %v2157
        %v2159 = vmul.f32 %v2093, 1.442695
        %v2160 = vpow.pop %v2159
        %v2161 = vmul.f32 %v2094, 1.442695
        %v2162 = vpow.pop %v2161
        %v2163 = vmul.f32 %v2095, 1.442695
        %v2164 = vpow.pop %v2163
        %v2165 = vmul.f32 %v2096, 1.442695
        %v2166 = vpow.pop %v2165
        %v2167 = vmul.f32 %v2097, 1.442695
        %v2168 = vpow.pop %v2167
        %v2169 = vmul.f32 %v2098, 1.442695
        %v2170 = vpow.pop %v2169
        %v2171 = vmul.f32 %v2099, 1.442695
        %v2172 = vpow.pop %v2171
        %v2173 = vmul.f32 %v2100, 1.442695
        %v2174 = vpow.pop %v2173
        %v2175 = vmul.f32 %v2101, 1.442695
        %v2176 = vpow.pop %v2175
        %v2177 = vmul.f32 %v2102, 1.442695
        %v2178 = vpow.pop %v2177
        %v2179 = vmul.f32 %v2103, 1.442695
        %v2180 = vpow.pop %v2179
        %v2181 = vmul.f32 %v2104, 1.442695
        %v2182 = vpow.pop %v2181
        %v2183 = vmul.f32 %v2105, 1.442695
        %v2184 = vpow.pop %v2183
        %v2185 = vmul.f32 %v2106, 1.442695
        %v2186 = vpow.pop %v2185
        %v2187 = vmul.f32 %v2107, 1.442695
        %v2188 = vpow.pop %v2187
        %v2189 = vmul.f32 %v2108, 1.442695
        %v2190 = vpow.pop %v2189
        %v2191 = vmul.f32 %v2109, 1.442695
        %v2192 = vpow.pop %v2191
        %v2193 = vmul.f32 %v2110, 1.442695
        %v2194 = vpow.pop %v2193
        %v2195 = vmul.f32 %v2111, 1.442695
        %v2196 = vpow.pop %v2195
        %v2197 = vmul.f32 %v2112, 1.442695
        %v2198 = vpow.pop %v2197
        %v2199 = vmul.f32 %v2113, 1.442695
        %v2200 = vpow.pop %v2199
        %v2201 = vmul.f32 %v2114, 1.442695
        %v2202 = vpow.pop %v2201
        %v2203 = vmul.f32 %v2115, 1.442695
        %v2204 = vpow.pop %v2203
        %v2205 = vmul.f32 %v2116, 1.442695
        %v2206 = vpow.pop %v2205
        %v2207 = vmul.f32 %v2117, 1.442695
        %v2208 = vpow.pop %v2207
        %v2209 = vmul.f32 %v2118, 1.442695
        %v2210 = vpow.pop %v2209
        %v2211 = vmul.f32 %v2119, 1.442695
        %v2212 = vpow.pop %v2211
        %v2213 = vmul.f32 %v2120, 1.442695
        %v2214 = vpow.pop %v2213
        %v2215 = vmul.f32 %v2121, 1.442695
        %v2216 = vpow.pop %v2215
        %v2217 = vmul.f32 %v2122, 1.442695
        %v2218 = vpow.pop %v2217
        %v2219 = vmul.f32 %v2123, 1.442695
        %v2220 = vpow.pop %v2219
        %v2221 = vmul.f32 %v2124, 1.442695
        %v2222 = vpow.pop %v2221
        %v2223 = vmul.f32 %v2125, 1.442695
        %v2224 = vpow.pop %v2223
        %v2225 = vmul.f32 %v2126, 1.442695
        %v2226 = vpow.pop %v2225
        %v2227 = vmul.f32 %v2127, 1.442695
        %v2228 = vpow.pop %v2227
        %v2229 = vmul.f32 %v2128, 1.442695
        %v2230 = vpow.pop %v2229
        %v2231 = vmul.f32 %v2129, 1.442695
        %v2232 = vpow.pop %v2231
        %v2233 = vmul.f32 %v2130, 1.442695
        %v2234 = vpow.pop %v2233
        %v2235 = vmul.f32 %v2131, 1.442695
        %v2236 = vpow.pop %v2235
        %v2237 = vmul.f32 %v2132, 1.442695
        %v2238 = vpow.pop %v2237
        %v2239 = vmul.f32 %v2133, 1.442695
        %v2240 = vpow.pop %v2239
        %v2241 = vmul.f32 %v2134, 1.442695
        %v2242 = vpow.pop %v2241
        %v2243 = vmul.f32 %v2135, 1.442695
        %v2244 = vpow.pop %v2243
        %v2245 = vmul.f32 %v2136, 1.442695
        %v2246 = vpow.pop %v2245
        %v2247 = vmul.f32 %v2137, 1.442695
        %v2248 = vpow.pop %v2247
        %v2249 = vmul.f32 %v2138, 1.442695
        %v2250 = vpow.pop %v2249
        %v2251 = vmul.f32 %v2139, 1.442695
        %v2252 = vpow.pop %v2251
        %v2253 = vmul.f32 %v2140, 1.442695
        %v2254 = vpow.pop %v2253
        %v2255 = vmul.f32 %v2141, 1.442695
        %v2256 = vpow.pop %v2255
        %v2257 = vmul.f32 %v2142, 1.442695
        %v2258 = vpow.pop %v2257
        %v2259 = vmul.f32 %v2143, 1.442695
        %v2260 = vpow.pop %v2259
        %v2261 = vmul.f32 %v2144, 1.442695
        %v2262 = vpow.pop %v2261
        %v2263 = vmul.f32 %v2145, 1.442695
        %v2264 = vpow.pop %v2263
        %v2265 = vmul.f32 %v2146, 1.442695
        %v2266 = vpow.pop %v2265
        %v2267 = vmul.f32 %v2147, 1.442695
        %v2268 = vpow.pop %v2267
        %v2269 = vmul.f32 %v2148, 1.442695
        %v2270 = vpow.pop %v2269
        %v2271 = vmul.f32 %v2149, 1.442695
        %v2272 = vpow.pop %v2271
        %v2273 = vmul.f32 %v2150, 1.442695
        %v2274 = vpow.pop %v2273
        %v2275 = vmul.f32 %v2151, 1.442695
        %v2276 = vpow.pop %v2275
        %v2277 = vmul.f32 %v2152, 1.442695
        %v2278 = vpow.pop %v2277
        %v2279 = vmul.f32 %v2153, 1.442695
        %v2280 = vpow.pop %v2279
        %v2281 = vmul.f32 %v2154, 1.442695
        %v2282 = vpow.pop %v2281
        %v2283 = vmul.f32 %v887, %v2156
        %v2284 = vmul.f32 %v889, %v2158
        %v2285 = vmul.f32 %v891, %v2160
        %v2286 = vmul.f32 %v893, %v2162
        %v2287 = vmul.f32 %v895, %v2164
        %v2288 = vmul.f32 %v897, %v2166
        %v2289 = vmul.f32 %v899, %v2168
        %v2290 = vmul.f32 %v901, %v2170
        %v2291 = vmul.f32 %v903, %v2172
        %v2292 = vmul.f32 %v905, %v2174
        %v2293 = vmul.f32 %v907, %v2176
        %v2294 = vmul.f32 %v909, %v2178
        %v2295 = vmul.f32 %v911, %v2180
        %v2296 = vmul.f32 %v913, %v2182
        %v2297 = vmul.f32 %v915, %v2184
        %v2298 = vmul.f32 %v917, %v2186
        %v2299 = vmul.f32 %v919, %v2188
        %v2300 = vmul.f32 %v921, %v2190
        %v2301 = vmul.f32 %v923, %v2192
        %v2302 = vmul.f32 %v925, %v2194
        %v2303 = vmul.f32 %v927, %v2196
        %v2304 = vmul.f32 %v929, %v2198
        %v2305 = vmul.f32 %v931, %v2200
        %v2306 = vmul.f32 %v933, %v2202
        %v2307 = vmul.f32 %v935, %v2204
        %v2308 = vmul.f32 %v937, %v2206
        %v2309 = vmul.f32 %v939, %v2208
        %v2310 = vmul.f32 %v941, %v2210
        %v2311 = vmul.f32 %v943, %v2212
        %v2312 = vmul.f32 %v945, %v2214
        %v2313 = vmul.f32 %v947, %v2216
        %v2314 = vmul.f32 %v949, %v2218
        %v2315 = vmul.f32 %v951, %v2220
        %v2316 = vmul.f32 %v953, %v2222
        %v2317 = vmul.f32 %v955, %v2224
        %v2318 = vmul.f32 %v957, %v2226
        %v2319 = vmul.f32 %v959, %v2228
        %v2320 = vmul.f32 %v961, %v2230
        %v2321 = vmul.f32 %v963, %v2232
        %v2322 = vmul.f32 %v965, %v2234
        %v2323 = vmul.f32 %v967, %v2236
        %v2324 = vmul.f32 %v969, %v2238
        %v2325 = vmul.f32 %v971, %v2240
        %v2326 = vmul.f32 %v973, %v2242
        %v2327 = vmul.f32 %v975, %v2244
        %v2328 = vmul.f32 %v977, %v2246
        %v2329 = vmul.f32 %v979, %v2248
        %v2330 = vmul.f32 %v981, %v2250
        %v2331 = vmul.f32 %v983, %v2252
        %v2332 = vmul.f32 %v985, %v2254
        %v2333 = vmul.f32 %v987, %v2256
        %v2334 = vmul.f32 %v989, %v2258
        %v2335 = vmul.f32 %v991, %v2260
        %v2336 = vmul.f32 %v993, %v2262
        %v2337 = vmul.f32 %v995, %v2264
        %v2338 = vmul.f32 %v997, %v2266
        %v2339 = vmul.f32 %v999, %v2268
        %v2340 = vmul.f32 %v1001, %v2270
        %v2341 = vmul.f32 %v1003, %v2272
        %v2342 = vmul.f32 %v1005, %v2274
        %v2343 = vmul.f32 %v1007, %v2276
        %v2344 = vmul.f32 %v1009, %v2278
        %v2345 = vmul.f32 %v1011, %v2280
        %v2346 = vmul.f32 %v1013, %v2282
        %v2347 = vadd.f32 %v2283, %v1775
        %v2348 = vadd.f32 %v2284, %v1779
        %v2349 = vadd.f32 %v2285, %v1785
        %v2350 = vadd.f32 %v2286, %v1789
        %v2351 = vadd.f32 %v2287, %v1795
        %v2352 = vadd.f32 %v2288, %v1799
        %v2353 = vadd.f32 %v2289, %v1805
        %v2354 = vadd.f32 %v2290, %v1809
        %v2355 = vadd.f32 %v2291, %v1815
        %v2356 = vadd.f32 %v2292, %v1819
        %v2357 = vadd.f32 %v2293, %v1825
        %v2358 = vadd.f32 %v2294, %v1829
        %v2359 = vadd.f32 %v2295, %v1835
        %v2360 = vadd.f32 %v2296, %v1839
        %v2361 = vadd.f32 %v2297, %v1845
        %v2362 = vadd.f32 %v2298, %v1849
        %v2363 = vadd.f32 %v2299, %v1855
        %v2364 = vadd.f32 %v2300, %v1859
        %v2365 = vadd.f32 %v2301, %v1865
        %v2366 = vadd.f32 %v2302, %v1869
        %v2367 = vadd.f32 %v2303, %v1875
        %v2368 = vadd.f32 %v2304, %v1879
        %v2369 = vadd.f32 %v2305, %v1885
        %v2370 = vadd.f32 %v2306, %v1889
        %v2371 = vadd.f32 %v2307, %v1895
        %v2372 = vadd.f32 %v2308, %v1899
        %v2373 = vadd.f32 %v2309, %v1905
        %v2374 = vadd.f32 %v2310, %v1909
        %v2375 = vadd.f32 %v2311, %v1915
        %v2376 = vadd.f32 %v2312, %v1919
        %v2377 = vadd.f32 %v2313, %v1925
        %v2378 = vadd.f32 %v2314, %v1929
        %v2379 = vadd.f32 %v2315, %v1935
        %v2380 = vadd.f32 %v2316, %v1939
        %v2381 = vadd.f32 %v2317, %v1945
        %v2382 = vadd.f32 %v2318, %v1949
        %v2383 = vadd.f32 %v2319, %v1955
        %v2384 = vadd.f32 %v2320, %v1959
        %v2385 = vadd.f32 %v2321, %v1965
        %v2386 = vadd.f32 %v2322, %v1969
        %v2387 = vadd.f32 %v2323, %v1975
        %v2388 = vadd.f32 %v2324, %v1979
        %v2389 = vadd.f32 %v2325, %v1985
        %v2390 = vadd.f32 %v2326, %v1989
        %v2391 = vadd.f32 %v2327, %v1995
        %v2392 = vadd.f32 %v2328, %v1999
        %v2393 = vadd.f32 %v2329, %v2005
        %v2394 = vadd.f32 %v2330, %v2009
        %v2395 = vadd.f32 %v2331, %v2015
        %v2396 = vadd.f32 %v2332, %v2019
        %v2397 = vadd.f32 %v2333, %v2025
        %v2398 = vadd.f32 %v2334, %v2029
        %v2399 = vadd.f32 %v2335, %v2035
        %v2400 = vadd.f32 %v2336, %v2039
        %v2401 = vadd.f32 %v2337, %v2045
        %v2402 = vadd.f32 %v2338, %v2049
        %v2403 = vadd.f32 %v2339, %v2055
        %v2404 = vadd.f32 %v2340, %v2059
        %v2405 = vadd.f32 %v2341, %v2065
        %v2406 = vadd.f32 %v2342, %v2069
        %v2407 = vadd.f32 %v2343, %v2075
        %v2408 = vadd.f32 %v2344, %v2079
        %v2409 = vadd.f32 %v2345, %v2085
        %v2410 = vadd.f32 %v2346, %v2089
        %2411 = vst [vmem:[%s586] sm:$0xff] %v886
        %2412 = vst [vmem:[%s586 + $0x10] sm:$0xff] %v888
        %2413 = vst [vmem:[%s586 + $0x20] sm:$0xff] %v890
        %2414 = vst [vmem:[%s586 + $0x30] sm:$0xff] %v892
        %2415 = vst [vmem:[%s586 + $0x40] sm:$0xff] %v894
        %2416 = vst [vmem:[%s586 + $0x50] sm:$0xff] %v896
        %2417 = vst [vmem:[%s586 + $0x60] sm:$0xff] %v898
        %2418 = vst [vmem:[%s586 + $0x70] sm:$0xff] %v900
        %2419 = vst [vmem:[%s586 + $0x80] sm:$0xff] %v902
        %2420 = vst [vmem:[%s586 + $0x90] sm:$0xff] %v904
        %2421 = vst [vmem:[%s586 + $0xa0] sm:$0xff] %v906
        %2422 = vst [vmem:[%s586 + $0xb0] sm:$0xff] %v908
        %2423 = vst [vmem:[%s586 + $0xc0] sm:$0xff] %v910
        %2424 = vst [vmem:[%s586 + $0xd0] sm:$0xff] %v912
        %2425 = vst [vmem:[%s586 + $0xe0] sm:$0xff] %v914
        %2426 = vst [vmem:[%s586 + $0xf0] sm:$0xff] %v916
        %2427 = vst [vmem:[%s586 + $0x100] sm:$0xff] %v918
        %2428 = vst [vmem:[%s586 + $0x110] sm:$0xff] %v920
        %2429 = vst [vmem:[%s586 + $0x120] sm:$0xff] %v922
        %2430 = vst [vmem:[%s586 + $0x130] sm:$0xff] %v924
        %2431 = vst [vmem:[%s586 + $0x140] sm:$0xff] %v926
        %2432 = vst [vmem:[%s586 + $0x150] sm:$0xff] %v928
        %2433 = vst [vmem:[%s586 + $0x160] sm:$0xff] %v930
        %2434 = vst [vmem:[%s586 + $0x170] sm:$0xff] %v932
        %2435 = vst [vmem:[%s586 + $0x180] sm:$0xff] %v934
        %2436 = vst [vmem:[%s586 + $0x190] sm:$0xff] %v936
        %2437 = vst [vmem:[%s586 + $0x1a0] sm:$0xff] %v938
        %2438 = vst [vmem:[%s586 + $0x1b0] sm:$0xff] %v940
        %2439 = vst [vmem:[%s586 + $0x1c0] sm:$0xff] %v942
        %2440 = vst [vmem:[%s586 + $0x1d0] sm:$0xff] %v944
        %2441 = vst [vmem:[%s586 + $0x1e0] sm:$0xff] %v946
        %2442 = vst [vmem:[%s586 + $0x1f0] sm:$0xff] %v948
        %2443 = vst [vmem:[%s586 + $0x200] sm:$0xff] %v950
        %2444 = vst [vmem:[%s586 + $0x210] sm:$0xff] %v952
        %2445 = vst [vmem:[%s586 + $0x220] sm:$0xff] %v954
        %2446 = vst [vmem:[%s586 + $0x230] sm:$0xff] %v956
        %2447 = vst [vmem:[%s586 + $0x240] sm:$0xff] %v958
        %2448 = vst [vmem:[%s586 + $0x250] sm:$0xff] %v960
        %2449 = vst [vmem:[%s586 + $0x260] sm:$0xff] %v962
        %2450 = vst [vmem:[%s586 + $0x270] sm:$0xff] %v964
        %2451 = vst [vmem:[%s586 + $0x280] sm:$0xff] %v966
        %2452 = vst [vmem:[%s586 + $0x290] sm:$0xff] %v968
        %2453 = vst [vmem:[%s586 + $0x2a0] sm:$0xff] %v970
        %2454 = vst [vmem:[%s586 + $0x2b0] sm:$0xff] %v972
        %2455 = vst [vmem:[%s586 + $0x2c0] sm:$0xff] %v974
        %2456 = vst [vmem:[%s586 + $0x2d0] sm:$0xff] %v976
        %2457 = vst [vmem:[%s586 + $0x2e0] sm:$0xff] %v978
        %2458 = vst [vmem:[%s586 + $0x2f0] sm:$0xff] %v980
        %2459 = vst [vmem:[%s586 + $0x300] sm:$0xff] %v982
        %2460 = vst [vmem:[%s586 + $0x310] sm:$0xff] %v984
        %2461 = vst [vmem:[%s586 + $0x320] sm:$0xff] %v986
        %2462 = vst [vmem:[%s586 + $0x330] sm:$0xff] %v988
        %2463 = vst [vmem:[%s586 + $0x340] sm:$0xff] %v990
        %2464 = vst [vmem:[%s586 + $0x350] sm:$0xff] %v992
        %2465 = vst [vmem:[%s586 + $0x360] sm:$0xff] %v994
        %2466 = vst [vmem:[%s586 + $0x370] sm:$0xff] %v996
        %2467 = vst [vmem:[%s586 + $0x380] sm:$0xff] %v998
        %2468 = vst [vmem:[%s586 + $0x390] sm:$0xff] %v1000
        %2469 = vst [vmem:[%s586 + $0x3a0] sm:$0xff] %v1002
        %2470 = vst [vmem:[%s586 + $0x3b0] sm:$0xff] %v1004
        %2471 = vst [vmem:[%s586 + $0x3c0] sm:$0xff] %v1006
        %2472 = vst [vmem:[%s586 + $0x3d0] sm:$0xff] %v1008
        %2473 = vst [vmem:[%s586 + $0x3e0] sm:$0xff] %v1010
        %2474 = vst [vmem:[%s586 + $0x3f0] sm:$0xff] %v1012
        %2475 = vst [vmem:[%s586 + $0x8] sm:$0xff] %v2347
        %2476 = vst [vmem:[%s586 + $0x18] sm:$0xff] %v2348
        %2477 = vst [vmem:[%s586 + $0x28] sm:$0xff] %v2349
        %2478 = vst [vmem:[%s586 + $0x38] sm:$0xff] %v2350
        %2479 = vst [vmem:[%s586 + $0x48] sm:$0xff] %v2351
        %2480 = vst [vmem:[%s586 + $0x58] sm:$0xff] %v2352
        %2481 = vst [vmem:[%s586 + $0x68] sm:$0xff] %v2353
        %2482 = vst [vmem:[%s586 + $0x78] sm:$0xff] %v2354
        %2483 = vst [vmem:[%s586 + $0x88] sm:$0xff] %v2355
        %2484 = vst [vmem:[%s586 + $0x98] sm:$0xff] %v2356
        %2485 = vst [vmem:[%s586 + $0xa8] sm:$0xff] %v2357
        %2486 = vst [vmem:[%s586 + $0xb8] sm:$0xff] %v2358
        %2487 = vst [vmem:[%s586 + $0xc8] sm:$0xff] %v2359
        %2488 = vst [vmem:[%s586 + $0xd8] sm:$0xff] %v2360
        %2489 = vst [vmem:[%s586 + $0xe8] sm:$0xff] %v2361
        %2490 = vst [vmem:[%s586 + $0xf8] sm:$0xff] %v2362
        %2491 = vst [vmem:[%s586 + $0x108] sm:$0xff] %v2363
        %2492 = vst [vmem:[%s586 + $0x118] sm:$0xff] %v2364
        %2493 = vst [vmem:[%s586 + $0x128] sm:$0xff] %v2365
        %2494 = vst [vmem:[%s586 + $0x138] sm:$0xff] %v2366
        %2495 = vst [vmem:[%s586 + $0x148] sm:$0xff] %v2367
        %2496 = vst [vmem:[%s586 + $0x158] sm:$0xff] %v2368
        %2497 = vst [vmem:[%s586 + $0x168] sm:$0xff] %v2369
        %2498 = vst [vmem:[%s586 + $0x178] sm:$0xff] %v2370
        %2499 = vst [vmem:[%s586 + $0x188] sm:$0xff] %v2371
        %2500 = vst [vmem:[%s586 + $0x198] sm:$0xff] %v2372
        %2501 = vst [vmem:[%s586 + $0x1a8] sm:$0xff] %v2373
        %2502 = vst [vmem:[%s586 + $0x1b8] sm:$0xff] %v2374
        %2503 = vst [vmem:[%s586 + $0x1c8] sm:$0xff] %v2375
        %2504 = vst [vmem:[%s586 + $0x1d8] sm:$0xff] %v2376
        %2505 = vst [vmem:[%s586 + $0x1e8] sm:$0xff] %v2377
        %2506 = vst [vmem:[%s586 + $0x1f8] sm:$0xff] %v2378
        %2507 = vst [vmem:[%s586 + $0x208] sm:$0xff] %v2379
        %2508 = vst [vmem:[%s586 + $0x218] sm:$0xff] %v2380
        %2509 = vst [vmem:[%s586 + $0x228] sm:$0xff] %v2381
        %2510 = vst [vmem:[%s586 + $0x238] sm:$0xff] %v2382
        %2511 = vst [vmem:[%s586 + $0x248] sm:$0xff] %v2383
        %2512 = vst [vmem:[%s586 + $0x258] sm:$0xff] %v2384
        %2513 = vst [vmem:[%s586 + $0x268] sm:$0xff] %v2385
        %2514 = vst [vmem:[%s586 + $0x278] sm:$0xff] %v2386
        %2515 = vst [vmem:[%s586 + $0x288] sm:$0xff] %v2387
        %2516 = vst [vmem:[%s586 + $0x298] sm:$0xff] %v2388
        %2517 = vst [vmem:[%s586 + $0x2a8] sm:$0xff] %v2389
        %2518 = vst [vmem:[%s586 + $0x2b8] sm:$0xff] %v2390
        %2519 = vst [vmem:[%s586 + $0x2c8] sm:$0xff] %v2391
        %2520 = vst [vmem:[%s586 + $0x2d8] sm:$0xff] %v2392
        %2521 = vst [vmem:[%s586 + $0x2e8] sm:$0xff] %v2393
        %2522 = vst [vmem:[%s586 + $0x2f8] sm:$0xff] %v2394
        %2523 = vst [vmem:[%s586 + $0x308] sm:$0xff] %v2395
        %2524 = vst [vmem:[%s586 + $0x318] sm:$0xff] %v2396
        %2525 = vst [vmem:[%s586 + $0x328] sm:$0xff] %v2397
        %2526 = vst [vmem:[%s586 + $0x338] sm:$0xff] %v2398
        %2527 = vst [vmem:[%s586 + $0x348] sm:$0xff] %v2399
        %2528 = vst [vmem:[%s586 + $0x358] sm:$0xff] %v2400
        %2529 = vst [vmem:[%s586 + $0x368] sm:$0xff] %v2401
        %2530 = vst [vmem:[%s586 + $0x378] sm:$0xff] %v2402
        %2531 = vst [vmem:[%s586 + $0x388] sm:$0xff] %v2403
        %2532 = vst [vmem:[%s586 + $0x398] sm:$0xff] %v2404
        %2533 = vst [vmem:[%s586 + $0x3a8] sm:$0xff] %v2405
        %2534 = vst [vmem:[%s586 + $0x3b8] sm:$0xff] %v2406
        %2535 = vst [vmem:[%s586 + $0x3c8] sm:$0xff] %v2407
        %2536 = vst [vmem:[%s586 + $0x3d8] sm:$0xff] %v2408
        %2537 = vst [vmem:[%s586 + $0x3e8] sm:$0xff] %v2409
        %2538 = vst [vmem:[%s586 + $0x3f8] sm:$0xff] %v2410
        %2539 = vadd.xlane.f32.xlu0 %v2091
        %v2540 = vpop.xlane.xlu0 %2539
        %2541 = vadd.xlane.f32.xlu0 %v2092
        %v2542 = vpop.xlane.xlu0 %2541
        %2543 = vadd.xlane.f32.xlu0 %v2093
        %v2544 = vpop.xlane.xlu0 %2543
        %2545 = vadd.xlane.f32.xlu0 %v2094
        %v2546 = vpop.xlane.xlu0 %2545
        %2547 = vadd.xlane.f32.xlu0 %v2095
        %v2548 = vpop.xlane.xlu0 %2547
        %2549 = vadd.xlane.f32.xlu0 %v2096
        %v2550 = vpop.xlane.xlu0 %2549
        %2551 = vadd.xlane.f32.xlu0 %v2097
        %v2552 = vpop.xlane.xlu0 %2551
        %2553 = vadd.xlane.f32.xlu0 %v2098
        %v2554 = vpop.xlane.xlu0 %2553
        %2555 = vadd.xlane.f32.xlu0 %v2099
        %v2556 = vpop.xlane.xlu0 %2555
        %2557 = vadd.xlane.f32.xlu0 %v2100
        %v2558 = vpop.xlane.xlu0 %2557
        %2559 = vadd.xlane.f32.xlu0 %v2101
        %v2560 = vpop.xlane.xlu0 %2559
        %2561 = vadd.xlane.f32.xlu0 %v2102
        %v2562 = vpop.xlane.xlu0 %2561
        %2563 = vadd.xlane.f32.xlu0 %v2103
        %v2564 = vpop.xlane.xlu0 %2563
        %2565 = vadd.xlane.f32.xlu0 %v2104
        %v2566 = vpop.xlane.xlu0 %2565
        %2567 = vadd.xlane.f32.xlu0 %v2105
        %v2568 = vpop.xlane.xlu0 %2567
        %2569 = vadd.xlane.f32.xlu0 %v2106
        %v2570 = vpop.xlane.xlu0 %2569
        %2571 = vadd.xlane.f32.xlu0 %v2107
        %v2572 = vpop.xlane.xlu0 %2571
        %2573 = vadd.xlane.f32.xlu0 %v2108
        %v2574 = vpop.xlane.xlu0 %2573
        %2575 = vadd.xlane.f32.xlu0 %v2109
        %v2576 = vpop.xlane.xlu0 %2575
        %2577 = vadd.xlane.f32.xlu0 %v2110
        %v2578 = vpop.xlane.xlu0 %2577
        %2579 = vadd.xlane.f32.xlu0 %v2111
        %v2580 = vpop.xlane.xlu0 %2579
        %2581 = vadd.xlane.f32.xlu0 %v2112
        %v2582 = vpop.xlane.xlu0 %2581
        %2583 = vadd.xlane.f32.xlu0 %v2113
        %v2584 = vpop.xlane.xlu0 %2583
        %2585 = vadd.xlane.f32.xlu0 %v2114
        %v2586 = vpop.xlane.xlu0 %2585
        %2587 = vadd.xlane.f32.xlu0 %v2115
        %v2588 = vpop.xlane.xlu0 %2587
        %2589 = vadd.xlane.f32.xlu0 %v2116
        %v2590 = vpop.xlane.xlu0 %2589
        %2591 = vadd.xlane.f32.xlu0 %v2117
        %v2592 = vpop.xlane.xlu0 %2591
        %2593 = vadd.xlane.f32.xlu0 %v2118
        %v2594 = vpop.xlane.xlu0 %2593
        %2595 = vadd.xlane.f32.xlu0 %v2119
        %v2596 = vpop.xlane.xlu0 %2595
        %2597 = vadd.xlane.f32.xlu0 %v2120
        %v2598 = vpop.xlane.xlu0 %2597
        %2599 = vadd.xlane.f32.xlu0 %v2121
        %v2600 = vpop.xlane.xlu0 %2599
        %2601 = vadd.xlane.f32.xlu0 %v2122
        %v2602 = vpop.xlane.xlu0 %2601
        %2603 = vadd.xlane.f32.xlu0 %v2123
        %v2604 = vpop.xlane.xlu0 %2603
        %2605 = vadd.xlane.f32.xlu0 %v2124
        %v2606 = vpop.xlane.xlu0 %2605
        %2607 = vadd.xlane.f32.xlu0 %v2125
        %v2608 = vpop.xlane.xlu0 %2607
        %2609 = vadd.xlane.f32.xlu0 %v2126
        %v2610 = vpop.xlane.xlu0 %2609
        %2611 = vadd.xlane.f32.xlu0 %v2127
        %v2612 = vpop.xlane.xlu0 %2611
        %2613 = vadd.xlane.f32.xlu0 %v2128
        %v2614 = vpop.xlane.xlu0 %2613
        %2615 = vadd.xlane.f32.xlu0 %v2129
        %v2616 = vpop.xlane.xlu0 %2615
        %2617 = vadd.xlane.f32.xlu0 %v2130
        %v2618 = vpop.xlane.xlu0 %2617
        %2619 = vadd.xlane.f32.xlu0 %v2131
        %v2620 = vpop.xlane.xlu0 %2619
        %2621 = vadd.xlane.f32.xlu0 %v2132
        %v2622 = vpop.xlane.xlu0 %2621
        %2623 = vadd.xlane.f32.xlu0 %v2133
        %v2624 = vpop.xlane.xlu0 %2623
        %2625 = vadd.xlane.f32.xlu0 %v2134
        %v2626 = vpop.xlane.xlu0 %2625
        %2627 = vadd.xlane.f32.xlu0 %v2135
        %v2628 = vpop.xlane.xlu0 %2627
        %2629 = vadd.xlane.f32.xlu0 %v2136
        %v2630 = vpop.xlane.xlu0 %2629
        %2631 = vadd.xlane.f32.xlu0 %v2137
        %v2632 = vpop.xlane.xlu0 %2631
        %2633 = vadd.xlane.f32.xlu0 %v2138
        %v2634 = vpop.xlane.xlu0 %2633
        %2635 = vadd.xlane.f32.xlu0 %v2139
        %v2636 = vpop.xlane.xlu0 %2635
        %2637 = vadd.xlane.f32.xlu0 %v2140
        %v2638 = vpop.xlane.xlu0 %2637
        %2639 = vadd.xlane.f32.xlu0 %v2141
        %v2640 = vpop.xlane.xlu0 %2639
        %2641 = vadd.xlane.f32.xlu0 %v2142
        %v2642 = vpop.xlane.xlu0 %2641
        %2643 = vadd.xlane.f32.xlu0 %v2143
        %v2644 = vpop.xlane.xlu0 %2643
        %2645 = vadd.xlane.f32.xlu0 %v2144
        %v2646 = vpop.xlane.xlu0 %2645
        %2647 = vadd.xlane.f32.xlu0 %v2145
        %v2648 = vpop.xlane.xlu0 %2647
        %2649 = vadd.xlane.f32.xlu0 %v2146
        %v2650 = vpop.xlane.xlu0 %2649
        %2651 = vadd.xlane.f32.xlu0 %v2147
        %v2652 = vpop.xlane.xlu0 %2651
        %2653 = vadd.xlane.f32.xlu0 %v2148
        %v2654 = vpop.xlane.xlu0 %2653
        %2655 = vadd.xlane.f32.xlu0 %v2149
        %v2656 = vpop.xlane.xlu0 %2655
        %2657 = vadd.xlane.f32.xlu0 %v2150
        %v2658 = vpop.xlane.xlu0 %2657
        %2659 = vadd.xlane.f32.xlu0 %v2151
        %v2660 = vpop.xlane.xlu0 %2659
        %2661 = vadd.xlane.f32.xlu0 %v2152
        %v2662 = vpop.xlane.xlu0 %2661
        %2663 = vadd.xlane.f32.xlu0 %v2153
        %v2664 = vpop.xlane.xlu0 %2663
        %2665 = vadd.xlane.f32.xlu0 %v2154
        %v2666 = vpop.xlane.xlu0 %2665
        %v2667 = vpack.c.bf16 %v2348, %v2347
        %v2668 = vpack.c.bf16 %v2350, %v2349
        %v2669 = vpack.c.bf16 %v2352, %v2351
        %v2670 = vpack.c.bf16 %v2354, %v2353
        %v2671 = vpack.c.bf16 %v2356, %v2355
        %v2672 = vpack.c.bf16 %v2358, %v2357
        %v2673 = vpack.c.bf16 %v2360, %v2359
        %v2674 = vpack.c.bf16 %v2362, %v2361
        %v2675 = vpack.c.bf16 %v2364, %v2363
        %v2676 = vpack.c.bf16 %v2366, %v2365
        %v2677 = vpack.c.bf16 %v2368, %v2367
        %v2678 = vpack.c.bf16 %v2370, %v2369
        %v2679 = vpack.c.bf16 %v2372, %v2371
        %v2680 = vpack.c.bf16 %v2374, %v2373
        %v2681 = vpack.c.bf16 %v2376, %v2375
        %v2682 = vpack.c.bf16 %v2378, %v2377
        %v2683 = vpack.c.bf16 %v2380, %v2379
        %v2684 = vpack.c.bf16 %v2382, %v2381
        %v2685 = vpack.c.bf16 %v2384, %v2383
        %v2686 = vpack.c.bf16 %v2386, %v2385
        %v2687 = vpack.c.bf16 %v2388, %v2387
        %v2688 = vpack.c.bf16 %v2390, %v2389
        %v2689 = vpack.c.bf16 %v2392, %v2391
        %v2690 = vpack.c.bf16 %v2394, %v2393
        %v2691 = vpack.c.bf16 %v2396, %v2395
        %v2692 = vpack.c.bf16 %v2398, %v2397
        %v2693 = vpack.c.bf16 %v2400, %v2399
        %v2694 = vpack.c.bf16 %v2402, %v2401
        %v2695 = vpack.c.bf16 %v2404, %v2403
        %v2696 = vpack.c.bf16 %v2406, %v2405
        %v2697 = vpack.c.bf16 %v2408, %v2407
        %v2698 = vpack.c.bf16 %v2410, %v2409
        %v2699 = vld [vmem:[#allocation9] sm:$0xf]
        %v2700 = vld [vmem:[#allocation9 + $0x4] sm:$0xf]
        %v2701 = vld [vmem:[#allocation9 + $0x8] sm:$0xf]
        %v2702 = vld [vmem:[#allocation9 + $0xc] sm:$0xf]
        %v2703 = vld [vmem:[#allocation9 + $0x10] sm:$0xf]
        %v2704 = vld [vmem:[#allocation9 + $0x14] sm:$0xf]
        %v2705 = vld [vmem:[#allocation9 + $0x18] sm:$0xf]
        %v2706 = vld [vmem:[#allocation9 + $0x1c] sm:$0xf]
        %v2707 = vld [vmem:[#allocation9 + $0x20] sm:$0xf]
        %v2708 = vld [vmem:[#allocation9 + $0x24] sm:$0xf]
        %v2709 = vld [vmem:[#allocation9 + $0x28] sm:$0xf]
        %v2710 = vld [vmem:[#allocation9 + $0x2c] sm:$0xf]
        %v2711 = vld [vmem:[#allocation9 + $0x30] sm:$0xf]
        %v2712 = vld [vmem:[#allocation9 + $0x34] sm:$0xf]
        %v2713 = vld [vmem:[#allocation9 + $0x38] sm:$0xf]
        %v2714 = vld [vmem:[#allocation9 + $0x3c] sm:$0xf]
        %v2715 = vld [vmem:[%s9] sm:$0x1]
        %v2717 = vlaneseq
        %v2718 = vshrl.u32 %v2717, 7
        %v2719 = vsub.s32 0, %v2718
        %v2720 = vrot.slane %v2715, %v2719
        %v2738 = vunpack.c.l.b16 %v2699
        %v2739 = vunpack.c.l.b16 %v2700
        %v2740 = vunpack.c.l.b16 %v2701
        %v2741 = vunpack.c.l.b16 %v2702
        %v2742 = vunpack.c.l.b16 %v2703
        %v2743 = vunpack.c.l.b16 %v2704
        %v2744 = vunpack.c.l.b16 %v2705
        %v2745 = vunpack.c.l.b16 %v2706
        %v2746 = vunpack.c.l.b16 %v2707
        %v2747 = vunpack.c.l.b16 %v2708
        %v2748 = vunpack.c.l.b16 %v2709
        %v2749 = vunpack.c.l.b16 %v2710
        %v2750 = vunpack.c.l.b16 %v2711
        %v2751 = vunpack.c.l.b16 %v2712
        %v2752 = vunpack.c.l.b16 %v2713
        %v2753 = vunpack.c.l.b16 %v2714
        %v2754 = vpack.c.b16 %v2739, %v2738
        %v2755 = vpack.c.b16 %v2741, %v2740
        %v2756 = vpack.c.b16 %v2743, %v2742
        %v2757 = vpack.c.b16 %v2745, %v2744
        %v2758 = vpack.c.b16 %v2747, %v2746
        %v2759 = vpack.c.b16 %v2749, %v2748
        %v2760 = vpack.c.b16 %v2751, %v2750
        %v2761 = vpack.c.b16 %v2753, %v2752
        %2770 = vmatprep.subr.bf16.mxu0 0
        %2771 = vmatpush1.bf16.msra.mxu0 %v2754
        %2772 = vmatprep.subr.bf16.mxu0 0
        %2773 = vmatpush1.bf16.msra.mxu0 %v2755
        %2774 = vmatprep.subr.bf16.mxu0 0
        %2775 = vmatpush1.bf16.msra.mxu0 %v2756
        %2776 = vmatprep.subr.bf16.mxu0 0
        %2777 = vmatpush1.bf16.msra.mxu0 %v2757
        %2778 = vmatprep.subr.bf16.mxu0 0
        %2779 = vmatpush1.bf16.msra.mxu0 %v2758
        %2780 = vmatprep.subr.bf16.mxu0 0
        %2781 = vmatpush1.bf16.msra.mxu0 %v2759
        %2782 = vmatprep.subr.bf16.mxu0 0
        %2783 = vmatpush1.bf16.msra.mxu0 %v2760
        %2784 = vmatprep.subr.bf16.mxu0 0
        %2785 = vmatpush1.bf16.msra.mxu0 %v2761
        %2786 = vmatprep.subr.bf16.mxu0 0
        %2787 = vmatpush1.bf16.msra.mxu0 0
        %2788 = vmatprep.subr.bf16.mxu0 0
        %2789 = vmatpush1.bf16.msra.mxu0 0
        %2790 = vmatprep.subr.bf16.mxu0 0
        %2791 = vmatpush1.bf16.msra.mxu0 0
        %2792 = vmatprep.subr.bf16.mxu0 0
        %2793 = vmatpush1.bf16.msra.mxu0 0
        %2794 = vmatprep.subr.bf16.mxu0 0
        %2795 = vmatpush1.bf16.msra.mxu0 0
        %2796 = vmatprep.subr.bf16.mxu0 0
        %2797 = vmatpush1.bf16.msra.mxu0 0
        %2798 = vmatprep.subr.bf16.mxu0 0
        %2799 = vmatpush1.bf16.msra.mxu0 0
        %2800 = vmatprep.subr.bf16.mxu0 0
        %2801 = vmatpush1.bf16.msra.mxu0 0
        %2802 = vmatprep.mubr.bf16.mxu0 0
        %2803 = vmatmul.mubr.bf16.gmra.mrb[0].mxu0 %v2667
        %v2804 = vpop.f32.mrb[0].mxu0
        %v2805 = vadd.f32 %v2720, %v2804
        %v2806 = vpop.f32.mrb[0].mxu0
        %v2807 = vpop.f32.mrb[0].mxu0
        %v2808 = vadd.f32 %v2720, %v2807
        %v2809 = vpop.f32.mrb[0].mxu0
        %2810 = vmatprep.mubr.bf16.mxu0 0
        %2811 = vmatmul.mubr.bf16.gmra.mrb[0].mxu0 %v2668
        %v2812 = vpop.f32.mrb[0].mxu0
        %v2813 = vadd.f32 %v2720, %v2812
        %v2814 = vpop.f32.mrb[0].mxu0
        %v2815 = vpop.f32.mrb[0].mxu0
        %v2816 = vadd.f32 %v2720, %v2815
        %v2817 = vpop.f32.mrb[0].mxu0
        %2818 = vmatprep.mubr.bf16.mxu0 0
        %2819 = vmatmul.mubr.bf16.gmra.mrb[0].mxu0 %v2669
        %v2820 = vpop.f32.mrb[0].mxu0
        %v2821 = vadd.f32 %v2720, %v2820
        %v2822 = vpop.f32.mrb[0].mxu0
        %v2823 = vpop.f32.mrb[0].mxu0
        %v2824 = vadd.f32 %v2720, %v2823
        %v2825 = vpop.f32.mrb[0].mxu0
        %2826 = vmatprep.mubr.bf16.mxu0 0
        %2827 = vmatmul.mubr.bf16.gmra.mrb[0].mxu0 %v2670
        %v2828 = vpop.f32.mrb[0].mxu0
        %v2829 = vadd.f32 %v2720, %v2828
        %v2830 = vpop.f32.mrb[0].mxu0
        %v2831 = vpop.f32.mrb[0].mxu0
        %v2832 = vadd.f32 %v2720, %v2831
        %v2833 = vpop.f32.mrb[0].mxu0
        %2834 = vmatprep.mubr.bf16.mxu0 0
        %2835 = vmatmul.mubr.bf16.gmra.mrb[0].mxu0 %v2671
        %v2836 = vpop.f32.mrb[0].mxu0
        %v2837 = vadd.f32 %v2720, %v2836
        %v2838 = vpop.f32.mrb[0].mxu0
        %v2839 = vpop.f32.mrb[0].mxu0
        %v2840 = vadd.f32 %v2720, %v2839
        %v2841 = vpop.f32.mrb[0].mxu0
        %2842 = vmatprep.mubr.bf16.mxu0 0
        %2843 = vmatmul.mubr.bf16.gmra.mrb[0].mxu0 %v2672
        %v2844 = vpop.f32.mrb[0].mxu0
        %v2845 = vadd.f32 %v2720, %v2844
        %v2846 = vpop.f32.mrb[0].mxu0
        %v2847 = vpop.f32.mrb[0].mxu0
        %v2848 = vadd.f32 %v2720, %v2847
        %v2849 = vpop.f32.mrb[0].mxu0
        %2850 = vmatprep.mubr.bf16.mxu0 0
        %2851 = vmatmul.mubr.bf16.gmra.mrb[0].mxu0 %v2673
        %v2852 = vpop.f32.mrb[0].mxu0
        %v2853 = vadd.f32 %v2720, %v2852
        %v2854 = vpop.f32.mrb[0].mxu0
        %v2855 = vpop.f32.mrb[0].mxu0
        %v2856 = vadd.f32 %v2720, %v2855
        %v2857 = vpop.f32.mrb[0].mxu0
        %2858 = vmatprep.mubr.bf16.mxu0 0
        %2859 = vmatmul.mubr.bf16.gmra.mrb[0].mxu0 %v2674
        %v2860 = vpop.f32.mrb[0].mxu0
        %v2861 = vadd.f32 %v2720, %v2860
        %v2862 = vpop.f32.mrb[0].mxu0
        %v2863 = vpop.f32.mrb[0].mxu0
        %v2864 = vadd.f32 %v2720, %v2863
        %v2865 = vpop.f32.mrb[0].mxu0
        %2866 = vmatprep.mubr.bf16.mxu0 0
        %2867 = vmatmul.mubr.bf16.gmra.mrb[0].mxu0 %v2675
        %v2868 = vpop.f32.mrb[0].mxu0
        %v2869 = vadd.f32 %v2720, %v2868
        %v2870 = vpop.f32.mrb[0].mxu0
        %v2871 = vpop.f32.mrb[0].mxu0
        %v2872 = vadd.f32 %v2720, %v2871
        %v2873 = vpop.f32.mrb[0].mxu0
        %2874 = vmatprep.mubr.bf16.mxu0 0
        %2875 = vmatmul.mubr.bf16.gmra.mrb[0].mxu0 %v2676
        %v2876 = vpop.f32.mrb[0].mxu0
        %v2877 = vadd.f32 %v2720, %v2876
        %v2878 = vpop.f32.mrb[0].mxu0
        %v2879 = vpop.f32.mrb[0].mxu0
        %v2880 = vadd.f32 %v2720, %v2879
        %v2881 = vpop.f32.mrb[0].mxu0
        %2882 = vmatprep.mubr.bf16.mxu0 0
        %2883 = vmatmul.mubr.bf16.gmra.mrb[0].mxu0 %v2677
        %v2884 = vpop.f32.mrb[0].mxu0
        %v2885 = vadd.f32 %v2720, %v2884
        %v2886 = vpop.f32.mrb[0].mxu0
        %v2887 = vpop.f32.mrb[0].mxu0
        %v2888 = vadd.f32 %v2720, %v2887
        %v2889 = vpop.f32.mrb[0].mxu0
        %2890 = vmatprep.mubr.bf16.mxu0 0
        %2891 = vmatmul.mubr.bf16.gmra.mrb[0].mxu0 %v2678
        %v2892 = vpop.f32.mrb[0].mxu0
        %v2893 = vadd.f32 %v2720, %v2892
        %v2894 = vpop.f32.mrb[0].mxu0
        %v2895 = vpop.f32.mrb[0].mxu0
        %v2896 = vadd.f32 %v2720, %v2895
        %v2897 = vpop.f32.mrb[0].mxu0
        %2898 = vmatprep.mubr.bf16.mxu0 0
        %2899 = vmatmul.mubr.bf16.gmra.mrb[0].mxu0 %v2679
        %v2900 = vpop.f32.mrb[0].mxu0
        %v2901 = vadd.f32 %v2720, %v2900
        %v2902 = vpop.f32.mrb[0].mxu0
        %v2903 = vpop.f32.mrb[0].mxu0
        %v2904 = vadd.f32 %v2720, %v2903
        %v2905 = vpop.f32.mrb[0].mxu0
        %2906 = vmatprep.mubr.bf16.mxu0 0
        %2907 = vmatmul.mubr.bf16.gmra.mrb[0].mxu0 %v2680
        %v2908 = vpop.f32.mrb[0].mxu0
        %v2909 = vadd.f32 %v2720, %v2908
        %v2910 = vpop.f32.mrb[0].mxu0
        %v2911 = vpop.f32.mrb[0].mxu0
        %v2912 = vadd.f32 %v2720, %v2911
        %v2913 = vpop.f32.mrb[0].mxu0
        %2914 = vmatprep.mubr.bf16.mxu0 0
        %2915 = vmatmul.mubr.bf16.gmra.mrb[0].mxu0 %v2681
        %v2916 = vpop.f32.mrb[0].mxu0
        %v2917 = vadd.f32 %v2720, %v2916
        %v2918 = vpop.f32.mrb[0].mxu0
        %v2919 = vpop.f32.mrb[0].mxu0
        %v2920 = vadd.f32 %v2720, %v2919
        %v2921 = vpop.f32.mrb[0].mxu0
        %2922 = vmatprep.mubr.bf16.mxu0 0
        %2923 = vmatmul.mubr.bf16.gmra.mrb[0].mxu0 %v2682
        %v2924 = vpop.f32.mrb[0].mxu0
        %v2925 = vadd.f32 %v2720, %v2924
        %v2926 = vpop.f32.mrb[0].mxu0
        %v2927 = vpop.f32.mrb[0].mxu0
        %v2928 = vadd.f32 %v2720, %v2927
        %v2929 = vpop.f32.mrb[0].mxu0
        %2930 = vmatprep.mubr.bf16.mxu0 0
        %2931 = vmatmul.mubr.bf16.gmra.mrb[0].mxu0 %v2683
        %v2932 = vpop.f32.mrb[0].mxu0
        %v2933 = vadd.f32 %v2720, %v2932
        %v2934 = vpop.f32.mrb[0].mxu0
        %v2935 = vpop.f32.mrb[0].mxu0
        %v2936 = vadd.f32 %v2720, %v2935
        %v2937 = vpop.f32.mrb[0].mxu0
        %2938 = vmatprep.mubr.bf16.mxu0 0
        %2939 = vmatmul.mubr.bf16.gmra.mrb[0].mxu0 %v2684
        %v2940 = vpop.f32.mrb[0].mxu0
        %v2941 = vadd.f32 %v2720, %v2940
        %v2942 = vpop.f32.mrb[0].mxu0
        %v2943 = vpop.f32.mrb[0].mxu0
        %v2944 = vadd.f32 %v2720, %v2943
        %v2945 = vpop.f32.mrb[0].mxu0
        %2946 = vmatprep.mubr.bf16.mxu0 0
        %2947 = vmatmul.mubr.bf16.gmra.mrb[0].mxu0 %v2685
        %v2948 = vpop.f32.mrb[0].mxu0
        %v2949 = vadd.f32 %v2720, %v2948
        %v2950 = vpop.f32.mrb[0].mxu0
        %v2951 = vpop.f32.mrb[0].mxu0
        %v2952 = vadd.f32 %v2720, %v2951
        %v2953 = vpop.f32.mrb[0].mxu0
        %2954 = vmatprep.mubr.bf16.mxu0 0
        %2955 = vmatmul.mubr.bf16.gmra.mrb[0].mxu0 %v2686
        %v2956 = vpop.f32.mrb[0].mxu0
        %v2957 = vadd.f32 %v2720, %v2956
        %v2958 = vpop.f32.mrb[0].mxu0
        %v2959 = vpop.f32.mrb[0].mxu0
        %v2960 = vadd.f32 %v2720, %v2959
        %v2961 = vpop.f32.mrb[0].mxu0
        %2962 = vmatprep.mubr.bf16.mxu0 0
        %2963 = vmatmul.mubr.bf16.gmra.mrb[0].mxu0 %v2687
        %v2964 = vpop.f32.mrb[0].mxu0
        %v2965 = vadd.f32 %v2720, %v2964
        %v2966 = vpop.f32.mrb[0].mxu0
        %v2967 = vpop.f32.mrb[0].mxu0
        %v2968 = vadd.f32 %v2720, %v2967
        %v2969 = vpop.f32.mrb[0].mxu0
        %2970 = vmatprep.mubr.bf16.mxu0 0
        %2971 = vmatmul.mubr.bf16.gmra.mrb[0].mxu0 %v2688
        %v2972 = vpop.f32.mrb[0].mxu0
        %v2973 = vadd.f32 %v2720, %v2972
        %v2974 = vpop.f32.mrb[0].mxu0
        %v2975 = vpop.f32.mrb[0].mxu0
        %v2976 = vadd.f32 %v2720, %v2975
        %v2977 = vpop.f32.mrb[0].mxu0
        %2978 = vmatprep.mubr.bf16.mxu0 0
        %2979 = vmatmul.mubr.bf16.gmra.mrb[0].mxu0 %v2689
        %v2980 = vpop.f32.mrb[0].mxu0
        %v2981 = vadd.f32 %v2720, %v2980
        %v2982 = vpop.f32.mrb[0].mxu0
        %v2983 = vpop.f32.mrb[0].mxu0
        %v2984 = vadd.f32 %v2720, %v2983
        %v2985 = vpop.f32.mrb[0].mxu0
        %2986 = vmatprep.mubr.bf16.mxu0 0
        %2987 = vmatmul.mubr.bf16.gmra.mrb[0].mxu0 %v2690
        %v2988 = vpop.f32.mrb[0].mxu0
        %v2989 = vadd.f32 %v2720, %v2988
        %v2990 = vpop.f32.mrb[0].mxu0
        %v2991 = vpop.f32.mrb[0].mxu0
        %v2992 = vadd.f32 %v2720, %v2991
        %v2993 = vpop.f32.mrb[0].mxu0
        %2994 = vmatprep.mubr.bf16.mxu0 0
        %2995 = vmatmul.mubr.bf16.gmra.mrb[0].mxu0 %v2691
        %v2996 = vpop.f32.mrb[0].mxu0
        %v2997 = vadd.f32 %v2720, %v2996
        %v2998 = vpop.f32.mrb[0].mxu0
        %v2999 = vpop.f32.mrb[0].mxu0
        %v3000 = vadd.f32 %v2720, %v2999
        %v3001 = vpop.f32.mrb[0].mxu0
        %3002 = vmatprep.mubr.bf16.mxu0 0
        %3003 = vmatmul.mubr.bf16.gmra.mrb[0].mxu0 %v2692
        %v3004 = vpop.f32.mrb[0].mxu0
        %v3005 = vadd.f32 %v2720, %v3004
        %v3006 = vpop.f32.mrb[0].mxu0
        %v3007 = vpop.f32.mrb[0].mxu0
        %v3008 = vadd.f32 %v2720, %v3007
        %v3009 = vpop.f32.mrb[0].mxu0
        %3010 = vmatprep.mubr.bf16.mxu0 0
        %3011 = vmatmul.mubr.bf16.gmra.mrb[0].mxu0 %v2693
        %v3012 = vpop.f32.mrb[0].mxu0
        %v3013 = vadd.f32 %v2720, %v3012
        %v3014 = vpop.f32.mrb[0].mxu0
        %v3015 = vpop.f32.mrb[0].mxu0
        %v3016 = vadd.f32 %v2720, %v3015
        %v3017 = vpop.f32.mrb[0].mxu0
        %3018 = vmatprep.mubr.bf16.mxu0 0
        %3019 = vmatmul.mubr.bf16.gmra.mrb[0].mxu0 %v2694
        %v3020 = vpop.f32.mrb[0].mxu0
        %v3021 = vadd.f32 %v2720, %v3020
        %v3022 = vpop.f32.mrb[0].mxu0
        %v3023 = vpop.f32.mrb[0].mxu0
        %v3024 = vadd.f32 %v2720, %v3023
        %v3025 = vpop.f32.mrb[0].mxu0
        %3026 = vmatprep.mubr.bf16.mxu0 0
        %3027 = vmatmul.mubr.bf16.gmra.mrb[0].mxu0 %v2695
        %v3028 = vpop.f32.mrb[0].mxu0
        %v3029 = vadd.f32 %v2720, %v3028
        %v3030 = vpop.f32.mrb[0].mxu0
        %v3031 = vpop.f32.mrb[0].mxu0
        %v3032 = vadd.f32 %v2720, %v3031
        %v3033 = vpop.f32.mrb[0].mxu0
        %3034 = vmatprep.mubr.bf16.mxu0 0
        %3035 = vmatmul.mubr.bf16.gmra.mrb[0].mxu0 %v2696
        %v3036 = vpop.f32.mrb[0].mxu0
        %v3037 = vadd.f32 %v2720, %v3036
        %v3038 = vpop.f32.mrb[0].mxu0
        %v3039 = vpop.f32.mrb[0].mxu0
        %v3040 = vadd.f32 %v2720, %v3039
        %v3041 = vpop.f32.mrb[0].mxu0
        %3042 = vmatprep.mubr.bf16.mxu0 0
        %3043 = vmatmul.mubr.bf16.gmra.mrb[0].mxu0 %v2697
        %v3044 = vpop.f32.mrb[0].mxu0
        %v3045 = vadd.f32 %v2720, %v3044
        %v3046 = vpop.f32.mrb[0].mxu0
        %v3047 = vpop.f32.mrb[0].mxu0
        %v3048 = vadd.f32 %v2720, %v3047
        %v3049 = vpop.f32.mrb[0].mxu0
        %3050 = vmatprep.mubr.bf16.mxu0 0
        %3051 = vmatmul.mubr.bf16.gmra.mrb[0].mxu0 %v2698
        %v3052 = vpop.f32.mrb[0].mxu0
        %v3053 = vadd.f32 %v2720, %v3052
        %v3054 = vpop.f32.mrb[0].mxu0
        %v3055 = vpop.f32.mrb[0].mxu0
        %v3056 = vadd.f32 %v2720, %v3055
        %v3057 = vpop.f32.mrb[0].mxu0
        %3058 = vdwg.mxu0
        %v3059 = vmax.f32 %v2805, 0.0
        %v3060 = vmax.f32 %v2808, 0.0
        %v3061 = vmax.f32 %v2813, 0.0
        %v3062 = vmax.f32 %v2816, 0.0
        %v3063 = vmax.f32 %v2821, 0.0
        %v3064 = vmax.f32 %v2824, 0.0
        %v3065 = vmax.f32 %v2829, 0.0
        %v3066 = vmax.f32 %v2832, 0.0
        %v3067 = vmax.f32 %v2837, 0.0
        %v3068 = vmax.f32 %v2840, 0.0
        %v3069 = vmax.f32 %v2845, 0.0
        %v3070 = vmax.f32 %v2848, 0.0
        %v3071 = vmax.f32 %v2853, 0.0
        %v3072 = vmax.f32 %v2856, 0.0
        %v3073 = vmax.f32 %v2861, 0.0
        %v3074 = vmax.f32 %v2864, 0.0
        %v3075 = vmax.f32 %v2869, 0.0
        %v3076 = vmax.f32 %v2872, 0.0
        %v3077 = vmax.f32 %v2877, 0.0
        %v3078 = vmax.f32 %v2880, 0.0
        %v3079 = vmax.f32 %v2885, 0.0
        %v3080 = vmax.f32 %v2888, 0.0
        %v3081 = vmax.f32 %v2893, 0.0
        %v3082 = vmax.f32 %v2896, 0.0
        %v3083 = vmax.f32 %v2901, 0.0
        %v3084 = vmax.f32 %v2904, 0.0
        %v3085 = vmax.f32 %v2909, 0.0
        %v3086 = vmax.f32 %v2912, 0.0
        %v3087 = vmax.f32 %v2917, 0.0
        %v3088 = vmax.f32 %v2920, 0.0
        %v3089 = vmax.f32 %v2925, 0.0
        %v3090 = vmax.f32 %v2928, 0.0
        %v3091 = vmax.f32 %v2933, 0.0
        %v3092 = vmax.f32 %v2936, 0.0
        %v3093 = vmax.f32 %v2941, 0.0
        %v3094 = vmax.f32 %v2944, 0.0
        %v3095 = vmax.f32 %v2949, 0.0
        %v3096 = vmax.f32 %v2952, 0.0
        %v3097 = vmax.f32 %v2957, 0.0
        %v3098 = vmax.f32 %v2960, 0.0
        %v3099 = vmax.f32 %v2965, 0.0
        %v3100 = vmax.f32 %v2968, 0.0
        %v3101 = vmax.f32 %v2973, 0.0
        %v3102 = vmax.f32 %v2976, 0.0
        %v3103 = vmax.f32 %v2981, 0.0
        %v3104 = vmax.f32 %v2984, 0.0
        %v3105 = vmax.f32 %v2989, 0.0
        %v3106 = vmax.f32 %v2992, 0.0
        %v3107 = vmax.f32 %v2997, 0.0
        %v3108 = vmax.f32 %v3000, 0.0
        %v3109 = vmax.f32 %v3005, 0.0
        %v3110 = vmax.f32 %v3008, 0.0
        %v3111 = vmax.f32 %v3013, 0.0
        %v3112 = vmax.f32 %v3016, 0.0
        %v3113 = vmax.f32 %v3021, 0.0
        %v3114 = vmax.f32 %v3024, 0.0
        %v3115 = vmax.f32 %v3029, 0.0
        %v3116 = vmax.f32 %v3032, 0.0
        %v3117 = vmax.f32 %v3037, 0.0
        %v3118 = vmax.f32 %v3040, 0.0
        %v3119 = vmax.f32 %v3045, 0.0
        %v3120 = vmax.f32 %v3048, 0.0
        %v3121 = vmax.f32 %v3053, 0.0
        %v3122 = vmax.f32 %v3056, 0.0
        %v3123 = vpack.c.bf16 %v3060, %v3059
        %v3124 = vpack.c.bf16 %v3062, %v3061
        %v3125 = vpack.c.bf16 %v3064, %v3063
        %v3126 = vpack.c.bf16 %v3066, %v3065
        %v3127 = vpack.c.bf16 %v3068, %v3067
        %v3128 = vpack.c.bf16 %v3070, %v3069
        %v3129 = vpack.c.bf16 %v3072, %v3071
        %v3130 = vpack.c.bf16 %v3074, %v3073
        %v3131 = vpack.c.bf16 %v3076, %v3075
        %v3132 = vpack.c.bf16 %v3078, %v3077
        %v3133 = vpack.c.bf16 %v3080, %v3079
        %v3134 = vpack.c.bf16 %v3082, %v3081
        %v3135 = vpack.c.bf16 %v3084, %v3083
        %v3136 = vpack.c.bf16 %v3086, %v3085
        %v3137 = vpack.c.bf16 %v3088, %v3087
        %v3138 = vpack.c.bf16 %v3090, %v3089
        %v3139 = vpack.c.bf16 %v3092, %v3091
        %v3140 = vpack.c.bf16 %v3094, %v3093
        %v3141 = vpack.c.bf16 %v3096, %v3095
        %v3142 = vpack.c.bf16 %v3098, %v3097
        %v3143 = vpack.c.bf16 %v3100, %v3099
        %v3144 = vpack.c.bf16 %v3102, %v3101
        %v3145 = vpack.c.bf16 %v3104, %v3103
        %v3146 = vpack.c.bf16 %v3106, %v3105
        %v3147 = vpack.c.bf16 %v3108, %v3107
        %v3148 = vpack.c.bf16 %v3110, %v3109
        %v3149 = vpack.c.bf16 %v3112, %v3111
        %v3150 = vpack.c.bf16 %v3114, %v3113
        %v3151 = vpack.c.bf16 %v3116, %v3115
        %v3152 = vpack.c.bf16 %v3118, %v3117
        %v3153 = vpack.c.bf16 %v3120, %v3119
        %v3154 = vpack.c.bf16 %v3122, %v3121
        %v3155 = vld [vmem:[#allocation11] sm:$0xff]
        %v3156 = vld [vmem:[#allocation11 + $0x8] sm:$0xff]
        %v3157 = vld [vmem:[#allocation11 + $0x10] sm:$0xff]
        %v3158 = vld [vmem:[#allocation11 + $0x18] sm:$0xff]
        %v3159 = vld [vmem:[#allocation11 + $0x20] sm:$0xff]
        %v3160 = vld [vmem:[#allocation11 + $0x28] sm:$0xff]
        %v3161 = vld [vmem:[#allocation11 + $0x30] sm:$0xff]
        %v3162 = vld [vmem:[#allocation11 + $0x38] sm:$0xff]
        %v3163 = vld [vmem:[#allocation11 + $0x40] sm:$0xff]
        %v3164 = vld [vmem:[#allocation11 + $0x48] sm:$0xff]
        %v3165 = vld [vmem:[#allocation11 + $0x50] sm:$0xff]
        %v3166 = vld [vmem:[#allocation11 + $0x58] sm:$0xff]
        %v3167 = vld [vmem:[#allocation11 + $0x60] sm:$0xff]
        %v3168 = vld [vmem:[#allocation11 + $0x68] sm:$0xff]
        %v3169 = vld [vmem:[#allocation11 + $0x70] sm:$0xff]
        %v3170 = vld [vmem:[#allocation11 + $0x78] sm:$0xff]
        %v3171 = vld [vmem:[%s11] sm:$0x3]
        %v3173 = vlaneseq
        %v3174 = vshrl.u32 %v3173, 7
        %v3175 = vsub.s32 0, %v3174
        %v3176 = vrot.slane %v3171, %v3175
        %v3177 = vlaneseq
        %v3178 = vshrl.u32 %v3177, 7
        %v3179 = vsub.s32 1, %v3178
        %v3180 = vrot.slane %v3171, %v3179
        %v3199 = vunpack.c.l.b16 %v3155
        %v3200 = vunpack.c.h.b16 %v3155
        %v3201 = vunpack.c.l.b16 %v3156
        %v3202 = vunpack.c.h.b16 %v3156
        %v3203 = vunpack.c.l.b16 %v3157
        %v3204 = vunpack.c.h.b16 %v3157
        %v3205 = vunpack.c.l.b16 %v3158
        %v3206 = vunpack.c.h.b16 %v3158
        %v3207 = vunpack.c.l.b16 %v3159
        %v3208 = vunpack.c.h.b16 %v3159
        %v3209 = vunpack.c.l.b16 %v3160
        %v3210 = vunpack.c.h.b16 %v3160
        %v3211 = vunpack.c.l.b16 %v3161
        %v3212 = vunpack.c.h.b16 %v3161
        %v3213 = vunpack.c.l.b16 %v3162
        %v3214 = vunpack.c.h.b16 %v3162
        %v3215 = vunpack.c.l.b16 %v3163
        %v3216 = vunpack.c.h.b16 %v3163
        %v3217 = vunpack.c.l.b16 %v3164
        %v3218 = vunpack.c.h.b16 %v3164
        %v3219 = vunpack.c.l.b16 %v3165
        %v3220 = vunpack.c.h.b16 %v3165
        %v3221 = vunpack.c.l.b16 %v3166
        %v3222 = vunpack.c.h.b16 %v3166
        %v3223 = vunpack.c.l.b16 %v3167
        %v3224 = vunpack.c.h.b16 %v3167
        %v3225 = vunpack.c.l.b16 %v3168
        %v3226 = vunpack.c.h.b16 %v3168
        %v3227 = vunpack.c.l.b16 %v3169
        %v3228 = vunpack.c.h.b16 %v3169
        %v3229 = vunpack.c.l.b16 %v3170
        %v3230 = vunpack.c.h.b16 %v3170
        %v3231 = vpack.c.b16 %v3201, %v3199
        %v3232 = vpack.c.b16 %v3202, %v3200
        %v3233 = vpack.c.b16 %v3205, %v3203
        %v3234 = vpack.c.b16 %v3206, %v3204
        %v3235 = vpack.c.b16 %v3209, %v3207
        %v3236 = vpack.c.b16 %v3210, %v3208
        %v3237 = vpack.c.b16 %v3213, %v3211
        %v3238 = vpack.c.b16 %v3214, %v3212
        %v3239 = vpack.c.b16 %v3217, %v3215
        %v3240 = vpack.c.b16 %v3218, %v3216
        %v3241 = vpack.c.b16 %v3221, %v3219
        %v3242 = vpack.c.b16 %v3222, %v3220
        %v3243 = vpack.c.b16 %v3225, %v3223
        %v3244 = vpack.c.b16 %v3226, %v3224
        %v3245 = vpack.c.b16 %v3229, %v3227
        %v3246 = vpack.c.b16 %v3230, %v3228
        %3263 = vmatprep.subr.bf16.mxu0 %v3232
        %3264 = vmatpush1.bf16.msra.mxu0 %v3231
        %3265 = vmatprep.subr.bf16.mxu0 %v3234
        %3266 = vmatpush1.bf16.msra.mxu0 %v3233
        %3267 = vmatprep.subr.bf16.mxu0 %v3236
        %3268 = vmatpush1.bf16.msra.mxu0 %v3235
        %3269 = vmatprep.subr.bf16.mxu0 %v3238
        %3270 = vmatpush1.bf16.msra.mxu0 %v3237
        %3271 = vmatprep.subr.bf16.mxu0 %v3240
        %3272 = vmatpush1.bf16.msra.mxu0 %v3239
        %3273 = vmatprep.subr.bf16.mxu0 %v3242
        %3274 = vmatpush1.bf16.msra.mxu0 %v3241
        %3275 = vmatprep.subr.bf16.mxu0 %v3244
        %3276 = vmatpush1.bf16.msra.mxu0 %v3243
        %3277 = vmatprep.subr.bf16.mxu0 %v3246
        %3278 = vmatpush1.bf16.msra.mxu0 %v3245
        %3279 = vmatprep.subr.bf16.mxu0 0
        %3280 = vmatpush1.bf16.msra.mxu0 0
        %3281 = vmatprep.subr.bf16.mxu0 0
        %3282 = vmatpush1.bf16.msra.mxu0 0
        %3283 = vmatprep.subr.bf16.mxu0 0
        %3284 = vmatpush1.bf16.msra.mxu0 0
        %3285 = vmatprep.subr.bf16.mxu0 0
        %3286 = vmatpush1.bf16.msra.mxu0 0
        %3287 = vmatprep.subr.bf16.mxu0 0
        %3288 = vmatpush1.bf16.msra.mxu0 0
        %3289 = vmatprep.subr.bf16.mxu0 0
        %3290 = vmatpush1.bf16.msra.mxu0 0
        %3291 = vmatprep.subr.bf16.mxu0 0
        %3292 = vmatpush1.bf16.msra.mxu0 0
        %3293 = vmatprep.subr.bf16.mxu0 0
        %3294 = vmatpush1.bf16.msra.mxu0 0
        %3295 = vmatprep.mubr.bf16.mxu0 0
        %3296 = vmatmul.mubr.bf16.gmra.mrb[0].mxu0 %v3123
        %v3297 = vpop.f32.mrb[0].mxu0
        %v3298 = vadd.f32 %v3176, %v3297
        %v3299 = vpop.f32.mrb[0].mxu0
        %v3300 = vadd.f32 %v3180, %v3299
        %v3301 = vpop.f32.mrb[0].mxu0
        %v3302 = vadd.f32 %v3176, %v3301
        %v3303 = vpop.f32.mrb[0].mxu0
        %v3304 = vadd.f32 %v3180, %v3303
        %3305 = vmatprep.mubr.bf16.mxu0 0
        %3306 = vmatmul.mubr.bf16.gmra.mrb[0].mxu0 %v3124
        %v3307 = vpop.f32.mrb[0].mxu0
        %v3308 = vadd.f32 %v3176, %v3307
        %v3309 = vpop.f32.mrb[0].mxu0
        %v3310 = vadd.f32 %v3180, %v3309
        %v3311 = vpop.f32.mrb[0].mxu0
        %v3312 = vadd.f32 %v3176, %v3311
        %v3313 = vpop.f32.mrb[0].mxu0
        %v3314 = vadd.f32 %v3180, %v3313
        %3315 = vmatprep.mubr.bf16.mxu0 0
        %3316 = vmatmul.mubr.bf16.gmra.mrb[0].mxu0 %v3125
        %v3317 = vpop.f32.mrb[0].mxu0
        %v3318 = vadd.f32 %v3176, %v3317
        %v3319 = vpop.f32.mrb[0].mxu0
        %v3320 = vadd.f32 %v3180, %v3319
        %v3321 = vpop.f32.mrb[0].mxu0
        %v3322 = vadd.f32 %v3176, %v3321
        %v3323 = vpop.f32.mrb[0].mxu0
        %v3324 = vadd.f32 %v3180, %v3323
        %3325 = vmatprep.mubr.bf16.mxu0 0
        %3326 = vmatmul.mubr.bf16.gmra.mrb[0].mxu0 %v3126
        %v3327 = vpop.f32.mrb[0].mxu0
        %v3328 = vadd.f32 %v3176, %v3327
        %v3329 = vpop.f32.mrb[0].mxu0
        %v3330 = vadd.f32 %v3180, %v3329
        %v3331 = vpop.f32.mrb[0].mxu0
        %v3332 = vadd.f32 %v3176, %v3331
        %v3333 = vpop.f32.mrb[0].mxu0
        %v3334 = vadd.f32 %v3180, %v3333
        %3335 = vmatprep.mubr.bf16.mxu0 0
        %3336 = vmatmul.mubr.bf16.gmra.mrb[0].mxu0 %v3127
        %v3337 = vpop.f32.mrb[0].mxu0
        %v3338 = vadd.f32 %v3176, %v3337
        %v3339 = vpop.f32.mrb[0].mxu0
        %v3340 = vadd.f32 %v3180, %v3339
        %v3341 = vpop.f32.mrb[0].mxu0
        %v3342 = vadd.f32 %v3176, %v3341
        %v3343 = vpop.f32.mrb[0].mxu0
        %v3344 = vadd.f32 %v3180, %v3343
        %3345 = vmatprep.mubr.bf16.mxu0 0
        %3346 = vmatmul.mubr.bf16.gmra.mrb[0].mxu0 %v3128
        %v3347 = vpop.f32.mrb[0].mxu0
        %v3348 = vadd.f32 %v3176, %v3347
        %v3349 = vpop.f32.mrb[0].mxu0
        %v3350 = vadd.f32 %v3180, %v3349
        %v3351 = vpop.f32.mrb[0].mxu0
        %v3352 = vadd.f32 %v3176, %v3351
        %v3353 = vpop.f32.mrb[0].mxu0
        %v3354 = vadd.f32 %v3180, %v3353
        %3355 = vmatprep.mubr.bf16.mxu0 0
        %3356 = vmatmul.mubr.bf16.gmra.mrb[0].mxu0 %v3129
        %v3357 = vpop.f32.mrb[0].mxu0
        %v3358 = vadd.f32 %v3176, %v3357
        %v3359 = vpop.f32.mrb[0].mxu0
        %v3360 = vadd.f32 %v3180, %v3359
        %v3361 = vpop.f32.mrb[0].mxu0
        %v3362 = vadd.f32 %v3176, %v3361
        %v3363 = vpop.f32.mrb[0].mxu0
        %v3364 = vadd.f32 %v3180, %v3363
        %3365 = vmatprep.mubr.bf16.mxu0 0
        %3366 = vmatmul.mubr.bf16.gmra.mrb[0].mxu0 %v3130
        %v3367 = vpop.f32.mrb[0].mxu0
        %v3368 = vadd.f32 %v3176, %v3367
        %v3369 = vpop.f32.mrb[0].mxu0
        %v3370 = vadd.f32 %v3180, %v3369
        %v3371 = vpop.f32.mrb[0].mxu0
        %v3372 = vadd.f32 %v3176, %v3371
        %v3373 = vpop.f32.mrb[0].mxu0
        %v3374 = vadd.f32 %v3180, %v3373
        %3375 = vmatprep.mubr.bf16.mxu0 0
        %3376 = vmatmul.mubr.bf16.gmra.mrb[0].mxu0 %v3131
        %v3377 = vpop.f32.mrb[0].mxu0
        %v3378 = vadd.f32 %v3176, %v3377
        %v3379 = vpop.f32.mrb[0].mxu0
        %v3380 = vadd.f32 %v3180, %v3379
        %v3381 = vpop.f32.mrb[0].mxu0
        %v3382 = vadd.f32 %v3176, %v3381
        %v3383 = vpop.f32.mrb[0].mxu0
        %v3384 = vadd.f32 %v3180, %v3383
        %3385 = vmatprep.mubr.bf16.mxu0 0
        %3386 = vmatmul.mubr.bf16.gmra.mrb[0].mxu0 %v3132
        %v3387 = vpop.f32.mrb[0].mxu0
        %v3388 = vadd.f32 %v3176, %v3387
        %v3389 = vpop.f32.mrb[0].mxu0
        %v3390 = vadd.f32 %v3180, %v3389
        %v3391 = vpop.f32.mrb[0].mxu0
        %v3392 = vadd.f32 %v3176, %v3391
        %v3393 = vpop.f32.mrb[0].mxu0
        %v3394 = vadd.f32 %v3180, %v3393
        %3395 = vmatprep.mubr.bf16.mxu0 0
        %3396 = vmatmul.mubr.bf16.gmra.mrb[0].mxu0 %v3133
        %v3397 = vpop.f32.mrb[0].mxu0
        %v3398 = vadd.f32 %v3176, %v3397
        %v3399 = vpop.f32.mrb[0].mxu0
        %v3400 = vadd.f32 %v3180, %v3399
        %v3401 = vpop.f32.mrb[0].mxu0
        %v3402 = vadd.f32 %v3176, %v3401
        %v3403 = vpop.f32.mrb[0].mxu0
        %v3404 = vadd.f32 %v3180, %v3403
        %3405 = vmatprep.mubr.bf16.mxu0 0
        %3406 = vmatmul.mubr.bf16.gmra.mrb[0].mxu0 %v3134
        %v3407 = vpop.f32.mrb[0].mxu0
        %v3408 = vadd.f32 %v3176, %v3407
        %v3409 = vpop.f32.mrb[0].mxu0
        %v3410 = vadd.f32 %v3180, %v3409
        %v3411 = vpop.f32.mrb[0].mxu0
        %v3412 = vadd.f32 %v3176, %v3411
        %v3413 = vpop.f32.mrb[0].mxu0
        %v3414 = vadd.f32 %v3180, %v3413
        %3415 = vmatprep.mubr.bf16.mxu0 0
        %3416 = vmatmul.mubr.bf16.gmra.mrb[0].mxu0 %v3135
        %v3417 = vpop.f32.mrb[0].mxu0
        %v3418 = vadd.f32 %v3176, %v3417
        %v3419 = vpop.f32.mrb[0].mxu0
        %v3420 = vadd.f32 %v3180, %v3419
        %v3421 = vpop.f32.mrb[0].mxu0
        %v3422 = vadd.f32 %v3176, %v3421
        %v3423 = vpop.f32.mrb[0].mxu0
        %v3424 = vadd.f32 %v3180, %v3423
        %3425 = vmatprep.mubr.bf16.mxu0 0
        %3426 = vmatmul.mubr.bf16.gmra.mrb[0].mxu0 %v3136
        %v3427 = vpop.f32.mrb[0].mxu0
        %v3428 = vadd.f32 %v3176, %v3427
        %v3429 = vpop.f32.mrb[0].mxu0
        %v3430 = vadd.f32 %v3180, %v3429
        %v3431 = vpop.f32.mrb[0].mxu0
        %v3432 = vadd.f32 %v3176, %v3431
        %v3433 = vpop.f32.mrb[0].mxu0
        %v3434 = vadd.f32 %v3180, %v3433
        %3435 = vmatprep.mubr.bf16.mxu0 0
        %3436 = vmatmul.mubr.bf16.gmra.mrb[0].mxu0 %v3137
        %v3437 = vpop.f32.mrb[0].mxu0
        %v3438 = vadd.f32 %v3176, %v3437
        %v3439 = vpop.f32.mrb[0].mxu0
        %v3440 = vadd.f32 %v3180, %v3439
        %v3441 = vpop.f32.mrb[0].mxu0
        %v3442 = vadd.f32 %v3176, %v3441
        %v3443 = vpop.f32.mrb[0].mxu0
        %v3444 = vadd.f32 %v3180, %v3443
        %3445 = vmatprep.mubr.bf16.mxu0 0
        %3446 = vmatmul.mubr.bf16.gmra.mrb[0].mxu0 %v3138
        %v3447 = vpop.f32.mrb[0].mxu0
        %v3448 = vadd.f32 %v3176, %v3447
        %v3449 = vpop.f32.mrb[0].mxu0
        %v3450 = vadd.f32 %v3180, %v3449
        %v3451 = vpop.f32.mrb[0].mxu0
        %v3452 = vadd.f32 %v3176, %v3451
        %v3453 = vpop.f32.mrb[0].mxu0
        %v3454 = vadd.f32 %v3180, %v3453
        %3455 = vmatprep.mubr.bf16.mxu0 0
        %3456 = vmatmul.mubr.bf16.gmra.mrb[0].mxu0 %v3139
        %v3457 = vpop.f32.mrb[0].mxu0
        %v3458 = vadd.f32 %v3176, %v3457
        %v3459 = vpop.f32.mrb[0].mxu0
        %v3460 = vadd.f32 %v3180, %v3459
        %v3461 = vpop.f32.mrb[0].mxu0
        %v3462 = vadd.f32 %v3176, %v3461
        %v3463 = vpop.f32.mrb[0].mxu0
        %v3464 = vadd.f32 %v3180, %v3463
        %3465 = vmatprep.mubr.bf16.mxu0 0
        %3466 = vmatmul.mubr.bf16.gmra.mrb[0].mxu0 %v3140
        %v3467 = vpop.f32.mrb[0].mxu0
        %v3468 = vadd.f32 %v3176, %v3467
        %v3469 = vpop.f32.mrb[0].mxu0
        %v3470 = vadd.f32 %v3180, %v3469
        %v3471 = vpop.f32.mrb[0].mxu0
        %v3472 = vadd.f32 %v3176, %v3471
        %v3473 = vpop.f32.mrb[0].mxu0
        %v3474 = vadd.f32 %v3180, %v3473
        %3475 = vmatprep.mubr.bf16.mxu0 0
        %3476 = vmatmul.mubr.bf16.gmra.mrb[0].mxu0 %v3141
        %v3477 = vpop.f32.mrb[0].mxu0
        %v3478 = vadd.f32 %v3176, %v3477
        %v3479 = vpop.f32.mrb[0].mxu0
        %v3480 = vadd.f32 %v3180, %v3479
        %v3481 = vpop.f32.mrb[0].mxu0
        %v3482 = vadd.f32 %v3176, %v3481
        %v3483 = vpop.f32.mrb[0].mxu0
        %v3484 = vadd.f32 %v3180, %v3483
        %3485 = vmatprep.mubr.bf16.mxu0 0
        %3486 = vmatmul.mubr.bf16.gmra.mrb[0].mxu0 %v3142
        %v3487 = vpop.f32.mrb[0].mxu0
        %v3488 = vadd.f32 %v3176, %v3487
        %v3489 = vpop.f32.mrb[0].mxu0
        %v3490 = vadd.f32 %v3180, %v3489
        %v3491 = vpop.f32.mrb[0].mxu0
        %v3492 = vadd.f32 %v3176, %v3491
        %v3493 = vpop.f32.mrb[0].mxu0
        %v3494 = vadd.f32 %v3180, %v3493
        %3495 = vmatprep.mubr.bf16.mxu0 0
        %3496 = vmatmul.mubr.bf16.gmra.mrb[0].mxu0 %v3143
        %v3497 = vpop.f32.mrb[0].mxu0
        %v3498 = vadd.f32 %v3176, %v3497
        %v3499 = vpop.f32.mrb[0].mxu0
        %v3500 = vadd.f32 %v3180, %v3499
        %v3501 = vpop.f32.mrb[0].mxu0
        %v3502 = vadd.f32 %v3176, %v3501
        %v3503 = vpop.f32.mrb[0].mxu0
        %v3504 = vadd.f32 %v3180, %v3503
        %3505 = vmatprep.mubr.bf16.mxu0 0
        %3506 = vmatmul.mubr.bf16.gmra.mrb[0].mxu0 %v3144
        %v3507 = vpop.f32.mrb[0].mxu0
        %v3508 = vadd.f32 %v3176, %v3507
        %v3509 = vpop.f32.mrb[0].mxu0
        %v3510 = vadd.f32 %v3180, %v3509
        %v3511 = vpop.f32.mrb[0].mxu0
        %v3512 = vadd.f32 %v3176, %v3511
        %v3513 = vpop.f32.mrb[0].mxu0
        %v3514 = vadd.f32 %v3180, %v3513
        %3515 = vmatprep.mubr.bf16.mxu0 0
        %3516 = vmatmul.mubr.bf16.gmra.mrb[0].mxu0 %v3145
        %v3517 = vpop.f32.mrb[0].mxu0
        %v3518 = vadd.f32 %v3176, %v3517
        %v3519 = vpop.f32.mrb[0].mxu0
        %v3520 = vadd.f32 %v3180, %v3519
        %v3521 = vpop.f32.mrb[0].mxu0
        %v3522 = vadd.f32 %v3176, %v3521
        %v3523 = vpop.f32.mrb[0].mxu0
        %v3524 = vadd.f32 %v3180, %v3523
        %3525 = vmatprep.mubr.bf16.mxu0 0
        %3526 = vmatmul.mubr.bf16.gmra.mrb[0].mxu0 %v3146
        %v3527 = vpop.f32.mrb[0].mxu0
        %v3528 = vadd.f32 %v3176, %v3527
        %v3529 = vpop.f32.mrb[0].mxu0
        %v3530 = vadd.f32 %v3180, %v3529
        %v3531 = vpop.f32.mrb[0].mxu0
        %v3532 = vadd.f32 %v3176, %v3531
        %v3533 = vpop.f32.mrb[0].mxu0
        %v3534 = vadd.f32 %v3180, %v3533
        %3535 = vmatprep.mubr.bf16.mxu0 0
        %3536 = vmatmul.mubr.bf16.gmra.mrb[0].mxu0 %v3147
        %v3537 = vpop.f32.mrb[0].mxu0
        %v3538 = vadd.f32 %v3176, %v3537
        %v3539 = vpop.f32.mrb[0].mxu0
        %v3540 = vadd.f32 %v3180, %v3539
        %v3541 = vpop.f32.mrb[0].mxu0
        %v3542 = vadd.f32 %v3176, %v3541
        %v3543 = vpop.f32.mrb[0].mxu0
        %v3544 = vadd.f32 %v3180, %v3543
        %3545 = vmatprep.mubr.bf16.mxu0 0
        %3546 = vmatmul.mubr.bf16.gmra.mrb[0].mxu0 %v3148
        %v3547 = vpop.f32.mrb[0].mxu0
        %v3548 = vadd.f32 %v3176, %v3547
        %v3549 = vpop.f32.mrb[0].mxu0
        %v3550 = vadd.f32 %v3180, %v3549
        %v3551 = vpop.f32.mrb[0].mxu0
        %v3552 = vadd.f32 %v3176, %v3551
        %v3553 = vpop.f32.mrb[0].mxu0
        %v3554 = vadd.f32 %v3180, %v3553
        %3555 = vmatprep.mubr.bf16.mxu0 0
        %3556 = vmatmul.mubr.bf16.gmra.mrb[0].mxu0 %v3149
        %v3557 = vpop.f32.mrb[0].mxu0
        %v3558 = vadd.f32 %v3176, %v3557
        %v3559 = vpop.f32.mrb[0].mxu0
        %v3560 = vadd.f32 %v3180, %v3559
        %v3561 = vpop.f32.mrb[0].mxu0
        %v3562 = vadd.f32 %v3176, %v3561
        %v3563 = vpop.f32.mrb[0].mxu0
        %v3564 = vadd.f32 %v3180, %v3563
        %3565 = vmatprep.mubr.bf16.mxu0 0
        %3566 = vmatmul.mubr.bf16.gmra.mrb[0].mxu0 %v3150
        %v3567 = vpop.f32.mrb[0].mxu0
        %v3568 = vadd.f32 %v3176, %v3567
        %v3569 = vpop.f32.mrb[0].mxu0
        %v3570 = vadd.f32 %v3180, %v3569
        %v3571 = vpop.f32.mrb[0].mxu0
        %v3572 = vadd.f32 %v3176, %v3571
        %v3573 = vpop.f32.mrb[0].mxu0
        %v3574 = vadd.f32 %v3180, %v3573
        %3575 = vmatprep.mubr.bf16.mxu0 0
        %3576 = vmatmul.mubr.bf16.gmra.mrb[0].mxu0 %v3151
        %v3577 = vpop.f32.mrb[0].mxu0
        %v3578 = vadd.f32 %v3176, %v3577
        %v3579 = vpop.f32.mrb[0].mxu0
        %v3580 = vadd.f32 %v3180, %v3579
        %v3581 = vpop.f32.mrb[0].mxu0
        %v3582 = vadd.f32 %v3176, %v3581
        %v3583 = vpop.f32.mrb[0].mxu0
        %v3584 = vadd.f32 %v3180, %v3583
        %3585 = vmatprep.mubr.bf16.mxu0 0
        %3586 = vmatmul.mubr.bf16.gmra.mrb[0].mxu0 %v3152
        %v3587 = vpop.f32.mrb[0].mxu0
        %v3588 = vadd.f32 %v3176, %v3587
        %v3589 = vpop.f32.mrb[0].mxu0
        %v3590 = vadd.f32 %v3180, %v3589
        %v3591 = vpop.f32.mrb[0].mxu0
        %v3592 = vadd.f32 %v3176, %v3591
        %v3593 = vpop.f32.mrb[0].mxu0
        %v3594 = vadd.f32 %v3180, %v3593
        %3595 = vmatprep.mubr.bf16.mxu0 0
        %3596 = vmatmul.mubr.bf16.gmra.mrb[0].mxu0 %v3153
        %v3597 = vpop.f32.mrb[0].mxu0
        %v3598 = vadd.f32 %v3176, %v3597
        %v3599 = vpop.f32.mrb[0].mxu0
        %v3600 = vadd.f32 %v3180, %v3599
        %v3601 = vpop.f32.mrb[0].mxu0
        %v3602 = vadd.f32 %v3176, %v3601
        %v3603 = vpop.f32.mrb[0].mxu0
        %v3604 = vadd.f32 %v3180, %v3603
        %3605 = vmatprep.mubr.bf16.mxu0 0
        %3606 = vmatmul.mubr.bf16.gmra.mrb[0].mxu0 %v3154
        %v3607 = vpop.f32.mrb[0].mxu0
        %v3608 = vadd.f32 %v3176, %v3607
        %v3609 = vpop.f32.mrb[0].mxu0
        %v3610 = vadd.f32 %v3180, %v3609
        %v3611 = vpop.f32.mrb[0].mxu0
        %v3612 = vadd.f32 %v3176, %v3611
        %v3613 = vpop.f32.mrb[0].mxu0
        %v3614 = vadd.f32 %v3180, %v3613
        %3615 = vdwg.mxu0
        %v3616 = vtanh.pop %v3298
        %v3617 = vtanh.pop %v3302
        %v3618 = vtanh.pop %v3308
        %v3619 = vtanh.pop %v3312
        %v3620 = vtanh.pop %v3318
        %v3621 = vtanh.pop %v3322
        %v3622 = vtanh.pop %v3328
        %v3623 = vtanh.pop %v3332
        %v3624 = vtanh.pop %v3338
        %v3625 = vtanh.pop %v3342
        %v3626 = vtanh.pop %v3348
        %v3627 = vtanh.pop %v3352
        %v3628 = vtanh.pop %v3358
        %v3629 = vtanh.pop %v3362
        %v3630 = vtanh.pop %v3368
        %v3631 = vtanh.pop %v3372
        %v3632 = vtanh.pop %v3378
        %v3633 = vtanh.pop %v3382
        %v3634 = vtanh.pop %v3388
        %v3635 = vtanh.pop %v3392
        %v3636 = vtanh.pop %v3398
        %v3637 = vtanh.pop %v3402
        %v3638 = vtanh.pop %v3408
        %v3639 = vtanh.pop %v3412
        %v3640 = vtanh.pop %v3418
        %v3641 = vtanh.pop %v3422
        %v3642 = vtanh.pop %v3428
        %v3643 = vtanh.pop %v3432
        %v3644 = vtanh.pop %v3438
        %v3645 = vtanh.pop %v3442
        %v3646 = vtanh.pop %v3448
        %v3647 = vtanh.pop %v3452
        %v3648 = vtanh.pop %v3458
        %v3649 = vtanh.pop %v3462
        %v3650 = vtanh.pop %v3468
        %v3651 = vtanh.pop %v3472
        %v3652 = vtanh.pop %v3478
        %v3653 = vtanh.pop %v3482
        %v3654 = vtanh.pop %v3488
        %v3655 = vtanh.pop %v3492
        %v3656 = vtanh.pop %v3498
        %v3657 = vtanh.pop %v3502
        %v3658 = vtanh.pop %v3508
        %v3659 = vtanh.pop %v3512
        %v3660 = vtanh.pop %v3518
        %v3661 = vtanh.pop %v3522
        %v3662 = vtanh.pop %v3528
        %v3663 = vtanh.pop %v3532
        %v3664 = vtanh.pop %v3538
        %v3665 = vtanh.pop %v3542
        %v3666 = vtanh.pop %v3548
        %v3667 = vtanh.pop %v3552
        %v3668 = vtanh.pop %v3558
        %v3669 = vtanh.pop %v3562
        %v3670 = vtanh.pop %v3568
        %v3671 = vtanh.pop %v3572
        %v3672 = vtanh.pop %v3578
        %v3673 = vtanh.pop %v3582
        %v3674 = vtanh.pop %v3588
        %v3675 = vtanh.pop %v3592
        %v3676 = vtanh.pop %v3598
        %v3677 = vtanh.pop %v3602
        %v3678 = vtanh.pop %v3608
        %v3679 = vtanh.pop %v3612
        %v3680 = vmul.f32 %v3616, 1.442695
        %v3681 = vpow.pop %v3680
        %v3682 = vmul.f32 %v3617, 1.442695
        %v3683 = vpow.pop %v3682
        %v3684 = vmul.f32 %v3618, 1.442695
        %v3685 = vpow.pop %v3684
        %v3686 = vmul.f32 %v3619, 1.442695
        %v3687 = vpow.pop %v3686
        %v3688 = vmul.f32 %v3620, 1.442695
        %v3689 = vpow.pop %v3688
        %v3690 = vmul.f32 %v3621, 1.442695
        %v3691 = vpow.pop %v3690
        %v3692 = vmul.f32 %v3622, 1.442695
        %v3693 = vpow.pop %v3692
        %v3694 = vmul.f32 %v3623, 1.442695
        %v3695 = vpow.pop %v3694
        %v3696 = vmul.f32 %v3624, 1.442695
        %v3697 = vpow.pop %v3696
        %v3698 = vmul.f32 %v3625, 1.442695
        %v3699 = vpow.pop %v3698
        %v3700 = vmul.f32 %v3626, 1.442695
        %v3701 = vpow.pop %v3700
        %v3702 = vmul.f32 %v3627, 1.442695
        %v3703 = vpow.pop %v3702
        %v3704 = vmul.f32 %v3628, 1.442695
        %v3705 = vpow.pop %v3704
        %v3706 = vmul.f32 %v3629, 1.442695
        %v3707 = vpow.pop %v3706
        %v3708 = vmul.f32 %v3630, 1.442695
        %v3709 = vpow.pop %v3708
        %v3710 = vmul.f32 %v3631, 1.442695
        %v3711 = vpow.pop %v3710
        %v3712 = vmul.f32 %v3632, 1.442695
        %v3713 = vpow.pop %v3712
        %v3714 = vmul.f32 %v3633, 1.442695
        %v3715 = vpow.pop %v3714
        %v3716 = vmul.f32 %v3634, 1.442695
        %v3717 = vpow.pop %v3716
        %v3718 = vmul.f32 %v3635, 1.442695
        %v3719 = vpow.pop %v3718
        %v3720 = vmul.f32 %v3636, 1.442695
        %v3721 = vpow.pop %v3720
        %v3722 = vmul.f32 %v3637, 1.442695
        %v3723 = vpow.pop %v3722
        %v3724 = vmul.f32 %v3638, 1.442695
        %v3725 = vpow.pop %v3724
        %v3726 = vmul.f32 %v3639, 1.442695
        %v3727 = vpow.pop %v3726
        %v3728 = vmul.f32 %v3640, 1.442695
        %v3729 = vpow.pop %v3728
        %v3730 = vmul.f32 %v3641, 1.442695
        %v3731 = vpow.pop %v3730
        %v3732 = vmul.f32 %v3642, 1.442695
        %v3733 = vpow.pop %v3732
        %v3734 = vmul.f32 %v3643, 1.442695
        %v3735 = vpow.pop %v3734
        %v3736 = vmul.f32 %v3644, 1.442695
        %v3737 = vpow.pop %v3736
        %v3738 = vmul.f32 %v3645, 1.442695
        %v3739 = vpow.pop %v3738
        %v3740 = vmul.f32 %v3646, 1.442695
        %v3741 = vpow.pop %v3740
        %v3742 = vmul.f32 %v3647, 1.442695
        %v3743 = vpow.pop %v3742
        %v3744 = vmul.f32 %v3648, 1.442695
        %v3745 = vpow.pop %v3744
        %v3746 = vmul.f32 %v3649, 1.442695
        %v3747 = vpow.pop %v3746
        %v3748 = vmul.f32 %v3650, 1.442695
        %v3749 = vpow.pop %v3748
        %v3750 = vmul.f32 %v3651, 1.442695
        %v3751 = vpow.pop %v3750
        %v3752 = vmul.f32 %v3652, 1.442695
        %v3753 = vpow.pop %v3752
        %v3754 = vmul.f32 %v3653, 1.442695
        %v3755 = vpow.pop %v3754
        %v3756 = vmul.f32 %v3654, 1.442695
        %v3757 = vpow.pop %v3756
        %v3758 = vmul.f32 %v3655, 1.442695
        %v3759 = vpow.pop %v3758
        %v3760 = vmul.f32 %v3656, 1.442695
        %v3761 = vpow.pop %v3760
        %v3762 = vmul.f32 %v3657, 1.442695
        %v3763 = vpow.pop %v3762
        %v3764 = vmul.f32 %v3658, 1.442695
        %v3765 = vpow.pop %v3764
        %v3766 = vmul.f32 %v3659, 1.442695
        %v3767 = vpow.pop %v3766
        %v3768 = vmul.f32 %v3660, 1.442695
        %v3769 = vpow.pop %v3768
        %v3770 = vmul.f32 %v3661, 1.442695
        %v3771 = vpow.pop %v3770
        %v3772 = vmul.f32 %v3662, 1.442695
        %v3773 = vpow.pop %v3772
        %v3774 = vmul.f32 %v3663, 1.442695
        %v3775 = vpow.pop %v3774
        %v3776 = vmul.f32 %v3664, 1.442695
        %v3777 = vpow.pop %v3776
        %v3778 = vmul.f32 %v3665, 1.442695
        %v3779 = vpow.pop %v3778
        %v3780 = vmul.f32 %v3666, 1.442695
        %v3781 = vpow.pop %v3780
        %v3782 = vmul.f32 %v3667, 1.442695
        %v3783 = vpow.pop %v3782
        %v3784 = vmul.f32 %v3668, 1.442695
        %v3785 = vpow.pop %v3784
        %v3786 = vmul.f32 %v3669, 1.442695
        %v3787 = vpow.pop %v3786
        %v3788 = vmul.f32 %v3670, 1.442695
        %v3789 = vpow.pop %v3788
        %v3790 = vmul.f32 %v3671, 1.442695
        %v3791 = vpow.pop %v3790
        %v3792 = vmul.f32 %v3672, 1.442695
        %v3793 = vpow.pop %v3792
        %v3794 = vmul.f32 %v3673, 1.442695
        %v3795 = vpow.pop %v3794
        %v3796 = vmul.f32 %v3674, 1.442695
        %v3797 = vpow.pop %v3796
        %v3798 = vmul.f32 %v3675, 1.442695
        %v3799 = vpow.pop %v3798
        %v3800 = vmul.f32 %v3676, 1.442695
        %v3801 = vpow.pop %v3800
        %v3802 = vmul.f32 %v3677, 1.442695
        %v3803 = vpow.pop %v3802
        %v3804 = vmul.f32 %v3678, 1.442695
        %v3805 = vpow.pop %v3804
        %v3806 = vmul.f32 %v3679, 1.442695
        %v3807 = vpow.pop %v3806
        %v3808 = vmul.f32 %v886, %v3681
        %v3809 = vmul.f32 %v888, %v3683
        %v3810 = vmul.f32 %v890, %v3685
        %v3811 = vmul.f32 %v892, %v3687
        %v3812 = vmul.f32 %v894, %v3689
        %v3813 = vmul.f32 %v896, %v3691
        %v3814 = vmul.f32 %v898, %v3693
        %v3815 = vmul.f32 %v900, %v3695
        %v3816 = vmul.f32 %v902, %v3697
        %v3817 = vmul.f32 %v904, %v3699
        %v3818 = vmul.f32 %v906, %v3701
        %v3819 = vmul.f32 %v908, %v3703
        %v3820 = vmul.f32 %v910, %v3705
        %v3821 = vmul.f32 %v912, %v3707
        %v3822 = vmul.f32 %v914, %v3709
        %v3823 = vmul.f32 %v916, %v3711
        %v3824 = vmul.f32 %v918, %v3713
        %v3825 = vmul.f32 %v920, %v3715
        %v3826 = vmul.f32 %v922, %v3717
        %v3827 = vmul.f32 %v924, %v3719
        %v3828 = vmul.f32 %v926, %v3721
        %v3829 = vmul.f32 %v928, %v3723
        %v3830 = vmul.f32 %v930, %v3725
        %v3831 = vmul.f32 %v932, %v3727
        %v3832 = vmul.f32 %v934, %v3729
        %v3833 = vmul.f32 %v936, %v3731
        %v3834 = vmul.f32 %v938, %v3733
        %v3835 = vmul.f32 %v940, %v3735
        %v3836 = vmul.f32 %v942, %v3737
        %v3837 = vmul.f32 %v944, %v3739
        %v3838 = vmul.f32 %v946, %v3741
        %v3839 = vmul.f32 %v948, %v3743
        %v3840 = vmul.f32 %v950, %v3745
        %v3841 = vmul.f32 %v952, %v3747
        %v3842 = vmul.f32 %v954, %v3749
        %v3843 = vmul.f32 %v956, %v3751
        %v3844 = vmul.f32 %v958, %v3753
        %v3845 = vmul.f32 %v960, %v3755
        %v3846 = vmul.f32 %v962, %v3757
        %v3847 = vmul.f32 %v964, %v3759
        %v3848 = vmul.f32 %v966, %v3761
        %v3849 = vmul.f32 %v968, %v3763
        %v3850 = vmul.f32 %v970, %v3765
        %v3851 = vmul.f32 %v972, %v3767
        %v3852 = vmul.f32 %v974, %v3769
        %v3853 = vmul.f32 %v976, %v3771
        %v3854 = vmul.f32 %v978, %v3773
        %v3855 = vmul.f32 %v980, %v3775
        %v3856 = vmul.f32 %v982, %v3777
        %v3857 = vmul.f32 %v984, %v3779
        %v3858 = vmul.f32 %v986, %v3781
        %v3859 = vmul.f32 %v988, %v3783
        %v3860 = vmul.f32 %v990, %v3785
        %v3861 = vmul.f32 %v992, %v3787
        %v3862 = vmul.f32 %v994, %v3789
        %v3863 = vmul.f32 %v996, %v3791
        %v3864 = vmul.f32 %v998, %v3793
        %v3865 = vmul.f32 %v1000, %v3795
        %v3866 = vmul.f32 %v1002, %v3797
        %v3867 = vmul.f32 %v1004, %v3799
        %v3868 = vmul.f32 %v1006, %v3801
        %v3869 = vmul.f32 %v1008, %v3803
        %v3870 = vmul.f32 %v1010, %v3805
        %v3871 = vmul.f32 %v1012, %v3807
        %v3872 = vadd.f32 %v3808, %v3300
        %v3873 = vadd.f32 %v3809, %v3304
        %v3874 = vadd.f32 %v3810, %v3310
        %v3875 = vadd.f32 %v3811, %v3314
        %v3876 = vadd.f32 %v3812, %v3320
        %v3877 = vadd.f32 %v3813, %v3324
        %v3878 = vadd.f32 %v3814, %v3330
        %v3879 = vadd.f32 %v3815, %v3334
        %v3880 = vadd.f32 %v3816, %v3340
        %v3881 = vadd.f32 %v3817, %v3344
        %v3882 = vadd.f32 %v3818, %v3350
        %v3883 = vadd.f32 %v3819, %v3354
        %v3884 = vadd.f32 %v3820, %v3360
        %v3885 = vadd.f32 %v3821, %v3364
        %v3886 = vadd.f32 %v3822, %v3370
        %v3887 = vadd.f32 %v3823, %v3374
        %v3888 = vadd.f32 %v3824, %v3380
        %v3889 = vadd.f32 %v3825, %v3384
        %v3890 = vadd.f32 %v3826, %v3390
        %v3891 = vadd.f32 %v3827, %v3394
        %v3892 = vadd.f32 %v3828, %v3400
        %v3893 = vadd.f32 %v3829, %v3404
        %v3894 = vadd.f32 %v3830, %v3410
        %v3895 = vadd.f32 %v3831, %v3414
        %v3896 = vadd.f32 %v3832, %v3420
        %v3897 = vadd.f32 %v3833, %v3424
        %v3898 = vadd.f32 %v3834, %v3430
        %v3899 = vadd.f32 %v3835, %v3434
        %v3900 = vadd.f32 %v3836, %v3440
        %v3901 = vadd.f32 %v3837, %v3444
        %v3902 = vadd.f32 %v3838, %v3450
        %v3903 = vadd.f32 %v3839, %v3454
        %v3904 = vadd.f32 %v3840, %v3460
        %v3905 = vadd.f32 %v3841, %v3464
        %v3906 = vadd.f32 %v3842, %v3470
        %v3907 = vadd.f32 %v3843, %v3474
        %v3908 = vadd.f32 %v3844, %v3480
        %v3909 = vadd.f32 %v3845, %v3484
        %v3910 = vadd.f32 %v3846, %v3490
        %v3911 = vadd.f32 %v3847, %v3494
        %v3912 = vadd.f32 %v3848, %v3500
        %v3913 = vadd.f32 %v3849, %v3504
        %v3914 = vadd.f32 %v3850, %v3510
        %v3915 = vadd.f32 %v3851, %v3514
        %v3916 = vadd.f32 %v3852, %v3520
        %v3917 = vadd.f32 %v3853, %v3524
        %v3918 = vadd.f32 %v3854, %v3530
        %v3919 = vadd.f32 %v3855, %v3534
        %v3920 = vadd.f32 %v3856, %v3540
        %v3921 = vadd.f32 %v3857, %v3544
        %v3922 = vadd.f32 %v3858, %v3550
        %v3923 = vadd.f32 %v3859, %v3554
        %v3924 = vadd.f32 %v3860, %v3560
        %v3925 = vadd.f32 %v3861, %v3564
        %v3926 = vadd.f32 %v3862, %v3570
        %v3927 = vadd.f32 %v3863, %v3574
        %v3928 = vadd.f32 %v3864, %v3580
        %v3929 = vadd.f32 %v3865, %v3584
        %v3930 = vadd.f32 %v3866, %v3590
        %v3931 = vadd.f32 %v3867, %v3594
        %v3932 = vadd.f32 %v3868, %v3600
        %v3933 = vadd.f32 %v3869, %v3604
        %v3934 = vadd.f32 %v3870, %v3610
        %v3935 = vadd.f32 %v3871, %v3614
        %3936 = vst [vmem:[%s593] sm:$0xff] %v3872
        %3937 = vst [vmem:[%s593 + $0x10] sm:$0xff] %v3873
        %3938 = vst [vmem:[%s593 + $0x20] sm:$0xff] %v3874
        %3939 = vst [vmem:[%s593 + $0x30] sm:$0xff] %v3875
        %3940 = vst [vmem:[%s593 + $0x40] sm:$0xff] %v3876
        %3941 = vst [vmem:[%s593 + $0x50] sm:$0xff] %v3877
        %3942 = vst [vmem:[%s593 + $0x60] sm:$0xff] %v3878
        %3943 = vst [vmem:[%s593 + $0x70] sm:$0xff] %v3879
        %3944 = vst [vmem:[%s593 + $0x80] sm:$0xff] %v3880
        %3945 = vst [vmem:[%s593 + $0x90] sm:$0xff] %v3881
        %3946 = vst [vmem:[%s593 + $0xa0] sm:$0xff] %v3882
        %3947 = vst [vmem:[%s593 + $0xb0] sm:$0xff] %v3883
        %3948 = vst [vmem:[%s593 + $0xc0] sm:$0xff] %v3884
        %3949 = vst [vmem:[%s593 + $0xd0] sm:$0xff] %v3885
        %3950 = vst [vmem:[%s593 + $0xe0] sm:$0xff] %v3886
        %3951 = vst [vmem:[%s593 + $0xf0] sm:$0xff] %v3887
        %3952 = vst [vmem:[%s593 + $0x100] sm:$0xff] %v3888
        %3953 = vst [vmem:[%s593 + $0x110] sm:$0xff] %v3889
        %3954 = vst [vmem:[%s593 + $0x120] sm:$0xff] %v3890
        %3955 = vst [vmem:[%s593 + $0x130] sm:$0xff] %v3891
        %3956 = vst [vmem:[%s593 + $0x140] sm:$0xff] %v3892
        %3957 = vst [vmem:[%s593 + $0x150] sm:$0xff] %v3893
        %3958 = vst [vmem:[%s593 + $0x160] sm:$0xff] %v3894
        %3959 = vst [vmem:[%s593 + $0x170] sm:$0xff] %v3895
        %3960 = vst [vmem:[%s593 + $0x180] sm:$0xff] %v3896
        %3961 = vst [vmem:[%s593 + $0x190] sm:$0xff] %v3897
        %3962 = vst [vmem:[%s593 + $0x1a0] sm:$0xff] %v3898
        %3963 = vst [vmem:[%s593 + $0x1b0] sm:$0xff] %v3899
        %3964 = vst [vmem:[%s593 + $0x1c0] sm:$0xff] %v3900
        %3965 = vst [vmem:[%s593 + $0x1d0] sm:$0xff] %v3901
        %3966 = vst [vmem:[%s593 + $0x1e0] sm:$0xff] %v3902
        %3967 = vst [vmem:[%s593 + $0x1f0] sm:$0xff] %v3903
        %3968 = vst [vmem:[%s593 + $0x200] sm:$0xff] %v3904
        %3969 = vst [vmem:[%s593 + $0x210] sm:$0xff] %v3905
        %3970 = vst [vmem:[%s593 + $0x220] sm:$0xff] %v3906
        %3971 = vst [vmem:[%s593 + $0x230] sm:$0xff] %v3907
        %3972 = vst [vmem:[%s593 + $0x240] sm:$0xff] %v3908
        %3973 = vst [vmem:[%s593 + $0x250] sm:$0xff] %v3909
        %3974 = vst [vmem:[%s593 + $0x260] sm:$0xff] %v3910
        %3975 = vst [vmem:[%s593 + $0x270] sm:$0xff] %v3911
        %3976 = vst [vmem:[%s593 + $0x280] sm:$0xff] %v3912
        %3977 = vst [vmem:[%s593 + $0x290] sm:$0xff] %v3913
        %3978 = vst [vmem:[%s593 + $0x2a0] sm:$0xff] %v3914
        %3979 = vst [vmem:[%s593 + $0x2b0] sm:$0xff] %v3915
        %3980 = vst [vmem:[%s593 + $0x2c0] sm:$0xff] %v3916
        %3981 = vst [vmem:[%s593 + $0x2d0] sm:$0xff] %v3917
        %3982 = vst [vmem:[%s593 + $0x2e0] sm:$0xff] %v3918
        %3983 = vst [vmem:[%s593 + $0x2f0] sm:$0xff] %v3919
        %3984 = vst [vmem:[%s593 + $0x300] sm:$0xff] %v3920
        %3985 = vst [vmem:[%s593 + $0x310] sm:$0xff] %v3921
        %3986 = vst [vmem:[%s593 + $0x320] sm:$0xff] %v3922
        %3987 = vst [vmem:[%s593 + $0x330] sm:$0xff] %v3923
        %3988 = vst [vmem:[%s593 + $0x340] sm:$0xff] %v3924
        %3989 = vst [vmem:[%s593 + $0x350] sm:$0xff] %v3925
        %3990 = vst [vmem:[%s593 + $0x360] sm:$0xff] %v3926
        %3991 = vst [vmem:[%s593 + $0x370] sm:$0xff] %v3927
        %3992 = vst [vmem:[%s593 + $0x380] sm:$0xff] %v3928
        %3993 = vst [vmem:[%s593 + $0x390] sm:$0xff] %v3929
        %3994 = vst [vmem:[%s593 + $0x3a0] sm:$0xff] %v3930
        %3995 = vst [vmem:[%s593 + $0x3b0] sm:$0xff] %v3931
        %3996 = vst [vmem:[%s593 + $0x3c0] sm:$0xff] %v3932
        %3997 = vst [vmem:[%s593 + $0x3d0] sm:$0xff] %v3933
        %3998 = vst [vmem:[%s593 + $0x3e0] sm:$0xff] %v3934
        %3999 = vst [vmem:[%s593 + $0x3f0] sm:$0xff] %v3935
        %4000 = vst [vmem:[%s593 + $0x8] sm:$0xff] %v2347
        %4001 = vst [vmem:[%s593 + $0x18] sm:$0xff] %v2348
        %4002 = vst [vmem:[%s593 + $0x28] sm:$0xff] %v2349
        %4003 = vst [vmem:[%s593 + $0x38] sm:$0xff] %v2350
        %4004 = vst [vmem:[%s593 + $0x48] sm:$0xff] %v2351
        %4005 = vst [vmem:[%s593 + $0x58] sm:$0xff] %v2352
        %4006 = vst [vmem:[%s593 + $0x68] sm:$0xff] %v2353
        %4007 = vst [vmem:[%s593 + $0x78] sm:$0xff] %v2354
        %4008 = vst [vmem:[%s593 + $0x88] sm:$0xff] %v2355
        %4009 = vst [vmem:[%s593 + $0x98] sm:$0xff] %v2356
        %4010 = vst [vmem:[%s593 + $0xa8] sm:$0xff] %v2357
        %4011 = vst [vmem:[%s593 + $0xb8] sm:$0xff] %v2358
        %4012 = vst [vmem:[%s593 + $0xc8] sm:$0xff] %v2359
        %4013 = vst [vmem:[%s593 + $0xd8] sm:$0xff] %v2360
        %4014 = vst [vmem:[%s593 + $0xe8] sm:$0xff] %v2361
        %4015 = vst [vmem:[%s593 + $0xf8] sm:$0xff] %v2362
        %4016 = vst [vmem:[%s593 + $0x108] sm:$0xff] %v2363
        %4017 = vst [vmem:[%s593 + $0x118] sm:$0xff] %v2364
        %4018 = vst [vmem:[%s593 + $0x128] sm:$0xff] %v2365
        %4019 = vst [vmem:[%s593 + $0x138] sm:$0xff] %v2366
        %4020 = vst [vmem:[%s593 + $0x148] sm:$0xff] %v2367
        %4021 = vst [vmem:[%s593 + $0x158] sm:$0xff] %v2368
        %4022 = vst [vmem:[%s593 + $0x168] sm:$0xff] %v2369
        %4023 = vst [vmem:[%s593 + $0x178] sm:$0xff] %v2370
        %4024 = vst [vmem:[%s593 + $0x188] sm:$0xff] %v2371
        %4025 = vst [vmem:[%s593 + $0x198] sm:$0xff] %v2372
        %4026 = vst [vmem:[%s593 + $0x1a8] sm:$0xff] %v2373
        %4027 = vst [vmem:[%s593 + $0x1b8] sm:$0xff] %v2374
        %4028 = vst [vmem:[%s593 + $0x1c8] sm:$0xff] %v2375
        %4029 = vst [vmem:[%s593 + $0x1d8] sm:$0xff] %v2376
        %4030 = vst [vmem:[%s593 + $0x1e8] sm:$0xff] %v2377
        %4031 = vst [vmem:[%s593 + $0x1f8] sm:$0xff] %v2378
        %4032 = vst [vmem:[%s593 + $0x208] sm:$0xff] %v2379
        %4033 = vst [vmem:[%s593 + $0x218] sm:$0xff] %v2380
        %4034 = vst [vmem:[%s593 + $0x228] sm:$0xff] %v2381
        %4035 = vst [vmem:[%s593 + $0x238] sm:$0xff] %v2382
        %4036 = vst [vmem:[%s593 + $0x248] sm:$0xff] %v2383
        %4037 = vst [vmem:[%s593 + $0x258] sm:$0xff] %v2384
        %4038 = vst [vmem:[%s593 + $0x268] sm:$0xff] %v2385
        %4039 = vst [vmem:[%s593 + $0x278] sm:$0xff] %v2386
        %4040 = vst [vmem:[%s593 + $0x288] sm:$0xff] %v2387
        %4041 = vst [vmem:[%s593 + $0x298] sm:$0xff] %v2388
        %4042 = vst [vmem:[%s593 + $0x2a8] sm:$0xff] %v2389
        %4043 = vst [vmem:[%s593 + $0x2b8] sm:$0xff] %v2390
        %4044 = vst [vmem:[%s593 + $0x2c8] sm:$0xff] %v2391
        %4045 = vst [vmem:[%s593 + $0x2d8] sm:$0xff] %v2392
        %4046 = vst [vmem:[%s593 + $0x2e8] sm:$0xff] %v2393
        %4047 = vst [vmem:[%s593 + $0x2f8] sm:$0xff] %v2394
        %4048 = vst [vmem:[%s593 + $0x308] sm:$0xff] %v2395
        %4049 = vst [vmem:[%s593 + $0x318] sm:$0xff] %v2396
        %4050 = vst [vmem:[%s593 + $0x328] sm:$0xff] %v2397
        %4051 = vst [vmem:[%s593 + $0x338] sm:$0xff] %v2398
        %4052 = vst [vmem:[%s593 + $0x348] sm:$0xff] %v2399
        %4053 = vst [vmem:[%s593 + $0x358] sm:$0xff] %v2400
        %4054 = vst [vmem:[%s593 + $0x368] sm:$0xff] %v2401
        %4055 = vst [vmem:[%s593 + $0x378] sm:$0xff] %v2402
        %4056 = vst [vmem:[%s593 + $0x388] sm:$0xff] %v2403
        %4057 = vst [vmem:[%s593 + $0x398] sm:$0xff] %v2404
        %4058 = vst [vmem:[%s593 + $0x3a8] sm:$0xff] %v2405
        %4059 = vst [vmem:[%s593 + $0x3b8] sm:$0xff] %v2406
        %4060 = vst [vmem:[%s593 + $0x3c8] sm:$0xff] %v2407
        %4061 = vst [vmem:[%s593 + $0x3d8] sm:$0xff] %v2408
        %4062 = vst [vmem:[%s593 + $0x3e8] sm:$0xff] %v2409
        %4063 = vst [vmem:[%s593 + $0x3f8] sm:$0xff] %v2410
        %4064 = vadd.xlane.f32.xlu0 %v3616
        %v4065 = vpop.xlane.xlu0 %4064
        %4066 = vadd.xlane.f32.xlu0 %v3617
        %v4067 = vpop.xlane.xlu0 %4066
        %4068 = vadd.xlane.f32.xlu0 %v3618
        %v4069 = vpop.xlane.xlu0 %4068
        %4070 = vadd.xlane.f32.xlu0 %v3619
        %v4071 = vpop.xlane.xlu0 %4070
        %4072 = vadd.xlane.f32.xlu0 %v3620
        %v4073 = vpop.xlane.xlu0 %4072
        %4074 = vadd.xlane.f32.xlu0 %v3621
        %v4075 = vpop.xlane.xlu0 %4074
        %4076 = vadd.xlane.f32.xlu0 %v3622
        %v4077 = vpop.xlane.xlu0 %4076
        %4078 = vadd.xlane.f32.xlu0 %v3623
        %v4079 = vpop.xlane.xlu0 %4078
        %4080 = vadd.xlane.f32.xlu0 %v3624
        %v4081 = vpop.xlane.xlu0 %4080
        %4082 = vadd.xlane.f32.xlu0 %v3625
        %v4083 = vpop.xlane.xlu0 %4082
        %4084 = vadd.xlane.f32.xlu0 %v3626
        %v4085 = vpop.xlane.xlu0 %4084
        %4086 = vadd.xlane.f32.xlu0 %v3627
        %v4087 = vpop.xlane.xlu0 %4086
        %4088 = vadd.xlane.f32.xlu0 %v3628
        %v4089 = vpop.xlane.xlu0 %4088
        %4090 = vadd.xlane.f32.xlu0 %v3629
        %v4091 = vpop.xlane.xlu0 %4090
        %4092 = vadd.xlane.f32.xlu0 %v3630
        %v4093 = vpop.xlane.xlu0 %4092
        %4094 = vadd.xlane.f32.xlu0 %v3631
        %v4095 = vpop.xlane.xlu0 %4094
        %4096 = vadd.xlane.f32.xlu0 %v3632
        %v4097 = vpop.xlane.xlu0 %4096
        %4098 = vadd.xlane.f32.xlu0 %v3633
        %v4099 = vpop.xlane.xlu0 %4098
        %4100 = vadd.xlane.f32.xlu0 %v3634
        %v4101 = vpop.xlane.xlu0 %4100
        %4102 = vadd.xlane.f32.xlu0 %v3635
        %v4103 = vpop.xlane.xlu0 %4102
        %4104 = vadd.xlane.f32.xlu0 %v3636
        %v4105 = vpop.xlane.xlu0 %4104
        %4106 = vadd.xlane.f32.xlu0 %v3637
        %v4107 = vpop.xlane.xlu0 %4106
        %4108 = vadd.xlane.f32.xlu0 %v3638
        %v4109 = vpop.xlane.xlu0 %4108
        %4110 = vadd.xlane.f32.xlu0 %v3639
        %v4111 = vpop.xlane.xlu0 %4110
        %4112 = vadd.xlane.f32.xlu0 %v3640
        %v4113 = vpop.xlane.xlu0 %4112
        %4114 = vadd.xlane.f32.xlu0 %v3641
        %v4115 = vpop.xlane.xlu0 %4114
        %4116 = vadd.xlane.f32.xlu0 %v3642
        %v4117 = vpop.xlane.xlu0 %4116
        %4118 = vadd.xlane.f32.xlu0 %v3643
        %v4119 = vpop.xlane.xlu0 %4118
        %4120 = vadd.xlane.f32.xlu0 %v3644
        %v4121 = vpop.xlane.xlu0 %4120
        %4122 = vadd.xlane.f32.xlu0 %v3645
        %v4123 = vpop.xlane.xlu0 %4122
        %4124 = vadd.xlane.f32.xlu0 %v3646
        %v4125 = vpop.xlane.xlu0 %4124
        %4126 = vadd.xlane.f32.xlu0 %v3647
        %v4127 = vpop.xlane.xlu0 %4126
        %4128 = vadd.xlane.f32.xlu0 %v3648
        %v4129 = vpop.xlane.xlu0 %4128
        %4130 = vadd.xlane.f32.xlu0 %v3649
        %v4131 = vpop.xlane.xlu0 %4130
        %4132 = vadd.xlane.f32.xlu0 %v3650
        %v4133 = vpop.xlane.xlu0 %4132
        %4134 = vadd.xlane.f32.xlu0 %v3651
        %v4135 = vpop.xlane.xlu0 %4134
        %4136 = vadd.xlane.f32.xlu0 %v3652
        %v4137 = vpop.xlane.xlu0 %4136
        %4138 = vadd.xlane.f32.xlu0 %v3653
        %v4139 = vpop.xlane.xlu0 %4138
        %4140 = vadd.xlane.f32.xlu0 %v3654
        %v4141 = vpop.xlane.xlu0 %4140
        %4142 = vadd.xlane.f32.xlu0 %v3655
        %v4143 = vpop.xlane.xlu0 %4142
        %4144 = vadd.xlane.f32.xlu0 %v3656
        %v4145 = vpop.xlane.xlu0 %4144
        %4146 = vadd.xlane.f32.xlu0 %v3657
        %v4147 = vpop.xlane.xlu0 %4146
        %4148 = vadd.xlane.f32.xlu0 %v3658
        %v4149 = vpop.xlane.xlu0 %4148
        %4150 = vadd.xlane.f32.xlu0 %v3659
        %v4151 = vpop.xlane.xlu0 %4150
        %4152 = vadd.xlane.f32.xlu0 %v3660
        %v4153 = vpop.xlane.xlu0 %4152
        %4154 = vadd.xlane.f32.xlu0 %v3661
        %v4155 = vpop.xlane.xlu0 %4154
        %4156 = vadd.xlane.f32.xlu0 %v3662
        %v4157 = vpop.xlane.xlu0 %4156
        %4158 = vadd.xlane.f32.xlu0 %v3663
        %v4159 = vpop.xlane.xlu0 %4158
        %4160 = vadd.xlane.f32.xlu0 %v3664
        %v4161 = vpop.xlane.xlu0 %4160
        %4162 = vadd.xlane.f32.xlu0 %v3665
        %v4163 = vpop.xlane.xlu0 %4162
        %4164 = vadd.xlane.f32.xlu0 %v3666
        %v4165 = vpop.xlane.xlu0 %4164
        %4166 = vadd.xlane.f32.xlu0 %v3667
        %v4167 = vpop.xlane.xlu0 %4166
        %4168 = vadd.xlane.f32.xlu0 %v3668
        %v4169 = vpop.xlane.xlu0 %4168
        %4170 = vadd.xlane.f32.xlu0 %v3669
        %v4171 = vpop.xlane.xlu0 %4170
        %4172 = vadd.xlane.f32.xlu0 %v3670
        %v4173 = vpop.xlane.xlu0 %4172
        %4174 = vadd.xlane.f32.xlu0 %v3671
        %v4175 = vpop.xlane.xlu0 %4174
        %4176 = vadd.xlane.f32.xlu0 %v3672
        %v4177 = vpop.xlane.xlu0 %4176
        %4178 = vadd.xlane.f32.xlu0 %v3673
        %v4179 = vpop.xlane.xlu0 %4178
        %4180 = vadd.xlane.f32.xlu0 %v3674
        %v4181 = vpop.xlane.xlu0 %4180
        %4182 = vadd.xlane.f32.xlu0 %v3675
        %v4183 = vpop.xlane.xlu0 %4182
        %4184 = vadd.xlane.f32.xlu0 %v3676
        %v4185 = vpop.xlane.xlu0 %4184
        %4186 = vadd.xlane.f32.xlu0 %v3677
        %v4187 = vpop.xlane.xlu0 %4186
        %4188 = vadd.xlane.f32.xlu0 %v3678
        %v4189 = vpop.xlane.xlu0 %4188
        %4190 = vadd.xlane.f32.xlu0 %v3679
        %v4191 = vpop.xlane.xlu0 %4190
        %v4192 = vadd.f32 %v2540, %v4065
        %v4193 = vadd.f32 %v2542, %v4067
        %v4194 = vadd.f32 %v2544, %v4069
        %v4195 = vadd.f32 %v2546, %v4071
        %v4196 = vadd.f32 %v2548, %v4073
        %v4197 = vadd.f32 %v2550, %v4075
        %v4198 = vadd.f32 %v2552, %v4077
        %v4199 = vadd.f32 %v2554, %v4079
        %v4200 = vadd.f32 %v2556, %v4081
        %v4201 = vadd.f32 %v2558, %v4083
        %v4202 = vadd.f32 %v2560, %v4085
        %v4203 = vadd.f32 %v2562, %v4087
        %v4204 = vadd.f32 %v2564, %v4089
        %v4205 = vadd.f32 %v2566, %v4091
        %v4206 = vadd.f32 %v2568, %v4093
        %v4207 = vadd.f32 %v2570, %v4095
        %v4208 = vadd.f32 %v2572, %v4097
        %v4209 = vadd.f32 %v2574, %v4099
        %v4210 = vadd.f32 %v2576, %v4101
        %v4211 = vadd.f32 %v2578, %v4103
        %v4212 = vadd.f32 %v2580, %v4105
        %v4213 = vadd.f32 %v2582, %v4107
        %v4214 = vadd.f32 %v2584, %v4109
        %v4215 = vadd.f32 %v2586, %v4111
        %v4216 = vadd.f32 %v2588, %v4113
        %v4217 = vadd.f32 %v2590, %v4115
        %v4218 = vadd.f32 %v2592, %v4117
        %v4219 = vadd.f32 %v2594, %v4119
        %v4220 = vadd.f32 %v2596, %v4121
        %v4221 = vadd.f32 %v2598, %v4123
        %v4222 = vadd.f32 %v2600, %v4125
        %v4223 = vadd.f32 %v2602, %v4127
        %v4224 = vadd.f32 %v2604, %v4129
        %v4225 = vadd.f32 %v2606, %v4131
        %v4226 = vadd.f32 %v2608, %v4133
        %v4227 = vadd.f32 %v2610, %v4135
        %v4228 = vadd.f32 %v2612, %v4137
        %v4229 = vadd.f32 %v2614, %v4139
        %v4230 = vadd.f32 %v2616, %v4141
        %v4231 = vadd.f32 %v2618, %v4143
        %v4232 = vadd.f32 %v2620, %v4145
        %v4233 = vadd.f32 %v2622, %v4147
        %v4234 = vadd.f32 %v2624, %v4149
        %v4235 = vadd.f32 %v2626, %v4151
        %v4236 = vadd.f32 %v2628, %v4153
        %v4237 = vadd.f32 %v2630, %v4155
        %v4238 = vadd.f32 %v2632, %v4157
        %v4239 = vadd.f32 %v2634, %v4159
        %v4240 = vadd.f32 %v2636, %v4161
        %v4241 = vadd.f32 %v2638, %v4163
        %v4242 = vadd.f32 %v2640, %v4165
        %v4243 = vadd.f32 %v2642, %v4167
        %v4244 = vadd.f32 %v2644, %v4169
        %v4245 = vadd.f32 %v2646, %v4171
        %v4246 = vadd.f32 %v2648, %v4173
        %v4247 = vadd.f32 %v2650, %v4175
        %v4248 = vadd.f32 %v2652, %v4177
        %v4249 = vadd.f32 %v2654, %v4179
        %v4250 = vadd.f32 %v2656, %v4181
        %v4251 = vadd.f32 %v2658, %v4183
        %v4252 = vadd.f32 %v2660, %v4185
        %v4253 = vadd.f32 %v2662, %v4187
        %v4254 = vadd.f32 %v2664, %v4189
        %v4255 = vadd.f32 %v2666, %v4191
        %s4256 = sld [smem:[#allocation2]]
        %v4257 = vstv %s4256
        %v4258 = vadd.f32 %v4192, %v4257
        %v4259 = vadd.f32 %v4193, %v4257
        %v4260 = vadd.f32 %v4194, %v4257
        %v4261 = vadd.f32 %v4195, %v4257
        %v4262 = vadd.f32 %v4196, %v4257
        %v4263 = vadd.f32 %v4197, %v4257
        %v4264 = vadd.f32 %v4198, %v4257
        %v4265 = vadd.f32 %v4199, %v4257
        %v4266 = vadd.f32 %v4200, %v4257
        %v4267 = vadd.f32 %v4201, %v4257
        %v4268 = vadd.f32 %v4202, %v4257
        %v4269 = vadd.f32 %v4203, %v4257
        %v4270 = vadd.f32 %v4204, %v4257
        %v4271 = vadd.f32 %v4205, %v4257
        %v4272 = vadd.f32 %v4206, %v4257
        %v4273 = vadd.f32 %v4207, %v4257
        %v4274 = vadd.f32 %v4208, %v4257
        %v4275 = vadd.f32 %v4209, %v4257
        %v4276 = vadd.f32 %v4210, %v4257
        %v4277 = vadd.f32 %v4211, %v4257
        %v4278 = vadd.f32 %v4212, %v4257
        %v4279 = vadd.f32 %v4213, %v4257
        %v4280 = vadd.f32 %v4214, %v4257
        %v4281 = vadd.f32 %v4215, %v4257
        %v4282 = vadd.f32 %v4216, %v4257
        %v4283 = vadd.f32 %v4217, %v4257
        %v4284 = vadd.f32 %v4218, %v4257
        %v4285 = vadd.f32 %v4219, %v4257
        %v4286 = vadd.f32 %v4220, %v4257
        %v4287 = vadd.f32 %v4221, %v4257
        %v4288 = vadd.f32 %v4222, %v4257
        %v4289 = vadd.f32 %v4223, %v4257
        %v4290 = vadd.f32 %v4224, %v4257
        %v4291 = vadd.f32 %v4225, %v4257
        %v4292 = vadd.f32 %v4226, %v4257
        %v4293 = vadd.f32 %v4227, %v4257
        %v4294 = vadd.f32 %v4228, %v4257
        %v4295 = vadd.f32 %v4229, %v4257
        %v4296 = vadd.f32 %v4230, %v4257
        %v4297 = vadd.f32 %v4231, %v4257
        %v4298 = vadd.f32 %v4232, %v4257
        %v4299 = vadd.f32 %v4233, %v4257
        %v4300 = vadd.f32 %v4234, %v4257
        %v4301 = vadd.f32 %v4235, %v4257
        %v4302 = vadd.f32 %v4236, %v4257
        %v4303 = vadd.f32 %v4237, %v4257
        %v4304 = vadd.f32 %v4238, %v4257
        %v4305 = vadd.f32 %v4239, %v4257
        %v4306 = vadd.f32 %v4240, %v4257
        %v4307 = vadd.f32 %v4241, %v4257
        %v4308 = vadd.f32 %v4242, %v4257
        %v4309 = vadd.f32 %v4243, %v4257
        %v4310 = vadd.f32 %v4244, %v4257
        %v4311 = vadd.f32 %v4245, %v4257
        %v4312 = vadd.f32 %v4246, %v4257
        %v4313 = vadd.f32 %v4247, %v4257
        %v4314 = vadd.f32 %v4248, %v4257
        %v4315 = vadd.f32 %v4249, %v4257
        %v4316 = vadd.f32 %v4250, %v4257
        %v4317 = vadd.f32 %v4251, %v4257
        %v4318 = vadd.f32 %v4252, %v4257
        %v4319 = vadd.f32 %v4253, %v4257
        %v4320 = vadd.f32 %v4254, %v4257
        %v4321 = vadd.f32 %v4255, %v4257
        %v4386 = vlaneseq
        %v4387 = vand.u32 %v4386, 127
        %v4388 = vlaneseq
        %v4389 = vshrl.u32 %v4388, 7
        %v4390 = vsub.s32 %v4387, %v4389
        %v4391 = vrot.slane %v4258, %v4390
        %v4392 = vadd.s32 %v4387, 4294967288
        %v4393 = vlaneseq
        %v4394 = vshrl.u32 %v4393, 7
        %v4395 = vsub.s32 %v4392, %v4394
        %v4396 = vrot.slane %v4259, %v4395
        %vm4397 = vcmask 130112
        %v4398 = vsel %vm4397, %v4396, %v4391
        %v4399 = vadd.s32 %v4387, 4294967280
        %v4400 = vlaneseq
        %v4401 = vshrl.u32 %v4400, 7
        %v4402 = vsub.s32 %v4399, %v4401
        %v4403 = vrot.slane %v4260, %v4402
        %vm4404 = vcmask 195712
        %v4405 = vsel %vm4404, %v4403, %v4398
        %v4406 = vadd.s32 %v4387, 4294967272
        %v4407 = vlaneseq
        %v4408 = vshrl.u32 %v4407, 7
        %v4409 = vsub.s32 %v4406, %v4408
        %v4410 = vrot.slane %v4261, %v4409
        %vm4411 = vcmask 261312
        %v4412 = vsel %vm4411, %v4410, %v4405
        %v4413 = vadd.s32 %v4387, 4294967264
        %v4414 = vlaneseq
        %v4415 = vshrl.u32 %v4414, 7
        %v4416 = vsub.s32 %v4413, %v4415
        %v4417 = vrot.slane %v4262, %v4416
        %vm4418 = vcmask 326912
        %v4419 = vsel %vm4418, %v4417, %v4412
        %v4420 = vadd.s32 %v4387, 4294967256
        %v4421 = vlaneseq
        %v4422 = vshrl.u32 %v4421, 7
        %v4423 = vsub.s32 %v4420, %v4422
        %v4424 = vrot.slane %v4263, %v4423
        %vm4425 = vcmask 392512
        %v4426 = vsel %vm4425, %v4424, %v4419
        %v4427 = vadd.s32 %v4387, 4294967248
        %v4428 = vlaneseq
        %v4429 = vshrl.u32 %v4428, 7
        %v4430 = vsub.s32 %v4427, %v4429
        %v4431 = vrot.slane %v4264, %v4430
        %vm4432 = vcmask 458112
        %v4433 = vsel %vm4432, %v4431, %v4426
        %v4434 = vadd.s32 %v4387, 4294967240
        %v4435 = vlaneseq
        %v4436 = vshrl.u32 %v4435, 7
        %v4437 = vsub.s32 %v4434, %v4436
        %v4438 = vrot.slane %v4265, %v4437
        %vm4439 = vcmask 523712
        %v4440 = vsel %vm4439, %v4438, %v4433
        %v4441 = vadd.s32 %v4387, 4294967232
        %v4442 = vlaneseq
        %v4443 = vshrl.u32 %v4442, 7
        %v4444 = vsub.s32 %v4441, %v4443
        %v4445 = vrot.slane %v4266, %v4444
        %vm4446 = vcmask 589312
        %v4447 = vsel %vm4446, %v4445, %v4440
        %v4448 = vadd.s32 %v4387, 4294967224
        %v4449 = vlaneseq
        %v4450 = vshrl.u32 %v4449, 7
        %v4451 = vsub.s32 %v4448, %v4450
        %v4452 = vrot.slane %v4267, %v4451
        %vm4453 = vcmask 654912
        %v4454 = vsel %vm4453, %v4452, %v4447
        %v4455 = vadd.s32 %v4387, 4294967216
        %v4456 = vlaneseq
        %v4457 = vshrl.u32 %v4456, 7
        %v4458 = vsub.s32 %v4455, %v4457
        %v4459 = vrot.slane %v4268, %v4458
        %vm4460 = vcmask 720512
        %v4461 = vsel %vm4460, %v4459, %v4454
        %v4462 = vadd.s32 %v4387, 4294967208
        %v4463 = vlaneseq
        %v4464 = vshrl.u32 %v4463, 7
        %v4465 = vsub.s32 %v4462, %v4464
        %v4466 = vrot.slane %v4269, %v4465
        %vm4467 = vcmask 786112
        %v4468 = vsel %vm4467, %v4466, %v4461
        %v4469 = vadd.s32 %v4387, 4294967200
        %v4470 = vlaneseq
        %v4471 = vshrl.u32 %v4470, 7
        %v4472 = vsub.s32 %v4469, %v4471
        %v4473 = vrot.slane %v4270, %v4472
        %vm4474 = vcmask 851712
        %v4475 = vsel %vm4474, %v4473, %v4468
        %v4476 = vadd.s32 %v4387, 4294967192
        %v4477 = vlaneseq
        %v4478 = vshrl.u32 %v4477, 7
        %v4479 = vsub.s32 %v4476, %v4478
        %v4480 = vrot.slane %v4271, %v4479
        %vm4481 = vcmask 917312
        %v4482 = vsel %vm4481, %v4480, %v4475
        %v4483 = vadd.s32 %v4387, 4294967184
        %v4484 = vlaneseq
        %v4485 = vshrl.u32 %v4484, 7
        %v4486 = vsub.s32 %v4483, %v4485
        %v4487 = vrot.slane %v4272, %v4486
        %vm4488 = vcmask 982912
        %v4489 = vsel %vm4488, %v4487, %v4482
        %v4490 = vadd.s32 %v4387, 4294967176
        %v4491 = vlaneseq
        %v4492 = vshrl.u32 %v4491, 7
        %v4493 = vsub.s32 %v4490, %v4492
        %v4494 = vrot.slane %v4273, %v4493
        %vm4495 = vcmask 1048512
        %v4496 = vsel %vm4495, %v4494, %v4489
        %v4497 = vlaneseq
        %v4498 = vshrl.u32 %v4497, 7
        %v4499 = vsub.s32 %v4387, %v4498
        %v4500 = vrot.slane %v4274, %v4499
        %v4501 = vlaneseq
        %v4502 = vshrl.u32 %v4501, 7
        %v4503 = vsub.s32 %v4392, %v4502
        %v4504 = vrot.slane %v4275, %v4503
        %v4505 = vsel %vm4397, %v4504, %v4500
        %v4506 = vlaneseq
        %v4507 = vshrl.u32 %v4506, 7
        %v4508 = vsub.s32 %v4399, %v4507
        %v4509 = vrot.slane %v4276, %v4508
        %v4510 = vsel %vm4404, %v4509, %v4505
        %v4511 = vlaneseq
        %v4512 = vshrl.u32 %v4511, 7
        %v4513 = vsub.s32 %v4406, %v4512
        %v4514 = vrot.slane %v4277, %v4513
        %v4515 = vsel %vm4411, %v4514, %v4510
        %v4516 = vlaneseq
        %v4517 = vshrl.u32 %v4516, 7
        %v4518 = vsub.s32 %v4413, %v4517
        %v4519 = vrot.slane %v4278, %v4518
        %v4520 = vsel %vm4418, %v4519, %v4515
        %v4521 = vlaneseq
        %v4522 = vshrl.u32 %v4521, 7
        %v4523 = vsub.s32 %v4420, %v4522
        %v4524 = vrot.slane %v4279, %v4523
        %v4525 = vsel %vm4425, %v4524, %v4520
        %v4526 = vlaneseq
        %v4527 = vshrl.u32 %v4526, 7
        %v4528 = vsub.s32 %v4427, %v4527
        %v4529 = vrot.slane %v4280, %v4528
        %v4530 = vsel %vm4432, %v4529, %v4525
        %v4531 = vlaneseq
        %v4532 = vshrl.u32 %v4531, 7
        %v4533 = vsub.s32 %v4434, %v4532
        %v4534 = vrot.slane %v4281, %v4533
        %v4535 = vsel %vm4439, %v4534, %v4530
        %v4536 = vlaneseq
        %v4537 = vshrl.u32 %v4536, 7
        %v4538 = vsub.s32 %v4441, %v4537
        %v4539 = vrot.slane %v4282, %v4538
        %v4540 = vsel %vm4446, %v4539, %v4535
        %v4541 = vlaneseq
        %v4542 = vshrl.u32 %v4541, 7
        %v4543 = vsub.s32 %v4448, %v4542
        %v4544 = vrot.slane %v4283, %v4543
        %v4545 = vsel %vm4453, %v4544, %v4540
        %v4546 = vlaneseq
        %v4547 = vshrl.u32 %v4546, 7
        %v4548 = vsub.s32 %v4455, %v4547
        %v4549 = vrot.slane %v4284, %v4548
        %v4550 = vsel %vm4460, %v4549, %v4545
        %v4551 = vlaneseq
        %v4552 = vshrl.u32 %v4551, 7
        %v4553 = vsub.s32 %v4462, %v4552
        %v4554 = vrot.slane %v4285, %v4553
        %v4555 = vsel %vm4467, %v4554, %v4550
        %v4556 = vlaneseq
        %v4557 = vshrl.u32 %v4556, 7
        %v4558 = vsub.s32 %v4469, %v4557
        %v4559 = vrot.slane %v4286, %v4558
        %v4560 = vsel %vm4474, %v4559, %v4555
        %v4561 = vlaneseq
        %v4562 = vshrl.u32 %v4561, 7
        %v4563 = vsub.s32 %v4476, %v4562
        %v4564 = vrot.slane %v4287, %v4563
        %v4565 = vsel %vm4481, %v4564, %v4560
        %v4566 = vlaneseq
        %v4567 = vshrl.u32 %v4566, 7
        %v4568 = vsub.s32 %v4483, %v4567
        %v4569 = vrot.slane %v4288, %v4568
        %v4570 = vsel %vm4488, %v4569, %v4565
        %v4571 = vlaneseq
        %v4572 = vshrl.u32 %v4571, 7
        %v4573 = vsub.s32 %v4490, %v4572
        %v4574 = vrot.slane %v4289, %v4573
        %v4575 = vsel %vm4495, %v4574, %v4570
        %v4576 = vlaneseq
        %v4577 = vshrl.u32 %v4576, 7
        %v4578 = vsub.s32 %v4387, %v4577
        %v4579 = vrot.slane %v4290, %v4578
        %v4580 = vlaneseq
        %v4581 = vshrl.u32 %v4580, 7
        %v4582 = vsub.s32 %v4392, %v4581
        %v4583 = vrot.slane %v4291, %v4582
        %v4584 = vsel %vm4397, %v4583, %v4579
        %v4585 = vlaneseq
        %v4586 = vshrl.u32 %v4585, 7
        %v4587 = vsub.s32 %v4399, %v4586
        %v4588 = vrot.slane %v4292, %v4587
        %v4589 = vsel %vm4404, %v4588, %v4584
        %v4590 = vlaneseq
        %v4591 = vshrl.u32 %v4590, 7
        %v4592 = vsub.s32 %v4406, %v4591
        %v4593 = vrot.slane %v4293, %v4592
        %v4594 = vsel %vm4411, %v4593, %v4589
        %v4595 = vlaneseq
        %v4596 = vshrl.u32 %v4595, 7
        %v4597 = vsub.s32 %v4413, %v4596
        %v4598 = vrot.slane %v4294, %v4597
        %v4599 = vsel %vm4418, %v4598, %v4594
        %v4600 = vlaneseq
        %v4601 = vshrl.u32 %v4600, 7
        %v4602 = vsub.s32 %v4420, %v4601
        %v4603 = vrot.slane %v4295, %v4602
        %v4604 = vsel %vm4425, %v4603, %v4599
        %v4605 = vlaneseq
        %v4606 = vshrl.u32 %v4605, 7
        %v4607 = vsub.s32 %v4427, %v4606
        %v4608 = vrot.slane %v4296, %v4607
        %v4609 = vsel %vm4432, %v4608, %v4604
        %v4610 = vlaneseq
        %v4611 = vshrl.u32 %v4610, 7
        %v4612 = vsub.s32 %v4434, %v4611
        %v4613 = vrot.slane %v4297, %v4612
        %v4614 = vsel %vm4439, %v4613, %v4609
        %v4615 = vlaneseq
        %v4616 = vshrl.u32 %v4615, 7
        %v4617 = vsub.s32 %v4441, %v4616
        %v4618 = vrot.slane %v4298, %v4617
        %v4619 = vsel %vm4446, %v4618, %v4614
        %v4620 = vlaneseq
        %v4621 = vshrl.u32 %v4620, 7
        %v4622 = vsub.s32 %v4448, %v4621
        %v4623 = vrot.slane %v4299, %v4622
        %v4624 = vsel %vm4453, %v4623, %v4619
        %v4625 = vlaneseq
        %v4626 = vshrl.u32 %v4625, 7
        %v4627 = vsub.s32 %v4455, %v4626
        %v4628 = vrot.slane %v4300, %v4627
        %v4629 = vsel %vm4460, %v4628, %v4624
        %v4630 = vlaneseq
        %v4631 = vshrl.u32 %v4630, 7
        %v4632 = vsub.s32 %v4462, %v4631
        %v4633 = vrot.slane %v4301, %v4632
        %v4634 = vsel %vm4467, %v4633, %v4629
        %v4635 = vlaneseq
        %v4636 = vshrl.u32 %v4635, 7
        %v4637 = vsub.s32 %v4469, %v4636
        %v4638 = vrot.slane %v4302, %v4637
        %v4639 = vsel %vm4474, %v4638, %v4634
        %v4640 = vlaneseq
        %v4641 = vshrl.u32 %v4640, 7
        %v4642 = vsub.s32 %v4476, %v4641
        %v4643 = vrot.slane %v4303, %v4642
        %v4644 = vsel %vm4481, %v4643, %v4639
        %v4645 = vlaneseq
        %v4646 = vshrl.u32 %v4645, 7
        %v4647 = vsub.s32 %v4483, %v4646
        %v4648 = vrot.slane %v4304, %v4647
        %v4649 = vsel %vm4488, %v4648, %v4644
        %v4650 = vlaneseq
        %v4651 = vshrl.u32 %v4650, 7
        %v4652 = vsub.s32 %v4490, %v4651
        %v4653 = vrot.slane %v4305, %v4652
        %v4654 = vsel %vm4495, %v4653, %v4649
        %v4655 = vlaneseq
        %v4656 = vshrl.u32 %v4655, 7
        %v4657 = vsub.s32 %v4387, %v4656
        %v4658 = vrot.slane %v4306, %v4657
        %v4659 = vlaneseq
        %v4660 = vshrl.u32 %v4659, 7
        %v4661 = vsub.s32 %v4392, %v4660
        %v4662 = vrot.slane %v4307, %v4661
        %v4663 = vsel %vm4397, %v4662, %v4658
        %v4664 = vlaneseq
        %v4665 = vshrl.u32 %v4664, 7
        %v4666 = vsub.s32 %v4399, %v4665
        %v4667 = vrot.slane %v4308, %v4666
        %v4668 = vsel %vm4404, %v4667, %v4663
        %v4669 = vlaneseq
        %v4670 = vshrl.u32 %v4669, 7
        %v4671 = vsub.s32 %v4406, %v4670
        %v4672 = vrot.slane %v4309, %v4671
        %v4673 = vsel %vm4411, %v4672, %v4668
        %v4674 = vlaneseq
        %v4675 = vshrl.u32 %v4674, 7
        %v4676 = vsub.s32 %v4413, %v4675
        %v4677 = vrot.slane %v4310, %v4676
        %v4678 = vsel %vm4418, %v4677, %v4673
        %v4679 = vlaneseq
        %v4680 = vshrl.u32 %v4679, 7
        %v4681 = vsub.s32 %v4420, %v4680
        %v4682 = vrot.slane %v4311, %v4681
        %v4683 = vsel %vm4425, %v4682, %v4678
        %v4684 = vlaneseq
        %v4685 = vshrl.u32 %v4684, 7
        %v4686 = vsub.s32 %v4427, %v4685
        %v4687 = vrot.slane %v4312, %v4686
        %v4688 = vsel %vm4432, %v4687, %v4683
        %v4689 = vlaneseq
        %v4690 = vshrl.u32 %v4689, 7
        %v4691 = vsub.s32 %v4434, %v4690
        %v4692 = vrot.slane %v4313, %v4691
        %v4693 = vsel %vm4439, %v4692, %v4688
        %v4694 = vlaneseq
        %v4695 = vshrl.u32 %v4694, 7
        %v4696 = vsub.s32 %v4441, %v4695
        %v4697 = vrot.slane %v4314, %v4696
        %v4698 = vsel %vm4446, %v4697, %v4693
        %v4699 = vlaneseq
        %v4700 = vshrl.u32 %v4699, 7
        %v4701 = vsub.s32 %v4448, %v4700
        %v4702 = vrot.slane %v4315, %v4701
        %v4703 = vsel %vm4453, %v4702, %v4698
        %v4704 = vlaneseq
        %v4705 = vshrl.u32 %v4704, 7
        %v4706 = vsub.s32 %v4455, %v4705
        %v4707 = vrot.slane %v4316, %v4706
        %v4708 = vsel %vm4460, %v4707, %v4703
        %v4709 = vlaneseq
        %v4710 = vshrl.u32 %v4709, 7
        %v4711 = vsub.s32 %v4462, %v4710
        %v4712 = vrot.slane %v4317, %v4711
        %v4713 = vsel %vm4467, %v4712, %v4708
        %v4714 = vlaneseq
        %v4715 = vshrl.u32 %v4714, 7
        %v4716 = vsub.s32 %v4469, %v4715
        %v4717 = vrot.slane %v4318, %v4716
        %v4718 = vsel %vm4474, %v4717, %v4713
        %v4719 = vlaneseq
        %v4720 = vshrl.u32 %v4719, 7
        %v4721 = vsub.s32 %v4476, %v4720
        %v4722 = vrot.slane %v4319, %v4721
        %v4723 = vsel %vm4481, %v4722, %v4718
        %v4724 = vlaneseq
        %v4725 = vshrl.u32 %v4724, 7
        %v4726 = vsub.s32 %v4483, %v4725
        %v4727 = vrot.slane %v4320, %v4726
        %v4728 = vsel %vm4488, %v4727, %v4723
        %v4729 = vlaneseq
        %v4730 = vshrl.u32 %v4729, 7
        %v4731 = vsub.s32 %v4490, %v4730
        %v4732 = vrot.slane %v4321, %v4731
        %v4733 = vsel %vm4495, %v4732, %v4728
        %vm4734 = vcmask 1041409
        %v4735 = vsel %vm4734, %v4575, %v4496
        %vm4736 = vcmask 1042434
        %v4737 = vsel %vm4736, %v4654, %v4735
        %vm4738 = vcmask 1043459
        %v4739 = vsel %vm4738, %v4733, %v4737
        %4741 = vst [vmem:[%s600] sm:$0xf] %v4739
        %s4742 = sand.u32 %s307, 1
        %s4743 = scalar_lea.sflag [#allocation5], %s4742
        %s4744 = sand.u32 %s307, 1
        %s4745 = smul.addr %s4744, 1024
        %s4746 = scalar_lea.vmem [#allocation12], %s4745
        %s4747 = sand.u32 %s42, 1
        %s4748 = scalar_lea.sflag [#allocation14], %s4747
        %s4749 = sand.u32 %s333, 1
        %s4750 = smul.addr %s4749, 1024
        %s4751 = scalar_lea.vmem [#allocation13], %s4750
        %s4752 = sand.u32 %s42, 1
        %s4753 = scalar_lea.sflag [#allocation14], %s4752
        %s4754 = sand.u32 %s359, 1
        %s4755 = smul.addr %s4754, 1024
        %s4756 = scalar_lea.vmem [#allocation15], %s4755
        %s4757 = sand.u32 %s385, 1
        %s4758 = scalar_lea.sflag [#allocation17], %s4757
        %s4759 = sand.u32 %s385, 1
        %s4760 = smul.addr %s4759, 4
        %s4761 = scalar_lea.vmem [#allocation16], %s4760
        // Predicated region
        $region89: #{tpu_custom_call.1} parent=67 // pred_check
          %p4762 = pneg %p317
        $region90: #{tpu_custom_call.1} parent=67 // pred_check_branch
          %4764 = sbr.rel (%p4762) target = $region92
        $region91: #{tpu_custom_call.1} parent=67 // pred_region
          %s4765 = smul.u32 64, %s42
          %s4767 = ssub.s32 16384, 16384
          %4768 = vsyncadd %s4743, %s4767
          %s4769 = smul.addr %s4765, 2
          %s4770 = smul.addr %s4769, 128
          %s4771 = scalar_lea.hbm %s12, %s4770
          %s4772 = sshll.u32 %s4746, 4
          %s4773 = int_to_ptr.vmem [resolvable:$true] %s4772
          %4778 = dma.vmem_to_hbm [thread:$0]  %s4773, 16384, %s4771, %s4743, 256, 256, 16
        $region92: #{tpu_custom_call.1} parent=67 // pred_fallthru
          _
        // Predicated region
        $region93: #{tpu_custom_call.1} parent=67 // pred_check
          %p4779 = pneg %p343
        $region94: #{tpu_custom_call.1} parent=67 // pred_check_branch
          %4781 = sbr.rel (%p4779) target = $region96
        $region95: #{tpu_custom_call.1} parent=67 // pred_region
          %s4782 = smul.u32 64, %s42
          %s4784 = ssub.s32 16384, 16384
          %4785 = vsyncadd %s4748, %s4784
          %s4786 = smul.addr %s4782, 2
          %s4787 = smul.addr %s4786, 128
          %s4788 = scalar_lea.hbm %s13, %s4787
          %s4789 = sshll.u32 %s4751, 4
          %s4790 = int_to_ptr.vmem [resolvable:$true] %s4789
          %4795 = dma.vmem_to_hbm [thread:$0]  %s4790, 16384, %s4788, %s4748, 256, 256, 16
        $region96: #{tpu_custom_call.1} parent=67 // pred_fallthru
          _
        // Predicated region
        $region97: #{tpu_custom_call.1} parent=67 // pred_check
          %p4796 = pneg %p369
        $region98: #{tpu_custom_call.1} parent=67 // pred_check_branch
          %4798 = sbr.rel (%p4796) target = $region100
        $region99: #{tpu_custom_call.1} parent=67 // pred_region
          %s4799 = smul.u32 64, %s42
          %s4801 = ssub.s32 16384, 16384
          %4802 = vsyncadd %s4753, %s4801
          %s4803 = smul.addr %s4799, 2
          %s4804 = smul.addr %s4803, 128
          %s4805 = scalar_lea.hbm %s14, %s4804
          %s4806 = sshll.u32 %s4756, 4
          %s4807 = int_to_ptr.vmem [resolvable:$true] %s4806
          %4812 = dma.vmem_to_hbm [thread:$0]  %s4807, 16384, %s4805, %s4753, 256, 256, 16
        $region100: #{tpu_custom_call.1} parent=67 // pred_fallthru
          _
        // Predicated region
        $region101: #{tpu_custom_call.1} parent=67 // pred_check
          %p4813 = pneg %p395
        $region102: #{tpu_custom_call.1} parent=67 // pred_check_branch
          %4815 = sbr.rel (%p4813) target = $region104
        $region103: #{tpu_custom_call.1} parent=67 // pred_region
          %s4817 = ssub.s32 64, 64
          %4818 = vsyncadd %s4758, %s4817
          %s4819 = smul.addr %s42, 64
          %s4820 = scalar_lea.hbm %s15, %s4819
          %s4822 = sshll.u32 %s4761, 4
          %s4823 = int_to_ptr.vmem [resolvable:$true] %s4822
          %4825 = dma.vmem_to_hbm [thread:$0]  %s4823, 64, %s4820, %s4758
        $region104: #{tpu_custom_call.1} parent=67 // pred_fallthru
          _
      $region68: #{tpu_custom_call.1} parent=5 // pred_fallthru
        _
      %p4826 = scmp.le.s32.totalorder 2, %s37
      // Predicated region
      $region105: #{tpu_custom_call.1} parent=5 // pred_check
        %p4827 = pneg %p4826
      $region106: #{tpu_custom_call.1} parent=5 // pred_check_branch
        %4829 = sbr.rel (%p4827) target = $region108
      $region107: #{tpu_custom_call.1} parent=5 // pred_region
        %s4830 = ssub.s32 %s37, 2
        // Predicated region
        $region109: #{tpu_custom_call.1} parent=107 // pred_check
          %p4831 = pneg %p323
        $region110: #{tpu_custom_call.1} parent=107 // pred_check_branch
          %4833 = sbr.rel (%p4831) target = $region112
        $region111: #{tpu_custom_call.1} parent=107 // pred_region
          %s4834 = sand.u32 %s308, 1
          %s4835 = scalar_lea.sflag [#allocation5], %s4834
          %s4836 = sand.u32 %s308, 1
          %s4837 = smul.addr %s4836, 1024
          %s4838 = scalar_lea.vmem [#allocation12], %s4837
          %4839 = dma.done %s4835, 16384
        $region112: #{tpu_custom_call.1} parent=107 // pred_fallthru
          _
        // Predicated region
        $region113: #{tpu_custom_call.1} parent=107 // pred_check
          %p4840 = pneg %p349
        $region114: #{tpu_custom_call.1} parent=107 // pred_check_branch
          %4842 = sbr.rel (%p4840) target = $region116
        $region115: #{tpu_custom_call.1} parent=107 // pred_region
          %s4843 = sand.u32 %s43, 1
          %s4844 = scalar_lea.sflag [#allocation14], %s4843
          %s4845 = sand.u32 %s334, 1
          %s4846 = smul.addr %s4845, 1024
          %s4847 = scalar_lea.vmem [#allocation13], %s4846
          %4848 = dma.done %s4844, 16384
        $region116: #{tpu_custom_call.1} parent=107 // pred_fallthru
          _
        // Predicated region
        $region117: #{tpu_custom_call.1} parent=107 // pred_check
          %p4849 = pneg %p375
        $region118: #{tpu_custom_call.1} parent=107 // pred_check_branch
          %4851 = sbr.rel (%p4849) target = $region120
        $region119: #{tpu_custom_call.1} parent=107 // pred_region
          %s4852 = sand.u32 %s43, 1
          %s4853 = scalar_lea.sflag [#allocation14], %s4852
          %s4854 = sand.u32 %s360, 1
          %s4855 = smul.addr %s4854, 1024
          %s4856 = scalar_lea.vmem [#allocation15], %s4855
          %4857 = dma.done %s4853, 16384
        $region120: #{tpu_custom_call.1} parent=107 // pred_fallthru
          _
        // Predicated region
        $region121: #{tpu_custom_call.1} parent=107 // pred_check
          %p4858 = pneg %p401
        $region122: #{tpu_custom_call.1} parent=107 // pred_check_branch
          %4860 = sbr.rel (%p4858) target = $region124
        $region123: #{tpu_custom_call.1} parent=107 // pred_region
          %s4861 = sand.u32 %s386, 1
          %s4862 = scalar_lea.sflag [#allocation17], %s4861
          %s4863 = sand.u32 %s386, 1
          %s4864 = smul.addr %s4863, 4
          %s4865 = scalar_lea.vmem [#allocation16], %s4864
          %4866 = dma.done %s4862, 64
        $region124: #{tpu_custom_call.1} parent=107 // pred_fallthru
          _
      $region108: #{tpu_custom_call.1} parent=5 // pred_fallthru
        _
    $region6: #{tpu_custom_call.1} parent=1 // loop_footer
      %s41 = sadd.s32 1, %s37
    $region7: #{tpu_custom_call.1} parent=1 // loop_footer_branch
      %36 = sbr.rel target = $region3
    $region8: #{tpu_custom_call.1} parent=1 // loop_exit
      _
    %4867 = vsyncpa [#allocation4], 1
    %s4868 = scalar_lea.sflag [#allocation4], 1
    %4869 = vsyncpa %s4868, 1
    %4870 = vsyncpa [#allocation7], 1
    %4871 = vsyncpa [#allocation10], 1
    %4872 = vsyncpa [#allocation5], 1
    %s4873 = scalar_lea.sflag [#allocation5], 1
    %4874 = vsyncpa %s4873, 1
    %4875 = vsyncpa [#allocation14], 1
    %s4876 = scalar_lea.sflag [#allocation14], 1
    %4877 = vsyncpa %s4876, 1
    %4878 = vsyncpa [#allocation17], 1
    %s4879 = scalar_lea.sflag [#allocation17], 1
    %4880 = vsyncpa %s4879, 1

</llo_original>
